<compile_context>
chip_gen: v7x
topology: tpu7x:2x2x1
jax: 0.10.0
libtpu: 0.0.40
codegen_flags: <defaults>
</compile_context>

<pallas_src>
import functools

import numpy as np
import jax
import jax.numpy as jnp
from jax.experimental import pallas as pl
from jax.experimental.pallas import tpu as pltpu


_DILATIONS = (1, 2, 4, 8)                 # every dilation RSU4F uses
_D_IDX = {d: i for i, d in enumerate(_DILATIONS)}
_CPAD = 16                                # bf16 sublane tile -> channel pad


def _round_up(x, m):
    return (x + m - 1) // m * m


def _tap_masks(H, W, HWp):
    """(4*9, HWp) f32 validity masks: is tap (ky,kx) in-image at each pixel.

    Lanes >= H*W (spatial padding up to a multiple of 128) are zero.
    """
    hw = H * W
    rows = np.arange(hw) // W
    cols = np.arange(hw) % W
    masks = np.zeros((len(_DILATIONS) * 9, HWp), np.float32)
    for di, d in enumerate(_DILATIONS):
        for t in range(9):
            dy, dx = (t // 3 - 1) * d, (t % 3 - 1) * d
            ok = ((rows + dy >= 0) & (rows + dy < H) &
                  (cols + dx >= 0) & (cols + dx < W))
            masks[di * 9 + t, :hw] = ok.astype(np.float32)
    return masks


# ----------------------------------------------------------------------------
# Fused RSU4F kernel
# ----------------------------------------------------------------------------
def _make_rsu4f_kernel(H, W, HWp, compute_dtype):

    def kernel(x_ref, m_ref,
               win_ref, bin_ref, w1_ref, b1_ref, w2_ref, b2_ref,
               w3_ref, b3_ref, w4_ref, b4_ref,
               w3d_ref, b3d_ref, w2d_ref, b2d_ref, w1d_ref, b1d_ref,
               o_ref, col_ref):

        def conv(sources, w_ref, b_ref, d):
            """One REBNCONV: dilated 3x3 conv + folded-BN bias + ReLU.

            sources : list of channel-padded (cpad, HWp) f32 activations
                      (two sources emulate the decoder channel concat).
            Each tap is a full-width lane roll of the activation times a
            precomputed 0/1 validity mask, stored as one dense bf16 row block
            of the im2col slab; the conv is ONE fat-K MXU matmul.
            """
            base = 0
            for xs in sources:
                cpad = xs.shape[0]
                for t in range(9):
                    dy = (t // 3 - 1) * d
                    dx = (t % 3 - 1) * d
                    off = dy * W + dx                     # static lane shift
                    r0 = base + t * cpad
                    if off == 0:                          # centre tap: mask==1
                        col_ref[r0:r0 + cpad, :] = xs.astype(compute_dtype)
                    else:
                        mrow = _D_IDX[d] * 9 + t
                        shifted = pltpu.roll(xs, (-off) % HWp, axis=1)
                        col_ref[r0:r0 + cpad, :] = (
                            shifted * m_ref[mrow:mrow + 1, :]
                        ).astype(compute_dtype)
                base += 9 * cpad
            # one fat-K MXU matmul: (cpad_out, K) @ (K, HWp), f32 accumulate
            acc = jnp.dot(w_ref[...], col_ref[0:base, :],
                          preferred_element_type=jnp.float32)
            return jnp.maximum(acc + b_ref[...], 0.0)     # f32 epilogue

        x = x_ref[...].astype(jnp.float32)                # (cp_in, HWp)

        # Encoder
        hxin = conv([x], win_ref, bin_ref, 1)
        hx1 = conv([hxin], w1_ref, b1_ref, 1)
        hx2 = conv([hx1], w2_ref, b2_ref, 2)
        hx3 = conv([hx2], w3_ref, b3_ref, 4)
        hx4 = conv([hx3], w4_ref, b4_ref, 8)

        # Decoder: cat(hx4, hx3) etc. = two source blocks of one slab,
        # consumed by a single matmul per conv.
        hx3d = conv([hx4, hx3], w3d_ref, b3d_ref, 4)
        hx2d = conv([hx3d, hx2], w2d_ref, b2d_ref, 2)
        hx1d = conv([hx2d, hx1], w1d_ref, b1d_ref, 1)

        out_ch = o_ref.shape[0]
        o_ref[...] = (hx1d + hxin)[0:out_ch, :].astype(o_ref.dtype)

    return kernel


# ----------------------------------------------------------------------------
# Wrapper: weight folding / padding + pallas_call
# ----------------------------------------------------------------------------
def rsu4f_forward(params, x_nchw, compute_dtype=jnp.bfloat16):
    """RSU4F forward. x_nchw: (N, in_ch, H, W) -> (N, out_ch, H, W)."""
    N, in_ch, H, W = x_nchw.shape
    HW = H * W
    HWp = _round_up(HW, 128)                    # lane-dense spatial axis
    out_ch = params["in"]["w"].shape[3]
    mid = params["c1"]["w"].shape[3]

    cp_in = _round_up(in_ch, _CPAD)
    cp_out = _round_up(out_ch, _CPAD)
    cp_mid = _round_up(mid, _CPAD)

    def fold(w, scale, cpi, cpo):
        # (3,3,cin,cout) * BN scale -> (cpo, 9*cpi), zero padded, bf16.
        cin, cout = w.shape[2], w.shape[3]
        wf = w.astype(jnp.float32) * scale.astype(jnp.float32).reshape(1, 1, 1, cout)
        wf = jnp.pad(wf, ((0, 0), (0, 0), (0, cpi - cin), (0, cpo - cout)))
        return jnp.transpose(wf.reshape(9 * cpi, cpo)).astype(compute_dtype)

    def fold_bias(p, cpo):
        b = p["bias"].astype(jnp.float32)
        return jnp.pad(b, (0, cpo - b.shape[0])).reshape(-1, 1)

    def single(p, cpi, cpo):
        return fold(p["w"], p["scale"], cpi, cpo), fold_bias(p, cpo)

    def dual(p, csplit, cpi, cpo):
        # One unsplit weight for the two-source (concat) convs.
        wa = fold(p["w"][:, :, :csplit, :], p["scale"], cpi, cpo)
        wb = fold(p["w"][:, :, csplit:, :], p["scale"], cpi, cpo)
        return jnp.concatenate([wa, wb], axis=1), fold_bias(p, cpo)

    win, bin_ = single(params["in"], cp_in, cp_out)
    w1, b1 = single(params["c1"], cp_out, cp_mid)
    w2, b2 = single(params["c2"], cp_mid, cp_mid)
    w3, b3 = single(params["c3"], cp_mid, cp_mid)
    w4, b4 = single(params["c4"], cp_mid, cp_mid)
    w3d, b3d = dual(params["c3d"], mid, cp_mid, cp_mid)
    w2d, b2d = dual(params["c2d"], mid, cp_mid, cp_mid)
    w1d, b1d = dual(params["c1d"], mid, cp_mid, cp_out)

    masks = jnp.asarray(_tap_masks(H, W, HWp))          # (36, HWp) f32

    # NCHW is already channel-major -> flattening is free; pad channels to
    # the sublane tile and lanes to a multiple of 128 (zeros).
    x_flat = x_nchw.reshape(N, in_ch, HW).astype(jnp.float32)
    x_pad = jnp.pad(x_flat, ((0, 0), (0, cp_in - in_ch), (0, HWp - HW)))

    col_rows = max(9 * cp_in, 9 * cp_out, 18 * cp_mid)

    operands = [x_pad, masks,
                win, bin_, w1, b1, w2, b2, w3, b3, w4, b4,
                w3d, b3d, w2d, b2d, w1d, b1d]

    in_specs = [pl.BlockSpec((None, cp_in, HWp), lambda n: (n, 0, 0))]
    in_specs += [pl.BlockSpec(op.shape, lambda n: (0, 0)) for op in operands[1:]]

    # Scoped-VMEM budget: double-buffered constants + x/out blocks + col slab
    # + live f32 activations, with headroom.
    itemsize = jnp.dtype(compute_dtype).itemsize
    const_b = sum(int(np.prod(a.shape)) * jnp.dtype(a.dtype).itemsize
                  for a in operands[1:])
    io_b = 2 * (cp_in + out_ch) * HWp * 4
    col_b = col_rows * HWp * itemsize
    act_b = 10 * max(cp_in, cp_out, cp_mid) * HWp * 4
    vmem_limit = int(min(128 * 1024 * 1024,
                         max(32 * 1024 * 1024,
                             1.5 * (2 * const_b + io_b + col_b + act_b))))

    out = pl.pallas_call(
        _make_rsu4f_kernel(H, W, HWp, compute_dtype),
        out_shape=jax.ShapeDtypeStruct((N, out_ch, HWp), x_nchw.dtype),
        grid=(N,),
        in_specs=in_specs,
        out_specs=pl.BlockSpec((None, out_ch, HWp), lambda n: (n, 0, 0)),
        scratch_shapes=[pltpu.VMEM((col_rows, HWp), compute_dtype)],
        compiler_params=pltpu.CompilerParams(
            dimension_semantics=("parallel",),          # batch across TCs
            vmem_limit_bytes=vmem_limit),
    )(*operands)

    return out[:, :, :HW].reshape(N, out_ch, H, W)


# ----------------------------------------------------------------------------
# Parameter construction (deterministic, synthetic; inference-folded BN)
# ----------------------------------------------------------------------------
def _init_rebnconv(key, cin, cout):
    k_w, k_b, k_g, k_be, k_m, k_v = jax.random.split(key, 6)
    w = 0.1 * jax.random.normal(k_w, (3, 3, cin, cout), jnp.float32)
    conv_b = 0.1 * jax.random.normal(k_b, (cout,), jnp.float32)
    gamma = 1.0 + 0.1 * jax.random.normal(k_g, (cout,), jnp.float32)
    beta = 0.1 * jax.random.normal(k_be, (cout,), jnp.float32)
    run_mean = 0.1 * jax.random.normal(k_m, (cout,), jnp.float32)
    run_var = 1.0 + 0.1 * jnp.abs(jax.random.normal(k_v, (cout,), jnp.float32))
    eps = 1e-5
    eff_scale = gamma / jnp.sqrt(run_var + eps)
    eff_bias = (conv_b - run_mean) * eff_scale + beta
    return {"w": w, "scale": eff_scale, "bias": eff_bias}


def init_rsu4f_params(key, in_ch, mid_ch, out_ch):
    keys = jax.random.split(key, 8)
    return {
        "in":  _init_rebnconv(keys[0], in_ch,      out_ch),
        "c1":  _init_rebnconv(keys[1], out_ch,     mid_ch),
        "c2":  _init_rebnconv(keys[2], mid_ch,     mid_ch),
        "c3":  _init_rebnconv(keys[3], mid_ch,     mid_ch),
        "c4":  _init_rebnconv(keys[4], mid_ch,     mid_ch),
        "c3d": _init_rebnconv(keys[5], mid_ch * 2, mid_ch),
        "c2d": _init_rebnconv(keys[6], mid_ch * 2, mid_ch),
        "c1d": _init_rebnconv(keys[7], mid_ch * 2, out_ch),
    }


# ----------------------------------------------------------------------------
# Pure-JAX reference (same math as the PyTorch module, inference-mode BN).
# compute_dtype=bf16 reproduces the kernel's bf16-operand / f32-accumulate
# matmuls; compute_dtype=f32 is the exact module semantics.
# ----------------------------------------------------------------------------
def _ref_rebnconv(x, p, d, compute_dtype):
    cout = p["w"].shape[3]
    w = (p["w"].astype(jnp.float32)
         * p["scale"].astype(jnp.float32).reshape(1, 1, 1, cout))
    y = jax.lax.conv_general_dilated(
        x.astype(compute_dtype), w.astype(compute_dtype),
        window_strides=(1, 1),
        padding=[(d, d), (d, d)],
        rhs_dilation=(d, d),
        dimension_numbers=("NCHW", "HWIO", "NCHW"),
        preferred_element_type=jnp.float32,
        precision=jax.lax.Precision.HIGHEST)
    y = y + p["bias"].astype(jnp.float32).reshape(1, -1, 1, 1)
    return jnp.maximum(y, 0.0)


def rsu4f_reference(params, x, compute_dtype=jnp.float32):
    hxin = _ref_rebnconv(x, params["in"], 1, compute_dtype)
    hx1 = _ref_rebnconv(hxin, params["c1"], 1, compute_dtype)
    hx2 = _ref_rebnconv(hx1, params["c2"], 2, compute_dtype)
    hx3 = _ref_rebnconv(hx2, params["c3"], 4, compute_dtype)
    hx4 = _ref_rebnconv(hx3, params["c4"], 8, compute_dtype)
    hx3d = _ref_rebnconv(jnp.concatenate([hx4, hx3], 1), params["c3d"], 4,
                         compute_dtype)
    hx2d = _ref_rebnconv(jnp.concatenate([hx3d, hx2], 1), params["c2d"], 2,
                         compute_dtype)
    hx1d = _ref_rebnconv(jnp.concatenate([hx2d, hx1], 1), params["c1d"], 1,
                         compute_dtype)
    return hx1d + hxin


# ----------------------------------------------------------------------------
if __name__ == "__main__":
    key = jax.random.PRNGKey(0)
    k_param, k_x = jax.random.split(key)

    N, IN_CH, MID_CH, OUT_CH, HW_SIZE = 2, 4, 8, 4, 16

    params = init_rsu4f_params(k_param, IN_CH, MID_CH, OUT_CH)
    x = jax.random.normal(k_x, (N, IN_CH, HW_SIZE, HW_SIZE), jnp.float32)

    # --- bf16-MXU fast path (default) ---
    fwd_bf16 = jax.jit(functools.partial(rsu4f_forward, params))
    out_bf16 = jax.block_until_ready(fwd_bf16(x))
    assert out_bf16.shape == (N, OUT_CH, HW_SIZE, HW_SIZE), out_bf16.shape
    assert out_bf16.dtype == jnp.float32
    assert bool(jnp.all(jnp.isfinite(out_bf16)))

    # matched reference: same bf16 conv operands, f32 accumulation
    ref_bf16 = jax.block_until_ready(
        jax.jit(functools.partial(rsu4f_reference, params,
                                  compute_dtype=jnp.bfloat16))(x))
    err_bf16 = float(jnp.max(jnp.abs(out_bf16 - ref_bf16)))
    assert bool(jnp.allclose(out_bf16, ref_bf16, atol=1e-2, rtol=1e-2)), err_bf16

    # --- f32-MXU path: tight layout/semantics check vs the exact f32 module ---
    fwd_f32 = jax.jit(functools.partial(rsu4f_forward, params,
                                        compute_dtype=jnp.float32))
    out_f32 = jax.block_until_ready(fwd_f32(x))
    ref_f32 = jax.block_until_ready(
        jax.jit(functools.partial(rsu4f_reference, params,
                                  compute_dtype=jnp.float32))(x))
    err_f32 = float(jnp.max(jnp.abs(out_f32 - ref_f32)))
    assert bool(jnp.allclose(out_f32, ref_f32, atol=2e-3, rtol=2e-3)), err_f32

    # bf16 fast path vs f32 truth: loose precision sanity bound
    assert bool(jnp.allclose(out_bf16, ref_f32, atol=5e-2, rtol=5e-2))

    print("KERNEL_OK")
</pallas_src>

<mosaic_0001>
module attributes {stable_mosaic.version = 11 : i64} {
  func.func @kernel(%arg0: i32, %arg1: memref<1x16x256xf32, #tpu.memory_space<vmem>>, %arg2: memref<36x256xf32, #tpu.memory_space<vmem>>, %arg3: memref<16x144xbf16, #tpu.memory_space<vmem>>, %arg4: memref<16x1xf32, #tpu.memory_space<vmem>>, %arg5: memref<16x144xbf16, #tpu.memory_space<vmem>>, %arg6: memref<16x1xf32, #tpu.memory_space<vmem>>, %arg7: memref<16x144xbf16, #tpu.memory_space<vmem>>, %arg8: memref<16x1xf32, #tpu.memory_space<vmem>>, %arg9: memref<16x144xbf16, #tpu.memory_space<vmem>>, %arg10: memref<16x1xf32, #tpu.memory_space<vmem>>, %arg11: memref<16x144xbf16, #tpu.memory_space<vmem>>, %arg12: memref<16x1xf32, #tpu.memory_space<vmem>>, %arg13: memref<16x288xbf16, #tpu.memory_space<vmem>>, %arg14: memref<16x1xf32, #tpu.memory_space<vmem>>, %arg15: memref<16x288xbf16, #tpu.memory_space<vmem>>, %arg16: memref<16x1xf32, #tpu.memory_space<vmem>>, %arg17: memref<16x288xbf16, #tpu.memory_space<vmem>>, %arg18: memref<16x1xf32, #tpu.memory_space<vmem>>, %arg19: memref<1x4x256xf32, #tpu.memory_space<vmem>>, %arg20: memref<288x256xbf16, #tpu.memory_space<vmem>>) attributes {dimension_semantics = [#tpu.dimension_semantics<parallel>], iteration_bounds = array<i64: 2>, scalar_prefetch = 0 : i64, scratch_operands = 1 : i64, tpu.core_type = #tpu.core_type<tc>, window_params = [{transform_indices = @transform_0, window_bounds = array<i64: 1, 16, 256>}, {pipeline_mode = #tpu.pipeline_mode<synchronous>, transform_indices = @transform_1, window_bounds = array<i64: 36, 256>}, {pipeline_mode = #tpu.pipeline_mode<synchronous>, transform_indices = @transform_2, window_bounds = array<i64: 16, 144>}, {pipeline_mode = #tpu.pipeline_mode<synchronous>, transform_indices = @transform_3, window_bounds = array<i64: 16, 1>}, {pipeline_mode = #tpu.pipeline_mode<synchronous>, transform_indices = @transform_4, window_bounds = array<i64: 16, 144>}, {pipeline_mode = #tpu.pipeline_mode<synchronous>, transform_indices = @transform_5, window_bounds = array<i64: 16, 1>}, {pipeline_mode = #tpu.pipeline_mode<synchronous>, transform_indices = @transform_6, window_bounds = array<i64: 16, 144>}, {pipeline_mode = #tpu.pipeline_mode<synchronous>, transform_indices = @transform_7, window_bounds = array<i64: 16, 1>}, {pipeline_mode = #tpu.pipeline_mode<synchronous>, transform_indices = @transform_8, window_bounds = array<i64: 16, 144>}, {pipeline_mode = #tpu.pipeline_mode<synchronous>, transform_indices = @transform_9, window_bounds = array<i64: 16, 1>}, {pipeline_mode = #tpu.pipeline_mode<synchronous>, transform_indices = @transform_10, window_bounds = array<i64: 16, 144>}, {pipeline_mode = #tpu.pipeline_mode<synchronous>, transform_indices = @transform_11, window_bounds = array<i64: 16, 1>}, {pipeline_mode = #tpu.pipeline_mode<synchronous>, transform_indices = @transform_12, window_bounds = array<i64: 16, 288>}, {pipeline_mode = #tpu.pipeline_mode<synchronous>, transform_indices = @transform_13, window_bounds = array<i64: 16, 1>}, {pipeline_mode = #tpu.pipeline_mode<synchronous>, transform_indices = @transform_14, window_bounds = array<i64: 16, 288>}, {pipeline_mode = #tpu.pipeline_mode<synchronous>, transform_indices = @transform_15, window_bounds = array<i64: 16, 1>}, {pipeline_mode = #tpu.pipeline_mode<synchronous>, transform_indices = @transform_16, window_bounds = array<i64: 16, 288>}, {pipeline_mode = #tpu.pipeline_mode<synchronous>, transform_indices = @transform_17, window_bounds = array<i64: 16, 1>}, {transform_indices = @transform_18, window_bounds = array<i64: 1, 4, 256>}]} {
    %c0 = arith.constant 0 : index
    %c0_0 = arith.constant 0 : index
    %c0_1 = arith.constant 0 : index
    %0 = vector.load %arg1[%c0, %c0_0, %c0_1] : memref<1x16x256xf32, #tpu.memory_space<vmem>>, vector<1x16x256xf32>
    %1 = vector.shape_cast %0 : vector<1x16x256xf32> to vector<16x256xf32>
    %c17_i32 = arith.constant 17 : i32
    %2 = tpu.dynamic_rotate %1 by %c17_i32 dim 1 : vector<16x256xf32>, i32 -> vector<16x256xf32>
    %c0_2 = arith.constant 0 : index
    %c0_3 = arith.constant 0 : index
    %3 = vector.load %arg2[%c0_2, %c0_3] : memref<36x256xf32, #tpu.memory_space<vmem>>, vector<1x256xf32>
    %4 = vector.broadcast %3 : vector<1x256xf32> to vector<16x256xf32>
    %5 = arith.mulf %2, %4 : vector<16x256xf32>
    %6 = arith.truncf %5 : vector<16x256xf32> to vector<16x256xbf16>
    %c0_4 = arith.constant 0 : index
    %c0_5 = arith.constant 0 : index
    %7 = vector.load %arg20[%c0_4, %c0_5] : memref<288x256xbf16, #tpu.memory_space<vmem>>, vector<16x256xbf16>
    tpu.vector_store %arg20[%c0_4, %c0_5], %6 {strides = array<i32>} : memref<288x256xbf16, #tpu.memory_space<vmem>>, vector<16x256xbf16>,
    %c16_i32 = arith.constant 16 : i32
    %8 = tpu.dynamic_rotate %1 by %c16_i32 dim 1 : vector<16x256xf32>, i32 -> vector<16x256xf32>
    %c1 = arith.constant 1 : index
    %c0_6 = arith.constant 0 : index
    %9 = vector.load %arg2[%c1, %c0_6] : memref<36x256xf32, #tpu.memory_space<vmem>>, vector<1x256xf32>
    %10 = vector.broadcast %9 : vector<1x256xf32> to vector<16x256xf32>
    %11 = arith.mulf %8, %10 : vector<16x256xf32>
    %12 = arith.truncf %11 : vector<16x256xf32> to vector<16x256xbf16>
    %c16 = arith.constant 16 : index
    %c0_7 = arith.constant 0 : index
    %13 = vector.load %arg20[%c16, %c0_7] : memref<288x256xbf16, #tpu.memory_space<vmem>>, vector<16x256xbf16>
    tpu.vector_store %arg20[%c16, %c0_7], %12 {strides = array<i32>} : memref<288x256xbf16, #tpu.memory_space<vmem>>, vector<16x256xbf16>,
    %c15_i32 = arith.constant 15 : i32
    %14 = tpu.dynamic_rotate %1 by %c15_i32 dim 1 : vector<16x256xf32>, i32 -> vector<16x256xf32>
    %c2 = arith.constant 2 : index
    %c0_8 = arith.constant 0 : index
    %15 = vector.load %arg2[%c2, %c0_8] : memref<36x256xf32, #tpu.memory_space<vmem>>, vector<1x256xf32>
    %16 = vector.broadcast %15 : vector<1x256xf32> to vector<16x256xf32>
    %17 = arith.mulf %14, %16 : vector<16x256xf32>
    %18 = arith.truncf %17 : vector<16x256xf32> to vector<16x256xbf16>
    %c32 = arith.constant 32 : index
    %c0_9 = arith.constant 0 : index
    %19 = vector.load %arg20[%c32, %c0_9] : memref<288x256xbf16, #tpu.memory_space<vmem>>, vector<16x256xbf16>
    tpu.vector_store %arg20[%c32, %c0_9], %18 {strides = array<i32>} : memref<288x256xbf16, #tpu.memory_space<vmem>>, vector<16x256xbf16>,
    %c1_i32 = arith.constant 1 : i32
    %20 = tpu.dynamic_rotate %1 by %c1_i32 dim 1 : vector<16x256xf32>, i32 -> vector<16x256xf32>
    %c3 = arith.constant 3 : index
    %c0_10 = arith.constant 0 : index
    %21 = vector.load %arg2[%c3, %c0_10] : memref<36x256xf32, #tpu.memory_space<vmem>>, vector<1x256xf32>
    %22 = vector.broadcast %21 : vector<1x256xf32> to vector<16x256xf32>
    %23 = arith.mulf %20, %22 : vector<16x256xf32>
    %24 = arith.truncf %23 : vector<16x256xf32> to vector<16x256xbf16>
    %c48 = arith.constant 48 : index
    %c0_11 = arith.constant 0 : index
    %25 = vector.load %arg20[%c48, %c0_11] : memref<288x256xbf16, #tpu.memory_space<vmem>>, vector<16x256xbf16>
    tpu.vector_store %arg20[%c48, %c0_11], %24 {strides = array<i32>} : memref<288x256xbf16, #tpu.memory_space<vmem>>, vector<16x256xbf16>,
    %26 = arith.truncf %1 : vector<16x256xf32> to vector<16x256xbf16>
    %c64 = arith.constant 64 : index
    %c0_12 = arith.constant 0 : index
    %27 = vector.load %arg20[%c64, %c0_12] : memref<288x256xbf16, #tpu.memory_space<vmem>>, vector<16x256xbf16>
    tpu.vector_store %arg20[%c64, %c0_12], %26 {strides = array<i32>} : memref<288x256xbf16, #tpu.memory_space<vmem>>, vector<16x256xbf16>,
    %c255_i32 = arith.constant 255 : i32
    %28 = tpu.dynamic_rotate %1 by %c255_i32 dim 1 : vector<16x256xf32>, i32 -> vector<16x256xf32>
    %c5 = arith.constant 5 : index
    %c0_13 = arith.constant 0 : index
    %29 = vector.load %arg2[%c5, %c0_13] : memref<36x256xf32, #tpu.memory_space<vmem>>, vector<1x256xf32>
    %30 = vector.broadcast %29 : vector<1x256xf32> to vector<16x256xf32>
    %31 = arith.mulf %28, %30 : vector<16x256xf32>
    %32 = arith.truncf %31 : vector<16x256xf32> to vector<16x256xbf16>
    %c80 = arith.constant 80 : index
    %c0_14 = arith.constant 0 : index
    %33 = vector.load %arg20[%c80, %c0_14] : memref<288x256xbf16, #tpu.memory_space<vmem>>, vector<16x256xbf16>
    tpu.vector_store %arg20[%c80, %c0_14], %32 {strides = array<i32>} : memref<288x256xbf16, #tpu.memory_space<vmem>>, vector<16x256xbf16>,
    %c241_i32 = arith.constant 241 : i32
    %34 = tpu.dynamic_rotate %1 by %c241_i32 dim 1 : vector<16x256xf32>, i32 -> vector<16x256xf32>
    %c6 = arith.constant 6 : index
    %c0_15 = arith.constant 0 : index
    %35 = vector.load %arg2[%c6, %c0_15] : memref<36x256xf32, #tpu.memory_space<vmem>>, vector<1x256xf32>
    %36 = vector.broadcast %35 : vector<1x256xf32> to vector<16x256xf32>
    %37 = arith.mulf %34, %36 : vector<16x256xf32>
    %38 = arith.truncf %37 : vector<16x256xf32> to vector<16x256xbf16>
    %c96 = arith.constant 96 : index
    %c0_16 = arith.constant 0 : index
    %39 = vector.load %arg20[%c96, %c0_16] : memref<288x256xbf16, #tpu.memory_space<vmem>>, vector<16x256xbf16>
    tpu.vector_store %arg20[%c96, %c0_16], %38 {strides = array<i32>} : memref<288x256xbf16, #tpu.memory_space<vmem>>, vector<16x256xbf16>,
    %c240_i32 = arith.constant 240 : i32
    %40 = tpu.dynamic_rotate %1 by %c240_i32 dim 1 : vector<16x256xf32>, i32 -> vector<16x256xf32>
    %c7 = arith.constant 7 : index
    %c0_17 = arith.constant 0 : index
    %41 = vector.load %arg2[%c7, %c0_17] : memref<36x256xf32, #tpu.memory_space<vmem>>, vector<1x256xf32>
    %42 = vector.broadcast %41 : vector<1x256xf32> to vector<16x256xf32>
    %43 = arith.mulf %40, %42 : vector<16x256xf32>
    %44 = arith.truncf %43 : vector<16x256xf32> to vector<16x256xbf16>
    %c112 = arith.constant 112 : index
    %c0_18 = arith.constant 0 : index
    %45 = vector.load %arg20[%c112, %c0_18] : memref<288x256xbf16, #tpu.memory_space<vmem>>, vector<16x256xbf16>
    tpu.vector_store %arg20[%c112, %c0_18], %44 {strides = array<i32>} : memref<288x256xbf16, #tpu.memory_space<vmem>>, vector<16x256xbf16>,
    %c239_i32 = arith.constant 239 : i32
    %46 = tpu.dynamic_rotate %1 by %c239_i32 dim 1 : vector<16x256xf32>, i32 -> vector<16x256xf32>
    %c8 = arith.constant 8 : index
    %c0_19 = arith.constant 0 : index
    %47 = vector.load %arg2[%c8, %c0_19] : memref<36x256xf32, #tpu.memory_space<vmem>>, vector<1x256xf32>
    %48 = vector.broadcast %47 : vector<1x256xf32> to vector<16x256xf32>
    %49 = arith.mulf %46, %48 : vector<16x256xf32>
    %50 = arith.truncf %49 : vector<16x256xf32> to vector<16x256xbf16>
    %c128 = arith.constant 128 : index
    %c0_20 = arith.constant 0 : index
    %51 = vector.load %arg20[%c128, %c0_20] : memref<288x256xbf16, #tpu.memory_space<vmem>>, vector<16x256xbf16>
    tpu.vector_store %arg20[%c128, %c0_20], %50 {strides = array<i32>} : memref<288x256xbf16, #tpu.memory_space<vmem>>, vector<16x256xbf16>,
    %c0_21 = arith.constant 0 : index
    %c0_22 = arith.constant 0 : index
    %52 = vector.load %arg3[%c0_21, %c0_22] : memref<16x144xbf16, #tpu.memory_space<vmem>>, vector<16x144xbf16>
    %c0_23 = arith.constant 0 : index
    %c0_24 = arith.constant 0 : index
    %53 = vector.load %arg20[%c0_23, %c0_24] : memref<288x256xbf16, #tpu.memory_space<vmem>>, vector<144x256xbf16>
    %cst = arith.constant dense<0.000000e+00> : vector<16x256xf32>
    %54 = tpu.matmul %52, %53, %cst {dimension_numbers = #tpu.dot_dimension_numbers<[1], [0], [0], [1], [0, 0, 1, 1], [], []>} : vector<16x144xbf16>, vector<144x256xbf16>, vector<16x256xf32> -> vector<16x256xf32>
    %c0_25 = arith.constant 0 : index
    %c0_26 = arith.constant 0 : index
    %55 = vector.load %arg4[%c0_25, %c0_26] : memref<16x1xf32, #tpu.memory_space<vmem>>, vector<16x1xf32>
    %56 = vector.broadcast %55 : vector<16x1xf32> to vector<16x256xf32>
    %57 = arith.addf %54, %56 : vector<16x256xf32>
    %cst_27 = arith.constant 0.000000e+00 : f32
    %58 = vector.broadcast %cst_27 : f32 to vector<16x256xf32>
    %59 = arith.maximumf %57, %58 : vector<16x256xf32>
    %c17_i32_28 = arith.constant 17 : i32
    %60 = tpu.dynamic_rotate %59 by %c17_i32_28 dim 1 : vector<16x256xf32>, i32 -> vector<16x256xf32>
    %c0_29 = arith.constant 0 : index
    %c0_30 = arith.constant 0 : index
    %61 = vector.load %arg2[%c0_29, %c0_30] : memref<36x256xf32, #tpu.memory_space<vmem>>, vector<1x256xf32>
    %62 = vector.broadcast %61 : vector<1x256xf32> to vector<16x256xf32>
    %63 = arith.mulf %60, %62 : vector<16x256xf32>
    %64 = arith.truncf %63 : vector<16x256xf32> to vector<16x256xbf16>
    %c0_31 = arith.constant 0 : index
    %c0_32 = arith.constant 0 : index
    %65 = vector.load %arg20[%c0_31, %c0_32] : memref<288x256xbf16, #tpu.memory_space<vmem>>, vector<16x256xbf16>
    tpu.vector_store %arg20[%c0_31, %c0_32], %64 {strides = array<i32>} : memref<288x256xbf16, #tpu.memory_space<vmem>>, vector<16x256xbf16>,
    %c16_i32_33 = arith.constant 16 : i32
    %66 = tpu.dynamic_rotate %59 by %c16_i32_33 dim 1 : vector<16x256xf32>, i32 -> vector<16x256xf32>
    %c1_34 = arith.constant 1 : index
    %c0_35 = arith.constant 0 : index
    %67 = vector.load %arg2[%c1_34, %c0_35] : memref<36x256xf32, #tpu.memory_space<vmem>>, vector<1x256xf32>
    %68 = vector.broadcast %67 : vector<1x256xf32> to vector<16x256xf32>
    %69 = arith.mulf %66, %68 : vector<16x256xf32>
    %70 = arith.truncf %69 : vector<16x256xf32> to vector<16x256xbf16>
    %c16_36 = arith.constant 16 : index
    %c0_37 = arith.constant 0 : index
    %71 = vector.load %arg20[%c16_36, %c0_37] : memref<288x256xbf16, #tpu.memory_space<vmem>>, vector<16x256xbf16>
    tpu.vector_store %arg20[%c16_36, %c0_37], %70 {strides = array<i32>} : memref<288x256xbf16, #tpu.memory_space<vmem>>, vector<16x256xbf16>,
    %c15_i32_38 = arith.constant 15 : i32
    %72 = tpu.dynamic_rotate %59 by %c15_i32_38 dim 1 : vector<16x256xf32>, i32 -> vector<16x256xf32>
    %c2_39 = arith.constant 2 : index
    %c0_40 = arith.constant 0 : index
    %73 = vector.load %arg2[%c2_39, %c0_40] : memref<36x256xf32, #tpu.memory_space<vmem>>, vector<1x256xf32>
    %74 = vector.broadcast %73 : vector<1x256xf32> to vector<16x256xf32>
    %75 = arith.mulf %72, %74 : vector<16x256xf32>
    %76 = arith.truncf %75 : vector<16x256xf32> to vector<16x256xbf16>
    %c32_41 = arith.constant 32 : index
    %c0_42 = arith.constant 0 : index
    %77 = vector.load %arg20[%c32_41, %c0_42] : memref<288x256xbf16, #tpu.memory_space<vmem>>, vector<16x256xbf16>
    tpu.vector_store %arg20[%c32_41, %c0_42], %76 {strides = array<i32>} : memref<288x256xbf16, #tpu.memory_space<vmem>>, vector<16x256xbf16>,
    %c1_i32_43 = arith.constant 1 : i32
    %78 = tpu.dynamic_rotate %59 by %c1_i32_43 dim 1 : vector<16x256xf32>, i32 -> vector<16x256xf32>
    %c3_44 = arith.constant 3 : index
    %c0_45 = arith.constant 0 : index
    %79 = vector.load %arg2[%c3_44, %c0_45] : memref<36x256xf32, #tpu.memory_space<vmem>>, vector<1x256xf32>
    %80 = vector.broadcast %79 : vector<1x256xf32> to vector<16x256xf32>
    %81 = arith.mulf %78, %80 : vector<16x256xf32>
    %82 = arith.truncf %81 : vector<16x256xf32> to vector<16x256xbf16>
    %c48_46 = arith.constant 48 : index
    %c0_47 = arith.constant 0 : index
    %83 = vector.load %arg20[%c48_46, %c0_47] : memref<288x256xbf16, #tpu.memory_space<vmem>>, vector<16x256xbf16>
    tpu.vector_store %arg20[%c48_46, %c0_47], %82 {strides = array<i32>} : memref<288x256xbf16, #tpu.memory_space<vmem>>, vector<16x256xbf16>,
    %84 = arith.truncf %59 : vector<16x256xf32> to vector<16x256xbf16>
    %c64_48 = arith.constant 64 : index
    %c0_49 = arith.constant 0 : index
    %85 = vector.load %arg20[%c64_48, %c0_49] : memref<288x256xbf16, #tpu.memory_space<vmem>>, vector<16x256xbf16>
    tpu.vector_store %arg20[%c64_48, %c0_49], %84 {strides = array<i32>} : memref<288x256xbf16, #tpu.memory_space<vmem>>, vector<16x256xbf16>,
    %c255_i32_50 = arith.constant 255 : i32
    %86 = tpu.dynamic_rotate %59 by %c255_i32_50 dim 1 : vector<16x256xf32>, i32 -> vector<16x256xf32>
    %c5_51 = arith.constant 5 : index
    %c0_52 = arith.constant 0 : index
    %87 = vector.load %arg2[%c5_51, %c0_52] : memref<36x256xf32, #tpu.memory_space<vmem>>, vector<1x256xf32>
    %88 = vector.broadcast %87 : vector<1x256xf32> to vector<16x256xf32>
    %89 = arith.mulf %86, %88 : vector<16x256xf32>
    %90 = arith.truncf %89 : vector<16x256xf32> to vector<16x256xbf16>
    %c80_53 = arith.constant 80 : index
    %c0_54 = arith.constant 0 : index
    %91 = vector.load %arg20[%c80_53, %c0_54] : memref<288x256xbf16, #tpu.memory_space<vmem>>, vector<16x256xbf16>
    tpu.vector_store %arg20[%c80_53, %c0_54], %90 {strides = array<i32>} : memref<288x256xbf16, #tpu.memory_space<vmem>>, vector<16x256xbf16>,
    %c241_i32_55 = arith.constant 241 : i32
    %92 = tpu.dynamic_rotate %59 by %c241_i32_55 dim 1 : vector<16x256xf32>, i32 -> vector<16x256xf32>
    %c6_56 = arith.constant 6 : index
    %c0_57 = arith.constant 0 : index
    %93 = vector.load %arg2[%c6_56, %c0_57] : memref<36x256xf32, #tpu.memory_space<vmem>>, vector<1x256xf32>
    %94 = vector.broadcast %93 : vector<1x256xf32> to vector<16x256xf32>
    %95 = arith.mulf %92, %94 : vector<16x256xf32>
    %96 = arith.truncf %95 : vector<16x256xf32> to vector<16x256xbf16>
    %c96_58 = arith.constant 96 : index
    %c0_59 = arith.constant 0 : index
    %97 = vector.load %arg20[%c96_58, %c0_59] : memref<288x256xbf16, #tpu.memory_space<vmem>>, vector<16x256xbf16>
    tpu.vector_store %arg20[%c96_58, %c0_59], %96 {strides = array<i32>} : memref<288x256xbf16, #tpu.memory_space<vmem>>, vector<16x256xbf16>,
    %c240_i32_60 = arith.constant 240 : i32
    %98 = tpu.dynamic_rotate %59 by %c240_i32_60 dim 1 : vector<16x256xf32>, i32 -> vector<16x256xf32>
    %c7_61 = arith.constant 7 : index
    %c0_62 = arith.constant 0 : index
    %99 = vector.load %arg2[%c7_61, %c0_62] : memref<36x256xf32, #tpu.memory_space<vmem>>, vector<1x256xf32>
    %100 = vector.broadcast %99 : vector<1x256xf32> to vector<16x256xf32>
    %101 = arith.mulf %98, %100 : vector<16x256xf32>
    %102 = arith.truncf %101 : vector<16x256xf32> to vector<16x256xbf16>
    %c112_63 = arith.constant 112 : index
    %c0_64 = arith.constant 0 : index
    %103 = vector.load %arg20[%c112_63, %c0_64] : memref<288x256xbf16, #tpu.memory_space<vmem>>, vector<16x256xbf16>
    tpu.vector_store %arg20[%c112_63, %c0_64], %102 {strides = array<i32>} : memref<288x256xbf16, #tpu.memory_space<vmem>>, vector<16x256xbf16>,
    %c239_i32_65 = arith.constant 239 : i32
    %104 = tpu.dynamic_rotate %59 by %c239_i32_65 dim 1 : vector<16x256xf32>, i32 -> vector<16x256xf32>
    %c8_66 = arith.constant 8 : index
    %c0_67 = arith.constant 0 : index
    %105 = vector.load %arg2[%c8_66, %c0_67] : memref<36x256xf32, #tpu.memory_space<vmem>>, vector<1x256xf32>
    %106 = vector.broadcast %105 : vector<1x256xf32> to vector<16x256xf32>
    %107 = arith.mulf %104, %106 : vector<16x256xf32>
    %108 = arith.truncf %107 : vector<16x256xf32> to vector<16x256xbf16>
    %c128_68 = arith.constant 128 : index
    %c0_69 = arith.constant 0 : index
    %109 = vector.load %arg20[%c128_68, %c0_69] : memref<288x256xbf16, #tpu.memory_space<vmem>>, vector<16x256xbf16>
    tpu.vector_store %arg20[%c128_68, %c0_69], %108 {strides = array<i32>} : memref<288x256xbf16, #tpu.memory_space<vmem>>, vector<16x256xbf16>,
    %c0_70 = arith.constant 0 : index
    %c0_71 = arith.constant 0 : index
    %110 = vector.load %arg5[%c0_70, %c0_71] : memref<16x144xbf16, #tpu.memory_space<vmem>>, vector<16x144xbf16>
    %c0_72 = arith.constant 0 : index
    %c0_73 = arith.constant 0 : index
    %111 = vector.load %arg20[%c0_72, %c0_73] : memref<288x256xbf16, #tpu.memory_space<vmem>>, vector<144x256xbf16>
    %cst_74 = arith.constant dense<0.000000e+00> : vector<16x256xf32>
    %112 = tpu.matmul %110, %111, %cst_74 {dimension_numbers = #tpu.dot_dimension_numbers<[1], [0], [0], [1], [0, 0, 1, 1], [], []>} : vector<16x144xbf16>, vector<144x256xbf16>, vector<16x256xf32> -> vector<16x256xf32>
    %c0_75 = arith.constant 0 : index
    %c0_76 = arith.constant 0 : index
    %113 = vector.load %arg6[%c0_75, %c0_76] : memref<16x1xf32, #tpu.memory_space<vmem>>, vector<16x1xf32>
    %114 = vector.broadcast %113 : vector<16x1xf32> to vector<16x256xf32>
    %115 = arith.addf %112, %114 : vector<16x256xf32>
    %cst_77 = arith.constant 0.000000e+00 : f32
    %116 = vector.broadcast %cst_77 : f32 to vector<16x256xf32>
    %117 = arith.maximumf %115, %116 : vector<16x256xf32>
    %c34_i32 = arith.constant 34 : i32
    %118 = tpu.dynamic_rotate %117 by %c34_i32 dim 1 : vector<16x256xf32>, i32 -> vector<16x256xf32>
    %c9 = arith.constant 9 : index
    %c0_78 = arith.constant 0 : index
    %119 = vector.load %arg2[%c9, %c0_78] : memref<36x256xf32, #tpu.memory_space<vmem>>, vector<1x256xf32>
    %120 = vector.broadcast %119 : vector<1x256xf32> to vector<16x256xf32>
    %121 = arith.mulf %118, %120 : vector<16x256xf32>
    %122 = arith.truncf %121 : vector<16x256xf32> to vector<16x256xbf16>
    %c0_79 = arith.constant 0 : index
    %c0_80 = arith.constant 0 : index
    %123 = vector.load %arg20[%c0_79, %c0_80] : memref<288x256xbf16, #tpu.memory_space<vmem>>, vector<16x256xbf16>
    tpu.vector_store %arg20[%c0_79, %c0_80], %122 {strides = array<i32>} : memref<288x256xbf16, #tpu.memory_space<vmem>>, vector<16x256xbf16>,
    %c32_i32 = arith.constant 32 : i32
    %124 = tpu.dynamic_rotate %117 by %c32_i32 dim 1 : vector<16x256xf32>, i32 -> vector<16x256xf32>
    %c10 = arith.constant 10 : index
    %c0_81 = arith.constant 0 : index
    %125 = vector.load %arg2[%c10, %c0_81] : memref<36x256xf32, #tpu.memory_space<vmem>>, vector<1x256xf32>
    %126 = vector.broadcast %125 : vector<1x256xf32> to vector<16x256xf32>
    %127 = arith.mulf %124, %126 : vector<16x256xf32>
    %128 = arith.truncf %127 : vector<16x256xf32> to vector<16x256xbf16>
    %c16_82 = arith.constant 16 : index
    %c0_83 = arith.constant 0 : index
    %129 = vector.load %arg20[%c16_82, %c0_83] : memref<288x256xbf16, #tpu.memory_space<vmem>>, vector<16x256xbf16>
    tpu.vector_store %arg20[%c16_82, %c0_83], %128 {strides = array<i32>} : memref<288x256xbf16, #tpu.memory_space<vmem>>, vector<16x256xbf16>,
    %c30_i32 = arith.constant 30 : i32
    %130 = tpu.dynamic_rotate %117 by %c30_i32 dim 1 : vector<16x256xf32>, i32 -> vector<16x256xf32>
    %c11 = arith.constant 11 : index
    %c0_84 = arith.constant 0 : index
    %131 = vector.load %arg2[%c11, %c0_84] : memref<36x256xf32, #tpu.memory_space<vmem>>, vector<1x256xf32>
    %132 = vector.broadcast %131 : vector<1x256xf32> to vector<16x256xf32>
    %133 = arith.mulf %130, %132 : vector<16x256xf32>
    %134 = arith.truncf %133 : vector<16x256xf32> to vector<16x256xbf16>
    %c32_85 = arith.constant 32 : index
    %c0_86 = arith.constant 0 : index
    %135 = vector.load %arg20[%c32_85, %c0_86] : memref<288x256xbf16, #tpu.memory_space<vmem>>, vector<16x256xbf16>
    tpu.vector_store %arg20[%c32_85, %c0_86], %134 {strides = array<i32>} : memref<288x256xbf16, #tpu.memory_space<vmem>>, vector<16x256xbf16>,
    %c2_i32 = arith.constant 2 : i32
    %136 = tpu.dynamic_rotate %117 by %c2_i32 dim 1 : vector<16x256xf32>, i32 -> vector<16x256xf32>
    %c12 = arith.constant 12 : index
    %c0_87 = arith.constant 0 : index
    %137 = vector.load %arg2[%c12, %c0_87] : memref<36x256xf32, #tpu.memory_space<vmem>>, vector<1x256xf32>
    %138 = vector.broadcast %137 : vector<1x256xf32> to vector<16x256xf32>
    %139 = arith.mulf %136, %138 : vector<16x256xf32>
    %140 = arith.truncf %139 : vector<16x256xf32> to vector<16x256xbf16>
    %c48_88 = arith.constant 48 : index
    %c0_89 = arith.constant 0 : index
    %141 = vector.load %arg20[%c48_88, %c0_89] : memref<288x256xbf16, #tpu.memory_space<vmem>>, vector<16x256xbf16>
    tpu.vector_store %arg20[%c48_88, %c0_89], %140 {strides = array<i32>} : memref<288x256xbf16, #tpu.memory_space<vmem>>, vector<16x256xbf16>,
    %142 = arith.truncf %117 : vector<16x256xf32> to vector<16x256xbf16>
    %c64_90 = arith.constant 64 : index
    %c0_91 = arith.constant 0 : index
    %143 = vector.load %arg20[%c64_90, %c0_91] : memref<288x256xbf16, #tpu.memory_space<vmem>>, vector<16x256xbf16>
    tpu.vector_store %arg20[%c64_90, %c0_91], %142 {strides = array<i32>} : memref<288x256xbf16, #tpu.memory_space<vmem>>, vector<16x256xbf16>,
    %c254_i32 = arith.constant 254 : i32
    %144 = tpu.dynamic_rotate %117 by %c254_i32 dim 1 : vector<16x256xf32>, i32 -> vector<16x256xf32>
    %c14 = arith.constant 14 : index
    %c0_92 = arith.constant 0 : index
    %145 = vector.load %arg2[%c14, %c0_92] : memref<36x256xf32, #tpu.memory_space<vmem>>, vector<1x256xf32>
    %146 = vector.broadcast %145 : vector<1x256xf32> to vector<16x256xf32>
    %147 = arith.mulf %144, %146 : vector<16x256xf32>
    %148 = arith.truncf %147 : vector<16x256xf32> to vector<16x256xbf16>
    %c80_93 = arith.constant 80 : index
    %c0_94 = arith.constant 0 : index
    %149 = vector.load %arg20[%c80_93, %c0_94] : memref<288x256xbf16, #tpu.memory_space<vmem>>, vector<16x256xbf16>
    tpu.vector_store %arg20[%c80_93, %c0_94], %148 {strides = array<i32>} : memref<288x256xbf16, #tpu.memory_space<vmem>>, vector<16x256xbf16>,
    %c226_i32 = arith.constant 226 : i32
    %150 = tpu.dynamic_rotate %117 by %c226_i32 dim 1 : vector<16x256xf32>, i32 -> vector<16x256xf32>
    %c15 = arith.constant 15 : index
    %c0_95 = arith.constant 0 : index
    %151 = vector.load %arg2[%c15, %c0_95] : memref<36x256xf32, #tpu.memory_space<vmem>>, vector<1x256xf32>
    %152 = vector.broadcast %151 : vector<1x256xf32> to vector<16x256xf32>
    %153 = arith.mulf %150, %152 : vector<16x256xf32>
    %154 = arith.truncf %153 : vector<16x256xf32> to vector<16x256xbf16>
    %c96_96 = arith.constant 96 : index
    %c0_97 = arith.constant 0 : index
    %155 = vector.load %arg20[%c96_96, %c0_97] : memref<288x256xbf16, #tpu.memory_space<vmem>>, vector<16x256xbf16>
    tpu.vector_store %arg20[%c96_96, %c0_97], %154 {strides = array<i32>} : memref<288x256xbf16, #tpu.memory_space<vmem>>, vector<16x256xbf16>,
    %c224_i32 = arith.constant 224 : i32
    %156 = tpu.dynamic_rotate %117 by %c224_i32 dim 1 : vector<16x256xf32>, i32 -> vector<16x256xf32>
    %c16_98 = arith.constant 16 : index
    %c0_99 = arith.constant 0 : index
    %157 = vector.load %arg2[%c16_98, %c0_99] : memref<36x256xf32, #tpu.memory_space<vmem>>, vector<1x256xf32>
    %158 = vector.broadcast %157 : vector<1x256xf32> to vector<16x256xf32>
    %159 = arith.mulf %156, %158 : vector<16x256xf32>
    %160 = arith.truncf %159 : vector<16x256xf32> to vector<16x256xbf16>
    %c112_100 = arith.constant 112 : index
    %c0_101 = arith.constant 0 : index
    %161 = vector.load %arg20[%c112_100, %c0_101] : memref<288x256xbf16, #tpu.memory_space<vmem>>, vector<16x256xbf16>
    tpu.vector_store %arg20[%c112_100, %c0_101], %160 {strides = array<i32>} : memref<288x256xbf16, #tpu.memory_space<vmem>>, vector<16x256xbf16>,
    %c222_i32 = arith.constant 222 : i32
    %162 = tpu.dynamic_rotate %117 by %c222_i32 dim 1 : vector<16x256xf32>, i32 -> vector<16x256xf32>
    %c17 = arith.constant 17 : index
    %c0_102 = arith.constant 0 : index
    %163 = vector.load %arg2[%c17, %c0_102] : memref<36x256xf32, #tpu.memory_space<vmem>>, vector<1x256xf32>
    %164 = vector.broadcast %163 : vector<1x256xf32> to vector<16x256xf32>
    %165 = arith.mulf %162, %164 : vector<16x256xf32>
    %166 = arith.truncf %165 : vector<16x256xf32> to vector<16x256xbf16>
    %c128_103 = arith.constant 128 : index
    %c0_104 = arith.constant 0 : index
    %167 = vector.load %arg20[%c128_103, %c0_104] : memref<288x256xbf16, #tpu.memory_space<vmem>>, vector<16x256xbf16>
    tpu.vector_store %arg20[%c128_103, %c0_104], %166 {strides = array<i32>} : memref<288x256xbf16, #tpu.memory_space<vmem>>, vector<16x256xbf16>,
    %c0_105 = arith.constant 0 : index
    %c0_106 = arith.constant 0 : index
    %168 = vector.load %arg7[%c0_105, %c0_106] : memref<16x144xbf16, #tpu.memory_space<vmem>>, vector<16x144xbf16>
    %c0_107 = arith.constant 0 : index
    %c0_108 = arith.constant 0 : index
    %169 = vector.load %arg20[%c0_107, %c0_108] : memref<288x256xbf16, #tpu.memory_space<vmem>>, vector<144x256xbf16>
    %cst_109 = arith.constant dense<0.000000e+00> : vector<16x256xf32>
    %170 = tpu.matmul %168, %169, %cst_109 {dimension_numbers = #tpu.dot_dimension_numbers<[1], [0], [0], [1], [0, 0, 1, 1], [], []>} : vector<16x144xbf16>, vector<144x256xbf16>, vector<16x256xf32> -> vector<16x256xf32>
    %c0_110 = arith.constant 0 : index
    %c0_111 = arith.constant 0 : index
    %171 = vector.load %arg8[%c0_110, %c0_111] : memref<16x1xf32, #tpu.memory_space<vmem>>, vector<16x1xf32>
    %172 = vector.broadcast %171 : vector<16x1xf32> to vector<16x256xf32>
    %173 = arith.addf %170, %172 : vector<16x256xf32>
    %cst_112 = arith.constant 0.000000e+00 : f32
    %174 = vector.broadcast %cst_112 : f32 to vector<16x256xf32>
    %175 = arith.maximumf %173, %174 : vector<16x256xf32>
    %c68_i32 = arith.constant 68 : i32
    %176 = tpu.dynamic_rotate %175 by %c68_i32 dim 1 : vector<16x256xf32>, i32 -> vector<16x256xf32>
    %c18 = arith.constant 18 : index
    %c0_113 = arith.constant 0 : index
    %177 = vector.load %arg2[%c18, %c0_113] : memref<36x256xf32, #tpu.memory_space<vmem>>, vector<1x256xf32>
    %178 = vector.broadcast %177 : vector<1x256xf32> to vector<16x256xf32>
    %179 = arith.mulf %176, %178 : vector<16x256xf32>
    %180 = arith.truncf %179 : vector<16x256xf32> to vector<16x256xbf16>
    %c0_114 = arith.constant 0 : index
    %c0_115 = arith.constant 0 : index
    %181 = vector.load %arg20[%c0_114, %c0_115] : memref<288x256xbf16, #tpu.memory_space<vmem>>, vector<16x256xbf16>
    tpu.vector_store %arg20[%c0_114, %c0_115], %180 {strides = array<i32>} : memref<288x256xbf16, #tpu.memory_space<vmem>>, vector<16x256xbf16>,
    %c64_i32 = arith.constant 64 : i32
    %182 = tpu.dynamic_rotate %175 by %c64_i32 dim 1 : vector<16x256xf32>, i32 -> vector<16x256xf32>
    %c19 = arith.constant 19 : index
    %c0_116 = arith.constant 0 : index
    %183 = vector.load %arg2[%c19, %c0_116] : memref<36x256xf32, #tpu.memory_space<vmem>>, vector<1x256xf32>
    %184 = vector.broadcast %183 : vector<1x256xf32> to vector<16x256xf32>
    %185 = arith.mulf %182, %184 : vector<16x256xf32>
    %186 = arith.truncf %185 : vector<16x256xf32> to vector<16x256xbf16>
    %c16_117 = arith.constant 16 : index
    %c0_118 = arith.constant 0 : index
    %187 = vector.load %arg20[%c16_117, %c0_118] : memref<288x256xbf16, #tpu.memory_space<vmem>>, vector<16x256xbf16>
    tpu.vector_store %arg20[%c16_117, %c0_118], %186 {strides = array<i32>} : memref<288x256xbf16, #tpu.memory_space<vmem>>, vector<16x256xbf16>,
    %c60_i32 = arith.constant 60 : i32
    %188 = tpu.dynamic_rotate %175 by %c60_i32 dim 1 : vector<16x256xf32>, i32 -> vector<16x256xf32>
    %c20 = arith.constant 20 : index
    %c0_119 = arith.constant 0 : index
    %189 = vector.load %arg2[%c20, %c0_119] : memref<36x256xf32, #tpu.memory_space<vmem>>, vector<1x256xf32>
    %190 = vector.broadcast %189 : vector<1x256xf32> to vector<16x256xf32>
    %191 = arith.mulf %188, %190 : vector<16x256xf32>
    %192 = arith.truncf %191 : vector<16x256xf32> to vector<16x256xbf16>
    %c32_120 = arith.constant 32 : index
    %c0_121 = arith.constant 0 : index
    %193 = vector.load %arg20[%c32_120, %c0_121] : memref<288x256xbf16, #tpu.memory_space<vmem>>, vector<16x256xbf16>
    tpu.vector_store %arg20[%c32_120, %c0_121], %192 {strides = array<i32>} : memref<288x256xbf16, #tpu.memory_space<vmem>>, vector<16x256xbf16>,
    %c4_i32 = arith.constant 4 : i32
    %194 = tpu.dynamic_rotate %175 by %c4_i32 dim 1 : vector<16x256xf32>, i32 -> vector<16x256xf32>
    %c21 = arith.constant 21 : index
    %c0_122 = arith.constant 0 : index
    %195 = vector.load %arg2[%c21, %c0_122] : memref<36x256xf32, #tpu.memory_space<vmem>>, vector<1x256xf32>
    %196 = vector.broadcast %195 : vector<1x256xf32> to vector<16x256xf32>
    %197 = arith.mulf %194, %196 : vector<16x256xf32>
    %198 = arith.truncf %197 : vector<16x256xf32> to vector<16x256xbf16>
    %c48_123 = arith.constant 48 : index
    %c0_124 = arith.constant 0 : index
    %199 = vector.load %arg20[%c48_123, %c0_124] : memref<288x256xbf16, #tpu.memory_space<vmem>>, vector<16x256xbf16>
    tpu.vector_store %arg20[%c48_123, %c0_124], %198 {strides = array<i32>} : memref<288x256xbf16, #tpu.memory_space<vmem>>, vector<16x256xbf16>,
    %200 = arith.truncf %175 : vector<16x256xf32> to vector<16x256xbf16>
    %c64_125 = arith.constant 64 : index
    %c0_126 = arith.constant 0 : index
    %201 = vector.load %arg20[%c64_125, %c0_126] : memref<288x256xbf16, #tpu.memory_space<vmem>>, vector<16x256xbf16>
    tpu.vector_store %arg20[%c64_125, %c0_126], %200 {strides = array<i32>} : memref<288x256xbf16, #tpu.memory_space<vmem>>, vector<16x256xbf16>,
    %c252_i32 = arith.constant 252 : i32
    %202 = tpu.dynamic_rotate %175 by %c252_i32 dim 1 : vector<16x256xf32>, i32 -> vector<16x256xf32>
    %c23 = arith.constant 23 : index
    %c0_127 = arith.constant 0 : index
    %203 = vector.load %arg2[%c23, %c0_127] : memref<36x256xf32, #tpu.memory_space<vmem>>, vector<1x256xf32>
    %204 = vector.broadcast %203 : vector<1x256xf32> to vector<16x256xf32>
    %205 = arith.mulf %202, %204 : vector<16x256xf32>
    %206 = arith.truncf %205 : vector<16x256xf32> to vector<16x256xbf16>
    %c80_128 = arith.constant 80 : index
    %c0_129 = arith.constant 0 : index
    %207 = vector.load %arg20[%c80_128, %c0_129] : memref<288x256xbf16, #tpu.memory_space<vmem>>, vector<16x256xbf16>
    tpu.vector_store %arg20[%c80_128, %c0_129], %206 {strides = array<i32>} : memref<288x256xbf16, #tpu.memory_space<vmem>>, vector<16x256xbf16>,
    %c196_i32 = arith.constant 196 : i32
    %208 = tpu.dynamic_rotate %175 by %c196_i32 dim 1 : vector<16x256xf32>, i32 -> vector<16x256xf32>
    %c24 = arith.constant 24 : index
    %c0_130 = arith.constant 0 : index
    %209 = vector.load %arg2[%c24, %c0_130] : memref<36x256xf32, #tpu.memory_space<vmem>>, vector<1x256xf32>
    %210 = vector.broadcast %209 : vector<1x256xf32> to vector<16x256xf32>
    %211 = arith.mulf %208, %210 : vector<16x256xf32>
    %212 = arith.truncf %211 : vector<16x256xf32> to vector<16x256xbf16>
    %c96_131 = arith.constant 96 : index
    %c0_132 = arith.constant 0 : index
    %213 = vector.load %arg20[%c96_131, %c0_132] : memref<288x256xbf16, #tpu.memory_space<vmem>>, vector<16x256xbf16>
    tpu.vector_store %arg20[%c96_131, %c0_132], %212 {strides = array<i32>} : memref<288x256xbf16, #tpu.memory_space<vmem>>, vector<16x256xbf16>,
    %c192_i32 = arith.constant 192 : i32
    %214 = tpu.dynamic_rotate %175 by %c192_i32 dim 1 : vector<16x256xf32>, i32 -> vector<16x256xf32>
    %c25 = arith.constant 25 : index
    %c0_133 = arith.constant 0 : index
    %215 = vector.load %arg2[%c25, %c0_133] : memref<36x256xf32, #tpu.memory_space<vmem>>, vector<1x256xf32>
    %216 = vector.broadcast %215 : vector<1x256xf32> to vector<16x256xf32>
    %217 = arith.mulf %214, %216 : vector<16x256xf32>
    %218 = arith.truncf %217 : vector<16x256xf32> to vector<16x256xbf16>
    %c112_134 = arith.constant 112 : index
    %c0_135 = arith.constant 0 : index
    %219 = vector.load %arg20[%c112_134, %c0_135] : memref<288x256xbf16, #tpu.memory_space<vmem>>, vector<16x256xbf16>
    tpu.vector_store %arg20[%c112_134, %c0_135], %218 {strides = array<i32>} : memref<288x256xbf16, #tpu.memory_space<vmem>>, vector<16x256xbf16>,
    %c188_i32 = arith.constant 188 : i32
    %220 = tpu.dynamic_rotate %175 by %c188_i32 dim 1 : vector<16x256xf32>, i32 -> vector<16x256xf32>
    %c26 = arith.constant 26 : index
    %c0_136 = arith.constant 0 : index
    %221 = vector.load %arg2[%c26, %c0_136] : memref<36x256xf32, #tpu.memory_space<vmem>>, vector<1x256xf32>
    %222 = vector.broadcast %221 : vector<1x256xf32> to vector<16x256xf32>
    %223 = arith.mulf %220, %222 : vector<16x256xf32>
    %224 = arith.truncf %223 : vector<16x256xf32> to vector<16x256xbf16>
    %c128_137 = arith.constant 128 : index
    %c0_138 = arith.constant 0 : index
    %225 = vector.load %arg20[%c128_137, %c0_138] : memref<288x256xbf16, #tpu.memory_space<vmem>>, vector<16x256xbf16>
    tpu.vector_store %arg20[%c128_137, %c0_138], %224 {strides = array<i32>} : memref<288x256xbf16, #tpu.memory_space<vmem>>, vector<16x256xbf16>,
    %c0_139 = arith.constant 0 : index
    %c0_140 = arith.constant 0 : index
    %226 = vector.load %arg9[%c0_139, %c0_140] : memref<16x144xbf16, #tpu.memory_space<vmem>>, vector<16x144xbf16>
    %c0_141 = arith.constant 0 : index
    %c0_142 = arith.constant 0 : index
    %227 = vector.load %arg20[%c0_141, %c0_142] : memref<288x256xbf16, #tpu.memory_space<vmem>>, vector<144x256xbf16>
    %cst_143 = arith.constant dense<0.000000e+00> : vector<16x256xf32>
    %228 = tpu.matmul %226, %227, %cst_143 {dimension_numbers = #tpu.dot_dimension_numbers<[1], [0], [0], [1], [0, 0, 1, 1], [], []>} : vector<16x144xbf16>, vector<144x256xbf16>, vector<16x256xf32> -> vector<16x256xf32>
    %c0_144 = arith.constant 0 : index
    %c0_145 = arith.constant 0 : index
    %229 = vector.load %arg10[%c0_144, %c0_145] : memref<16x1xf32, #tpu.memory_space<vmem>>, vector<16x1xf32>
    %230 = vector.broadcast %229 : vector<16x1xf32> to vector<16x256xf32>
    %231 = arith.addf %228, %230 : vector<16x256xf32>
    %cst_146 = arith.constant 0.000000e+00 : f32
    %232 = vector.broadcast %cst_146 : f32 to vector<16x256xf32>
    %233 = arith.maximumf %231, %232 : vector<16x256xf32>
    %c136_i32 = arith.constant 136 : i32
    %234 = tpu.dynamic_rotate %233 by %c136_i32 dim 1 : vector<16x256xf32>, i32 -> vector<16x256xf32>
    %c27 = arith.constant 27 : index
    %c0_147 = arith.constant 0 : index
    %235 = vector.load %arg2[%c27, %c0_147] : memref<36x256xf32, #tpu.memory_space<vmem>>, vector<1x256xf32>
    %236 = vector.broadcast %235 : vector<1x256xf32> to vector<16x256xf32>
    %237 = arith.mulf %234, %236 : vector<16x256xf32>
    %238 = arith.truncf %237 : vector<16x256xf32> to vector<16x256xbf16>
    %c0_148 = arith.constant 0 : index
    %c0_149 = arith.constant 0 : index
    %239 = vector.load %arg20[%c0_148, %c0_149] : memref<288x256xbf16, #tpu.memory_space<vmem>>, vector<16x256xbf16>
    tpu.vector_store %arg20[%c0_148, %c0_149], %238 {strides = array<i32>} : memref<288x256xbf16, #tpu.memory_space<vmem>>, vector<16x256xbf16>,
    %c128_i32 = arith.constant 128 : i32
    %240 = tpu.dynamic_rotate %233 by %c128_i32 dim 1 : vector<16x256xf32>, i32 -> vector<16x256xf32>
    %c28 = arith.constant 28 : index
    %c0_150 = arith.constant 0 : index
    %241 = vector.load %arg2[%c28, %c0_150] : memref<36x256xf32, #tpu.memory_space<vmem>>, vector<1x256xf32>
    %242 = vector.broadcast %241 : vector<1x256xf32> to vector<16x256xf32>
    %243 = arith.mulf %240, %242 : vector<16x256xf32>
    %244 = arith.truncf %243 : vector<16x256xf32> to vector<16x256xbf16>
    %c16_151 = arith.constant 16 : index
    %c0_152 = arith.constant 0 : index
    %245 = vector.load %arg20[%c16_151, %c0_152] : memref<288x256xbf16, #tpu.memory_space<vmem>>, vector<16x256xbf16>
    tpu.vector_store %arg20[%c16_151, %c0_152], %244 {strides = array<i32>} : memref<288x256xbf16, #tpu.memory_space<vmem>>, vector<16x256xbf16>,
    %c120_i32 = arith.constant 120 : i32
    %246 = tpu.dynamic_rotate %233 by %c120_i32 dim 1 : vector<16x256xf32>, i32 -> vector<16x256xf32>
    %c29 = arith.constant 29 : index
    %c0_153 = arith.constant 0 : index
    %247 = vector.load %arg2[%c29, %c0_153] : memref<36x256xf32, #tpu.memory_space<vmem>>, vector<1x256xf32>
    %248 = vector.broadcast %247 : vector<1x256xf32> to vector<16x256xf32>
    %249 = arith.mulf %246, %248 : vector<16x256xf32>
    %250 = arith.truncf %249 : vector<16x256xf32> to vector<16x256xbf16>
    %c32_154 = arith.constant 32 : index
    %c0_155 = arith.constant 0 : index
    %251 = vector.load %arg20[%c32_154, %c0_155] : memref<288x256xbf16, #tpu.memory_space<vmem>>, vector<16x256xbf16>
    tpu.vector_store %arg20[%c32_154, %c0_155], %250 {strides = array<i32>} : memref<288x256xbf16, #tpu.memory_space<vmem>>, vector<16x256xbf16>,
    %c8_i32 = arith.constant 8 : i32
    %252 = tpu.dynamic_rotate %233 by %c8_i32 dim 1 : vector<16x256xf32>, i32 -> vector<16x256xf32>
    %c30 = arith.constant 30 : index
    %c0_156 = arith.constant 0 : index
    %253 = vector.load %arg2[%c30, %c0_156] : memref<36x256xf32, #tpu.memory_space<vmem>>, vector<1x256xf32>
    %254 = vector.broadcast %253 : vector<1x256xf32> to vector<16x256xf32>
    %255 = arith.mulf %252, %254 : vector<16x256xf32>
    %256 = arith.truncf %255 : vector<16x256xf32> to vector<16x256xbf16>
    %c48_157 = arith.constant 48 : index
    %c0_158 = arith.constant 0 : index
    %257 = vector.load %arg20[%c48_157, %c0_158] : memref<288x256xbf16, #tpu.memory_space<vmem>>, vector<16x256xbf16>
    tpu.vector_store %arg20[%c48_157, %c0_158], %256 {strides = array<i32>} : memref<288x256xbf16, #tpu.memory_space<vmem>>, vector<16x256xbf16>,
    %258 = arith.truncf %233 : vector<16x256xf32> to vector<16x256xbf16>
    %c64_159 = arith.constant 64 : index
    %c0_160 = arith.constant 0 : index
    %259 = vector.load %arg20[%c64_159, %c0_160] : memref<288x256xbf16, #tpu.memory_space<vmem>>, vector<16x256xbf16>
    tpu.vector_store %arg20[%c64_159, %c0_160], %258 {strides = array<i32>} : memref<288x256xbf16, #tpu.memory_space<vmem>>, vector<16x256xbf16>,
    %c248_i32 = arith.constant 248 : i32
    %260 = tpu.dynamic_rotate %233 by %c248_i32 dim 1 : vector<16x256xf32>, i32 -> vector<16x256xf32>
    %c32_161 = arith.constant 32 : index
    %c0_162 = arith.constant 0 : index
    %261 = vector.load %arg2[%c32_161, %c0_162] : memref<36x256xf32, #tpu.memory_space<vmem>>, vector<1x256xf32>
    %262 = vector.broadcast %261 : vector<1x256xf32> to vector<16x256xf32>
    %263 = arith.mulf %260, %262 : vector<16x256xf32>
    %264 = arith.truncf %263 : vector<16x256xf32> to vector<16x256xbf16>
    %c80_163 = arith.constant 80 : index
    %c0_164 = arith.constant 0 : index
    %265 = vector.load %arg20[%c80_163, %c0_164] : memref<288x256xbf16, #tpu.memory_space<vmem>>, vector<16x256xbf16>
    tpu.vector_store %arg20[%c80_163, %c0_164], %264 {strides = array<i32>} : memref<288x256xbf16, #tpu.memory_space<vmem>>, vector<16x256xbf16>,
    %c136_i32_165 = arith.constant 136 : i32
    %266 = tpu.dynamic_rotate %233 by %c136_i32_165 dim 1 : vector<16x256xf32>, i32 -> vector<16x256xf32>
    %c33 = arith.constant 33 : index
    %c0_166 = arith.constant 0 : index
    %267 = vector.load %arg2[%c33, %c0_166] : memref<36x256xf32, #tpu.memory_space<vmem>>, vector<1x256xf32>
    %268 = vector.broadcast %267 : vector<1x256xf32> to vector<16x256xf32>
    %269 = arith.mulf %266, %268 : vector<16x256xf32>
    %270 = arith.truncf %269 : vector<16x256xf32> to vector<16x256xbf16>
    %c96_167 = arith.constant 96 : index
    %c0_168 = arith.constant 0 : index
    %271 = vector.load %arg20[%c96_167, %c0_168] : memref<288x256xbf16, #tpu.memory_space<vmem>>, vector<16x256xbf16>
    tpu.vector_store %arg20[%c96_167, %c0_168], %270 {strides = array<i32>} : memref<288x256xbf16, #tpu.memory_space<vmem>>, vector<16x256xbf16>,
    %c128_i32_169 = arith.constant 128 : i32
    %272 = tpu.dynamic_rotate %233 by %c128_i32_169 dim 1 : vector<16x256xf32>, i32 -> vector<16x256xf32>
    %c34 = arith.constant 34 : index
    %c0_170 = arith.constant 0 : index
    %273 = vector.load %arg2[%c34, %c0_170] : memref<36x256xf32, #tpu.memory_space<vmem>>, vector<1x256xf32>
    %274 = vector.broadcast %273 : vector<1x256xf32> to vector<16x256xf32>
    %275 = arith.mulf %272, %274 : vector<16x256xf32>
    %276 = arith.truncf %275 : vector<16x256xf32> to vector<16x256xbf16>
    %c112_171 = arith.constant 112 : index
    %c0_172 = arith.constant 0 : index
    %277 = vector.load %arg20[%c112_171, %c0_172] : memref<288x256xbf16, #tpu.memory_space<vmem>>, vector<16x256xbf16>
    tpu.vector_store %arg20[%c112_171, %c0_172], %276 {strides = array<i32>} : memref<288x256xbf16, #tpu.memory_space<vmem>>, vector<16x256xbf16>,
    %c120_i32_173 = arith.constant 120 : i32
    %278 = tpu.dynamic_rotate %233 by %c120_i32_173 dim 1 : vector<16x256xf32>, i32 -> vector<16x256xf32>
    %c35 = arith.constant 35 : index
    %c0_174 = arith.constant 0 : index
    %279 = vector.load %arg2[%c35, %c0_174] : memref<36x256xf32, #tpu.memory_space<vmem>>, vector<1x256xf32>
    %280 = vector.broadcast %279 : vector<1x256xf32> to vector<16x256xf32>
    %281 = arith.mulf %278, %280 : vector<16x256xf32>
    %282 = arith.truncf %281 : vector<16x256xf32> to vector<16x256xbf16>
    %c128_175 = arith.constant 128 : index
    %c0_176 = arith.constant 0 : index
    %283 = vector.load %arg20[%c128_175, %c0_176] : memref<288x256xbf16, #tpu.memory_space<vmem>>, vector<16x256xbf16>
    tpu.vector_store %arg20[%c128_175, %c0_176], %282 {strides = array<i32>} : memref<288x256xbf16, #tpu.memory_space<vmem>>, vector<16x256xbf16>,
    %c0_177 = arith.constant 0 : index
    %c0_178 = arith.constant 0 : index
    %284 = vector.load %arg11[%c0_177, %c0_178] : memref<16x144xbf16, #tpu.memory_space<vmem>>, vector<16x144xbf16>
    %c0_179 = arith.constant 0 : index
    %c0_180 = arith.constant 0 : index
    %285 = vector.load %arg20[%c0_179, %c0_180] : memref<288x256xbf16, #tpu.memory_space<vmem>>, vector<144x256xbf16>
    %cst_181 = arith.constant dense<0.000000e+00> : vector<16x256xf32>
    %286 = tpu.matmul %284, %285, %cst_181 {dimension_numbers = #tpu.dot_dimension_numbers<[1], [0], [0], [1], [0, 0, 1, 1], [], []>} : vector<16x144xbf16>, vector<144x256xbf16>, vector<16x256xf32> -> vector<16x256xf32>
    %c0_182 = arith.constant 0 : index
    %c0_183 = arith.constant 0 : index
    %287 = vector.load %arg12[%c0_182, %c0_183] : memref<16x1xf32, #tpu.memory_space<vmem>>, vector<16x1xf32>
    %288 = vector.broadcast %287 : vector<16x1xf32> to vector<16x256xf32>
    %289 = arith.addf %286, %288 : vector<16x256xf32>
    %cst_184 = arith.constant 0.000000e+00 : f32
    %290 = vector.broadcast %cst_184 : f32 to vector<16x256xf32>
    %291 = arith.maximumf %289, %290 : vector<16x256xf32>
    %c68_i32_185 = arith.constant 68 : i32
    %292 = tpu.dynamic_rotate %291 by %c68_i32_185 dim 1 : vector<16x256xf32>, i32 -> vector<16x256xf32>
    %c18_186 = arith.constant 18 : index
    %c0_187 = arith.constant 0 : index
    %293 = vector.load %arg2[%c18_186, %c0_187] : memref<36x256xf32, #tpu.memory_space<vmem>>, vector<1x256xf32>
    %294 = vector.broadcast %293 : vector<1x256xf32> to vector<16x256xf32>
    %295 = arith.mulf %292, %294 : vector<16x256xf32>
    %296 = arith.truncf %295 : vector<16x256xf32> to vector<16x256xbf16>
    %c0_188 = arith.constant 0 : index
    %c0_189 = arith.constant 0 : index
    %297 = vector.load %arg20[%c0_188, %c0_189] : memref<288x256xbf16, #tpu.memory_space<vmem>>, vector<16x256xbf16>
    tpu.vector_store %arg20[%c0_188, %c0_189], %296 {strides = array<i32>} : memref<288x256xbf16, #tpu.memory_space<vmem>>, vector<16x256xbf16>,
    %c64_i32_190 = arith.constant 64 : i32
    %298 = tpu.dynamic_rotate %291 by %c64_i32_190 dim 1 : vector<16x256xf32>, i32 -> vector<16x256xf32>
    %c19_191 = arith.constant 19 : index
    %c0_192 = arith.constant 0 : index
    %299 = vector.load %arg2[%c19_191, %c0_192] : memref<36x256xf32, #tpu.memory_space<vmem>>, vector<1x256xf32>
    %300 = vector.broadcast %299 : vector<1x256xf32> to vector<16x256xf32>
    %301 = arith.mulf %298, %300 : vector<16x256xf32>
    %302 = arith.truncf %301 : vector<16x256xf32> to vector<16x256xbf16>
    %c16_193 = arith.constant 16 : index
    %c0_194 = arith.constant 0 : index
    %303 = vector.load %arg20[%c16_193, %c0_194] : memref<288x256xbf16, #tpu.memory_space<vmem>>, vector<16x256xbf16>
    tpu.vector_store %arg20[%c16_193, %c0_194], %302 {strides = array<i32>} : memref<288x256xbf16, #tpu.memory_space<vmem>>, vector<16x256xbf16>,
    %c60_i32_195 = arith.constant 60 : i32
    %304 = tpu.dynamic_rotate %291 by %c60_i32_195 dim 1 : vector<16x256xf32>, i32 -> vector<16x256xf32>
    %c20_196 = arith.constant 20 : index
    %c0_197 = arith.constant 0 : index
    %305 = vector.load %arg2[%c20_196, %c0_197] : memref<36x256xf32, #tpu.memory_space<vmem>>, vector<1x256xf32>
    %306 = vector.broadcast %305 : vector<1x256xf32> to vector<16x256xf32>
    %307 = arith.mulf %304, %306 : vector<16x256xf32>
    %308 = arith.truncf %307 : vector<16x256xf32> to vector<16x256xbf16>
    %c32_198 = arith.constant 32 : index
    %c0_199 = arith.constant 0 : index
    %309 = vector.load %arg20[%c32_198, %c0_199] : memref<288x256xbf16, #tpu.memory_space<vmem>>, vector<16x256xbf16>
    tpu.vector_store %arg20[%c32_198, %c0_199], %308 {strides = array<i32>} : memref<288x256xbf16, #tpu.memory_space<vmem>>, vector<16x256xbf16>,
    %c4_i32_200 = arith.constant 4 : i32
    %310 = tpu.dynamic_rotate %291 by %c4_i32_200 dim 1 : vector<16x256xf32>, i32 -> vector<16x256xf32>
    %c21_201 = arith.constant 21 : index
    %c0_202 = arith.constant 0 : index
    %311 = vector.load %arg2[%c21_201, %c0_202] : memref<36x256xf32, #tpu.memory_space<vmem>>, vector<1x256xf32>
    %312 = vector.broadcast %311 : vector<1x256xf32> to vector<16x256xf32>
    %313 = arith.mulf %310, %312 : vector<16x256xf32>
    %314 = arith.truncf %313 : vector<16x256xf32> to vector<16x256xbf16>
    %c48_203 = arith.constant 48 : index
    %c0_204 = arith.constant 0 : index
    %315 = vector.load %arg20[%c48_203, %c0_204] : memref<288x256xbf16, #tpu.memory_space<vmem>>, vector<16x256xbf16>
    tpu.vector_store %arg20[%c48_203, %c0_204], %314 {strides = array<i32>} : memref<288x256xbf16, #tpu.memory_space<vmem>>, vector<16x256xbf16>,
    %316 = arith.truncf %291 : vector<16x256xf32> to vector<16x256xbf16>
    %c64_205 = arith.constant 64 : index
    %c0_206 = arith.constant 0 : index
    %317 = vector.load %arg20[%c64_205, %c0_206] : memref<288x256xbf16, #tpu.memory_space<vmem>>, vector<16x256xbf16>
    tpu.vector_store %arg20[%c64_205, %c0_206], %316 {strides = array<i32>} : memref<288x256xbf16, #tpu.memory_space<vmem>>, vector<16x256xbf16>,
    %c252_i32_207 = arith.constant 252 : i32
    %318 = tpu.dynamic_rotate %291 by %c252_i32_207 dim 1 : vector<16x256xf32>, i32 -> vector<16x256xf32>
    %c23_208 = arith.constant 23 : index
    %c0_209 = arith.constant 0 : index
    %319 = vector.load %arg2[%c23_208, %c0_209] : memref<36x256xf32, #tpu.memory_space<vmem>>, vector<1x256xf32>
    %320 = vector.broadcast %319 : vector<1x256xf32> to vector<16x256xf32>
    %321 = arith.mulf %318, %320 : vector<16x256xf32>
    %322 = arith.truncf %321 : vector<16x256xf32> to vector<16x256xbf16>
    %c80_210 = arith.constant 80 : index
    %c0_211 = arith.constant 0 : index
    %323 = vector.load %arg20[%c80_210, %c0_211] : memref<288x256xbf16, #tpu.memory_space<vmem>>, vector<16x256xbf16>
    tpu.vector_store %arg20[%c80_210, %c0_211], %322 {strides = array<i32>} : memref<288x256xbf16, #tpu.memory_space<vmem>>, vector<16x256xbf16>,
    %c196_i32_212 = arith.constant 196 : i32
    %324 = tpu.dynamic_rotate %291 by %c196_i32_212 dim 1 : vector<16x256xf32>, i32 -> vector<16x256xf32>
    %c24_213 = arith.constant 24 : index
    %c0_214 = arith.constant 0 : index
    %325 = vector.load %arg2[%c24_213, %c0_214] : memref<36x256xf32, #tpu.memory_space<vmem>>, vector<1x256xf32>
    %326 = vector.broadcast %325 : vector<1x256xf32> to vector<16x256xf32>
    %327 = arith.mulf %324, %326 : vector<16x256xf32>
    %328 = arith.truncf %327 : vector<16x256xf32> to vector<16x256xbf16>
    %c96_215 = arith.constant 96 : index
    %c0_216 = arith.constant 0 : index
    %329 = vector.load %arg20[%c96_215, %c0_216] : memref<288x256xbf16, #tpu.memory_space<vmem>>, vector<16x256xbf16>
    tpu.vector_store %arg20[%c96_215, %c0_216], %328 {strides = array<i32>} : memref<288x256xbf16, #tpu.memory_space<vmem>>, vector<16x256xbf16>,
    %c192_i32_217 = arith.constant 192 : i32
    %330 = tpu.dynamic_rotate %291 by %c192_i32_217 dim 1 : vector<16x256xf32>, i32 -> vector<16x256xf32>
    %c25_218 = arith.constant 25 : index
    %c0_219 = arith.constant 0 : index
    %331 = vector.load %arg2[%c25_218, %c0_219] : memref<36x256xf32, #tpu.memory_space<vmem>>, vector<1x256xf32>
    %332 = vector.broadcast %331 : vector<1x256xf32> to vector<16x256xf32>
    %333 = arith.mulf %330, %332 : vector<16x256xf32>
    %334 = arith.truncf %333 : vector<16x256xf32> to vector<16x256xbf16>
    %c112_220 = arith.constant 112 : index
    %c0_221 = arith.constant 0 : index
    %335 = vector.load %arg20[%c112_220, %c0_221] : memref<288x256xbf16, #tpu.memory_space<vmem>>, vector<16x256xbf16>
    tpu.vector_store %arg20[%c112_220, %c0_221], %334 {strides = array<i32>} : memref<288x256xbf16, #tpu.memory_space<vmem>>, vector<16x256xbf16>,
    %c188_i32_222 = arith.constant 188 : i32
    %336 = tpu.dynamic_rotate %291 by %c188_i32_222 dim 1 : vector<16x256xf32>, i32 -> vector<16x256xf32>
    %c26_223 = arith.constant 26 : index
    %c0_224 = arith.constant 0 : index
    %337 = vector.load %arg2[%c26_223, %c0_224] : memref<36x256xf32, #tpu.memory_space<vmem>>, vector<1x256xf32>
    %338 = vector.broadcast %337 : vector<1x256xf32> to vector<16x256xf32>
    %339 = arith.mulf %336, %338 : vector<16x256xf32>
    %340 = arith.truncf %339 : vector<16x256xf32> to vector<16x256xbf16>
    %c128_225 = arith.constant 128 : index
    %c0_226 = arith.constant 0 : index
    %341 = vector.load %arg20[%c128_225, %c0_226] : memref<288x256xbf16, #tpu.memory_space<vmem>>, vector<16x256xbf16>
    tpu.vector_store %arg20[%c128_225, %c0_226], %340 {strides = array<i32>} : memref<288x256xbf16, #tpu.memory_space<vmem>>, vector<16x256xbf16>,
    %c68_i32_227 = arith.constant 68 : i32
    %342 = tpu.dynamic_rotate %233 by %c68_i32_227 dim 1 : vector<16x256xf32>, i32 -> vector<16x256xf32>
    %c18_228 = arith.constant 18 : index
    %c0_229 = arith.constant 0 : index
    %343 = vector.load %arg2[%c18_228, %c0_229] : memref<36x256xf32, #tpu.memory_space<vmem>>, vector<1x256xf32>
    %344 = vector.broadcast %343 : vector<1x256xf32> to vector<16x256xf32>
    %345 = arith.mulf %342, %344 : vector<16x256xf32>
    %346 = arith.truncf %345 : vector<16x256xf32> to vector<16x256xbf16>
    %c144 = arith.constant 144 : index
    %c0_230 = arith.constant 0 : index
    %347 = vector.load %arg20[%c144, %c0_230] : memref<288x256xbf16, #tpu.memory_space<vmem>>, vector<16x256xbf16>
    tpu.vector_store %arg20[%c144, %c0_230], %346 {strides = array<i32>} : memref<288x256xbf16, #tpu.memory_space<vmem>>, vector<16x256xbf16>,
    %c64_i32_231 = arith.constant 64 : i32
    %348 = tpu.dynamic_rotate %233 by %c64_i32_231 dim 1 : vector<16x256xf32>, i32 -> vector<16x256xf32>
    %c19_232 = arith.constant 19 : index
    %c0_233 = arith.constant 0 : index
    %349 = vector.load %arg2[%c19_232, %c0_233] : memref<36x256xf32, #tpu.memory_space<vmem>>, vector<1x256xf32>
    %350 = vector.broadcast %349 : vector<1x256xf32> to vector<16x256xf32>
    %351 = arith.mulf %348, %350 : vector<16x256xf32>
    %352 = arith.truncf %351 : vector<16x256xf32> to vector<16x256xbf16>
    %c160 = arith.constant 160 : index
    %c0_234 = arith.constant 0 : index
    %353 = vector.load %arg20[%c160, %c0_234] : memref<288x256xbf16, #tpu.memory_space<vmem>>, vector<16x256xbf16>
    tpu.vector_store %arg20[%c160, %c0_234], %352 {strides = array<i32>} : memref<288x256xbf16, #tpu.memory_space<vmem>>, vector<16x256xbf16>,
    %c60_i32_235 = arith.constant 60 : i32
    %354 = tpu.dynamic_rotate %233 by %c60_i32_235 dim 1 : vector<16x256xf32>, i32 -> vector<16x256xf32>
    %c20_236 = arith.constant 20 : index
    %c0_237 = arith.constant 0 : index
    %355 = vector.load %arg2[%c20_236, %c0_237] : memref<36x256xf32, #tpu.memory_space<vmem>>, vector<1x256xf32>
    %356 = vector.broadcast %355 : vector<1x256xf32> to vector<16x256xf32>
    %357 = arith.mulf %354, %356 : vector<16x256xf32>
    %358 = arith.truncf %357 : vector<16x256xf32> to vector<16x256xbf16>
    %c176 = arith.constant 176 : index
    %c0_238 = arith.constant 0 : index
    %359 = vector.load %arg20[%c176, %c0_238] : memref<288x256xbf16, #tpu.memory_space<vmem>>, vector<16x256xbf16>
    tpu.vector_store %arg20[%c176, %c0_238], %358 {strides = array<i32>} : memref<288x256xbf16, #tpu.memory_space<vmem>>, vector<16x256xbf16>,
    %c4_i32_239 = arith.constant 4 : i32
    %360 = tpu.dynamic_rotate %233 by %c4_i32_239 dim 1 : vector<16x256xf32>, i32 -> vector<16x256xf32>
    %c21_240 = arith.constant 21 : index
    %c0_241 = arith.constant 0 : index
    %361 = vector.load %arg2[%c21_240, %c0_241] : memref<36x256xf32, #tpu.memory_space<vmem>>, vector<1x256xf32>
    %362 = vector.broadcast %361 : vector<1x256xf32> to vector<16x256xf32>
    %363 = arith.mulf %360, %362 : vector<16x256xf32>
    %364 = arith.truncf %363 : vector<16x256xf32> to vector<16x256xbf16>
    %c192 = arith.constant 192 : index
    %c0_242 = arith.constant 0 : index
    %365 = vector.load %arg20[%c192, %c0_242] : memref<288x256xbf16, #tpu.memory_space<vmem>>, vector<16x256xbf16>
    tpu.vector_store %arg20[%c192, %c0_242], %364 {strides = array<i32>} : memref<288x256xbf16, #tpu.memory_space<vmem>>, vector<16x256xbf16>,
    %366 = arith.truncf %233 : vector<16x256xf32> to vector<16x256xbf16>
    %c208 = arith.constant 208 : index
    %c0_243 = arith.constant 0 : index
    %367 = vector.load %arg20[%c208, %c0_243] : memref<288x256xbf16, #tpu.memory_space<vmem>>, vector<16x256xbf16>
    tpu.vector_store %arg20[%c208, %c0_243], %366 {strides = array<i32>} : memref<288x256xbf16, #tpu.memory_space<vmem>>, vector<16x256xbf16>,
    %c252_i32_244 = arith.constant 252 : i32
    %368 = tpu.dynamic_rotate %233 by %c252_i32_244 dim 1 : vector<16x256xf32>, i32 -> vector<16x256xf32>
    %c23_245 = arith.constant 23 : index
    %c0_246 = arith.constant 0 : index
    %369 = vector.load %arg2[%c23_245, %c0_246] : memref<36x256xf32, #tpu.memory_space<vmem>>, vector<1x256xf32>
    %370 = vector.broadcast %369 : vector<1x256xf32> to vector<16x256xf32>
    %371 = arith.mulf %368, %370 : vector<16x256xf32>
    %372 = arith.truncf %371 : vector<16x256xf32> to vector<16x256xbf16>
    %c224 = arith.constant 224 : index
    %c0_247 = arith.constant 0 : index
    %373 = vector.load %arg20[%c224, %c0_247] : memref<288x256xbf16, #tpu.memory_space<vmem>>, vector<16x256xbf16>
    tpu.vector_store %arg20[%c224, %c0_247], %372 {strides = array<i32>} : memref<288x256xbf16, #tpu.memory_space<vmem>>, vector<16x256xbf16>,
    %c196_i32_248 = arith.constant 196 : i32
    %374 = tpu.dynamic_rotate %233 by %c196_i32_248 dim 1 : vector<16x256xf32>, i32 -> vector<16x256xf32>
    %c24_249 = arith.constant 24 : index
    %c0_250 = arith.constant 0 : index
    %375 = vector.load %arg2[%c24_249, %c0_250] : memref<36x256xf32, #tpu.memory_space<vmem>>, vector<1x256xf32>
    %376 = vector.broadcast %375 : vector<1x256xf32> to vector<16x256xf32>
    %377 = arith.mulf %374, %376 : vector<16x256xf32>
    %378 = arith.truncf %377 : vector<16x256xf32> to vector<16x256xbf16>
    %c240 = arith.constant 240 : index
    %c0_251 = arith.constant 0 : index
    %379 = vector.load %arg20[%c240, %c0_251] : memref<288x256xbf16, #tpu.memory_space<vmem>>, vector<16x256xbf16>
    tpu.vector_store %arg20[%c240, %c0_251], %378 {strides = array<i32>} : memref<288x256xbf16, #tpu.memory_space<vmem>>, vector<16x256xbf16>,
    %c192_i32_252 = arith.constant 192 : i32
    %380 = tpu.dynamic_rotate %233 by %c192_i32_252 dim 1 : vector<16x256xf32>, i32 -> vector<16x256xf32>
    %c25_253 = arith.constant 25 : index
    %c0_254 = arith.constant 0 : index
    %381 = vector.load %arg2[%c25_253, %c0_254] : memref<36x256xf32, #tpu.memory_space<vmem>>, vector<1x256xf32>
    %382 = vector.broadcast %381 : vector<1x256xf32> to vector<16x256xf32>
    %383 = arith.mulf %380, %382 : vector<16x256xf32>
    %384 = arith.truncf %383 : vector<16x256xf32> to vector<16x256xbf16>
    %c256 = arith.constant 256 : index
    %c0_255 = arith.constant 0 : index
    %385 = vector.load %arg20[%c256, %c0_255] : memref<288x256xbf16, #tpu.memory_space<vmem>>, vector<16x256xbf16>
    tpu.vector_store %arg20[%c256, %c0_255], %384 {strides = array<i32>} : memref<288x256xbf16, #tpu.memory_space<vmem>>, vector<16x256xbf16>,
    %c188_i32_256 = arith.constant 188 : i32
    %386 = tpu.dynamic_rotate %233 by %c188_i32_256 dim 1 : vector<16x256xf32>, i32 -> vector<16x256xf32>
    %c26_257 = arith.constant 26 : index
    %c0_258 = arith.constant 0 : index
    %387 = vector.load %arg2[%c26_257, %c0_258] : memref<36x256xf32, #tpu.memory_space<vmem>>, vector<1x256xf32>
    %388 = vector.broadcast %387 : vector<1x256xf32> to vector<16x256xf32>
    %389 = arith.mulf %386, %388 : vector<16x256xf32>
    %390 = arith.truncf %389 : vector<16x256xf32> to vector<16x256xbf16>
    %c272 = arith.constant 272 : index
    %c0_259 = arith.constant 0 : index
    %391 = vector.load %arg20[%c272, %c0_259] : memref<288x256xbf16, #tpu.memory_space<vmem>>, vector<16x256xbf16>
    tpu.vector_store %arg20[%c272, %c0_259], %390 {strides = array<i32>} : memref<288x256xbf16, #tpu.memory_space<vmem>>, vector<16x256xbf16>,
    %c0_260 = arith.constant 0 : index
    %c0_261 = arith.constant 0 : index
    %392 = vector.load %arg13[%c0_260, %c0_261] : memref<16x288xbf16, #tpu.memory_space<vmem>>, vector<16x288xbf16>
    %c0_262 = arith.constant 0 : index
    %c0_263 = arith.constant 0 : index
    %393 = vector.load %arg20[%c0_262, %c0_263] : memref<288x256xbf16, #tpu.memory_space<vmem>>, vector<288x256xbf16>
    %cst_264 = arith.constant dense<0.000000e+00> : vector<16x256xf32>
    %394 = tpu.matmul %392, %393, %cst_264 {dimension_numbers = #tpu.dot_dimension_numbers<[1], [0], [0], [1], [0, 0, 1, 1], [], []>} : vector<16x288xbf16>, vector<288x256xbf16>, vector<16x256xf32> -> vector<16x256xf32>
    %c0_265 = arith.constant 0 : index
    %c0_266 = arith.constant 0 : index
    %395 = vector.load %arg14[%c0_265, %c0_266] : memref<16x1xf32, #tpu.memory_space<vmem>>, vector<16x1xf32>
    %396 = vector.broadcast %395 : vector<16x1xf32> to vector<16x256xf32>
    %397 = arith.addf %394, %396 : vector<16x256xf32>
    %cst_267 = arith.constant 0.000000e+00 : f32
    %398 = vector.broadcast %cst_267 : f32 to vector<16x256xf32>
    %399 = arith.maximumf %397, %398 : vector<16x256xf32>
    %c34_i32_268 = arith.constant 34 : i32
    %400 = tpu.dynamic_rotate %399 by %c34_i32_268 dim 1 : vector<16x256xf32>, i32 -> vector<16x256xf32>
    %c9_269 = arith.constant 9 : index
    %c0_270 = arith.constant 0 : index
    %401 = vector.load %arg2[%c9_269, %c0_270] : memref<36x256xf32, #tpu.memory_space<vmem>>, vector<1x256xf32>
    %402 = vector.broadcast %401 : vector<1x256xf32> to vector<16x256xf32>
    %403 = arith.mulf %400, %402 : vector<16x256xf32>
    %404 = arith.truncf %403 : vector<16x256xf32> to vector<16x256xbf16>
    %c0_271 = arith.constant 0 : index
    %c0_272 = arith.constant 0 : index
    %405 = vector.load %arg20[%c0_271, %c0_272] : memref<288x256xbf16, #tpu.memory_space<vmem>>, vector<16x256xbf16>
    tpu.vector_store %arg20[%c0_271, %c0_272], %404 {strides = array<i32>} : memref<288x256xbf16, #tpu.memory_space<vmem>>, vector<16x256xbf16>,
    %c32_i32_273 = arith.constant 32 : i32
    %406 = tpu.dynamic_rotate %399 by %c32_i32_273 dim 1 : vector<16x256xf32>, i32 -> vector<16x256xf32>
    %c10_274 = arith.constant 10 : index
    %c0_275 = arith.constant 0 : index
    %407 = vector.load %arg2[%c10_274, %c0_275] : memref<36x256xf32, #tpu.memory_space<vmem>>, vector<1x256xf32>
    %408 = vector.broadcast %407 : vector<1x256xf32> to vector<16x256xf32>
    %409 = arith.mulf %406, %408 : vector<16x256xf32>
    %410 = arith.truncf %409 : vector<16x256xf32> to vector<16x256xbf16>
    %c16_276 = arith.constant 16 : index
    %c0_277 = arith.constant 0 : index
    %411 = vector.load %arg20[%c16_276, %c0_277] : memref<288x256xbf16, #tpu.memory_space<vmem>>, vector<16x256xbf16>
    tpu.vector_store %arg20[%c16_276, %c0_277], %410 {strides = array<i32>} : memref<288x256xbf16, #tpu.memory_space<vmem>>, vector<16x256xbf16>,
    %c30_i32_278 = arith.constant 30 : i32
    %412 = tpu.dynamic_rotate %399 by %c30_i32_278 dim 1 : vector<16x256xf32>, i32 -> vector<16x256xf32>
    %c11_279 = arith.constant 11 : index
    %c0_280 = arith.constant 0 : index
    %413 = vector.load %arg2[%c11_279, %c0_280] : memref<36x256xf32, #tpu.memory_space<vmem>>, vector<1x256xf32>
    %414 = vector.broadcast %413 : vector<1x256xf32> to vector<16x256xf32>
    %415 = arith.mulf %412, %414 : vector<16x256xf32>
    %416 = arith.truncf %415 : vector<16x256xf32> to vector<16x256xbf16>
    %c32_281 = arith.constant 32 : index
    %c0_282 = arith.constant 0 : index
    %417 = vector.load %arg20[%c32_281, %c0_282] : memref<288x256xbf16, #tpu.memory_space<vmem>>, vector<16x256xbf16>
    tpu.vector_store %arg20[%c32_281, %c0_282], %416 {strides = array<i32>} : memref<288x256xbf16, #tpu.memory_space<vmem>>, vector<16x256xbf16>,
    %c2_i32_283 = arith.constant 2 : i32
    %418 = tpu.dynamic_rotate %399 by %c2_i32_283 dim 1 : vector<16x256xf32>, i32 -> vector<16x256xf32>
    %c12_284 = arith.constant 12 : index
    %c0_285 = arith.constant 0 : index
    %419 = vector.load %arg2[%c12_284, %c0_285] : memref<36x256xf32, #tpu.memory_space<vmem>>, vector<1x256xf32>
    %420 = vector.broadcast %419 : vector<1x256xf32> to vector<16x256xf32>
    %421 = arith.mulf %418, %420 : vector<16x256xf32>
    %422 = arith.truncf %421 : vector<16x256xf32> to vector<16x256xbf16>
    %c48_286 = arith.constant 48 : index
    %c0_287 = arith.constant 0 : index
    %423 = vector.load %arg20[%c48_286, %c0_287] : memref<288x256xbf16, #tpu.memory_space<vmem>>, vector<16x256xbf16>
    tpu.vector_store %arg20[%c48_286, %c0_287], %422 {strides = array<i32>} : memref<288x256xbf16, #tpu.memory_space<vmem>>, vector<16x256xbf16>,
    %424 = arith.truncf %399 : vector<16x256xf32> to vector<16x256xbf16>
    %c64_288 = arith.constant 64 : index
    %c0_289 = arith.constant 0 : index
    %425 = vector.load %arg20[%c64_288, %c0_289] : memref<288x256xbf16, #tpu.memory_space<vmem>>, vector<16x256xbf16>
    tpu.vector_store %arg20[%c64_288, %c0_289], %424 {strides = array<i32>} : memref<288x256xbf16, #tpu.memory_space<vmem>>, vector<16x256xbf16>,
    %c254_i32_290 = arith.constant 254 : i32
    %426 = tpu.dynamic_rotate %399 by %c254_i32_290 dim 1 : vector<16x256xf32>, i32 -> vector<16x256xf32>
    %c14_291 = arith.constant 14 : index
    %c0_292 = arith.constant 0 : index
    %427 = vector.load %arg2[%c14_291, %c0_292] : memref<36x256xf32, #tpu.memory_space<vmem>>, vector<1x256xf32>
    %428 = vector.broadcast %427 : vector<1x256xf32> to vector<16x256xf32>
    %429 = arith.mulf %426, %428 : vector<16x256xf32>
    %430 = arith.truncf %429 : vector<16x256xf32> to vector<16x256xbf16>
    %c80_293 = arith.constant 80 : index
    %c0_294 = arith.constant 0 : index
    %431 = vector.load %arg20[%c80_293, %c0_294] : memref<288x256xbf16, #tpu.memory_space<vmem>>, vector<16x256xbf16>
    tpu.vector_store %arg20[%c80_293, %c0_294], %430 {strides = array<i32>} : memref<288x256xbf16, #tpu.memory_space<vmem>>, vector<16x256xbf16>,
    %c226_i32_295 = arith.constant 226 : i32
    %432 = tpu.dynamic_rotate %399 by %c226_i32_295 dim 1 : vector<16x256xf32>, i32 -> vector<16x256xf32>
    %c15_296 = arith.constant 15 : index
    %c0_297 = arith.constant 0 : index
    %433 = vector.load %arg2[%c15_296, %c0_297] : memref<36x256xf32, #tpu.memory_space<vmem>>, vector<1x256xf32>
    %434 = vector.broadcast %433 : vector<1x256xf32> to vector<16x256xf32>
    %435 = arith.mulf %432, %434 : vector<16x256xf32>
    %436 = arith.truncf %435 : vector<16x256xf32> to vector<16x256xbf16>
    %c96_298 = arith.constant 96 : index
    %c0_299 = arith.constant 0 : index
    %437 = vector.load %arg20[%c96_298, %c0_299] : memref<288x256xbf16, #tpu.memory_space<vmem>>, vector<16x256xbf16>
    tpu.vector_store %arg20[%c96_298, %c0_299], %436 {strides = array<i32>} : memref<288x256xbf16, #tpu.memory_space<vmem>>, vector<16x256xbf16>,
    %c224_i32_300 = arith.constant 224 : i32
    %438 = tpu.dynamic_rotate %399 by %c224_i32_300 dim 1 : vector<16x256xf32>, i32 -> vector<16x256xf32>
    %c16_301 = arith.constant 16 : index
    %c0_302 = arith.constant 0 : index
    %439 = vector.load %arg2[%c16_301, %c0_302] : memref<36x256xf32, #tpu.memory_space<vmem>>, vector<1x256xf32>
    %440 = vector.broadcast %439 : vector<1x256xf32> to vector<16x256xf32>
    %441 = arith.mulf %438, %440 : vector<16x256xf32>
    %442 = arith.truncf %441 : vector<16x256xf32> to vector<16x256xbf16>
    %c112_303 = arith.constant 112 : index
    %c0_304 = arith.constant 0 : index
    %443 = vector.load %arg20[%c112_303, %c0_304] : memref<288x256xbf16, #tpu.memory_space<vmem>>, vector<16x256xbf16>
    tpu.vector_store %arg20[%c112_303, %c0_304], %442 {strides = array<i32>} : memref<288x256xbf16, #tpu.memory_space<vmem>>, vector<16x256xbf16>,
    %c222_i32_305 = arith.constant 222 : i32
    %444 = tpu.dynamic_rotate %399 by %c222_i32_305 dim 1 : vector<16x256xf32>, i32 -> vector<16x256xf32>
    %c17_306 = arith.constant 17 : index
    %c0_307 = arith.constant 0 : index
    %445 = vector.load %arg2[%c17_306, %c0_307] : memref<36x256xf32, #tpu.memory_space<vmem>>, vector<1x256xf32>
    %446 = vector.broadcast %445 : vector<1x256xf32> to vector<16x256xf32>
    %447 = arith.mulf %444, %446 : vector<16x256xf32>
    %448 = arith.truncf %447 : vector<16x256xf32> to vector<16x256xbf16>
    %c128_308 = arith.constant 128 : index
    %c0_309 = arith.constant 0 : index
    %449 = vector.load %arg20[%c128_308, %c0_309] : memref<288x256xbf16, #tpu.memory_space<vmem>>, vector<16x256xbf16>
    tpu.vector_store %arg20[%c128_308, %c0_309], %448 {strides = array<i32>} : memref<288x256xbf16, #tpu.memory_space<vmem>>, vector<16x256xbf16>,
    %c34_i32_310 = arith.constant 34 : i32
    %450 = tpu.dynamic_rotate %175 by %c34_i32_310 dim 1 : vector<16x256xf32>, i32 -> vector<16x256xf32>
    %c9_311 = arith.constant 9 : index
    %c0_312 = arith.constant 0 : index
    %451 = vector.load %arg2[%c9_311, %c0_312] : memref<36x256xf32, #tpu.memory_space<vmem>>, vector<1x256xf32>
    %452 = vector.broadcast %451 : vector<1x256xf32> to vector<16x256xf32>
    %453 = arith.mulf %450, %452 : vector<16x256xf32>
    %454 = arith.truncf %453 : vector<16x256xf32> to vector<16x256xbf16>
    %c144_313 = arith.constant 144 : index
    %c0_314 = arith.constant 0 : index
    %455 = vector.load %arg20[%c144_313, %c0_314] : memref<288x256xbf16, #tpu.memory_space<vmem>>, vector<16x256xbf16>
    tpu.vector_store %arg20[%c144_313, %c0_314], %454 {strides = array<i32>} : memref<288x256xbf16, #tpu.memory_space<vmem>>, vector<16x256xbf16>,
    %c32_i32_315 = arith.constant 32 : i32
    %456 = tpu.dynamic_rotate %175 by %c32_i32_315 dim 1 : vector<16x256xf32>, i32 -> vector<16x256xf32>
    %c10_316 = arith.constant 10 : index
    %c0_317 = arith.constant 0 : index
    %457 = vector.load %arg2[%c10_316, %c0_317] : memref<36x256xf32, #tpu.memory_space<vmem>>, vector<1x256xf32>
    %458 = vector.broadcast %457 : vector<1x256xf32> to vector<16x256xf32>
    %459 = arith.mulf %456, %458 : vector<16x256xf32>
    %460 = arith.truncf %459 : vector<16x256xf32> to vector<16x256xbf16>
    %c160_318 = arith.constant 160 : index
    %c0_319 = arith.constant 0 : index
    %461 = vector.load %arg20[%c160_318, %c0_319] : memref<288x256xbf16, #tpu.memory_space<vmem>>, vector<16x256xbf16>
    tpu.vector_store %arg20[%c160_318, %c0_319], %460 {strides = array<i32>} : memref<288x256xbf16, #tpu.memory_space<vmem>>, vector<16x256xbf16>,
    %c30_i32_320 = arith.constant 30 : i32
    %462 = tpu.dynamic_rotate %175 by %c30_i32_320 dim 1 : vector<16x256xf32>, i32 -> vector<16x256xf32>
    %c11_321 = arith.constant 11 : index
    %c0_322 = arith.constant 0 : index
    %463 = vector.load %arg2[%c11_321, %c0_322] : memref<36x256xf32, #tpu.memory_space<vmem>>, vector<1x256xf32>
    %464 = vector.broadcast %463 : vector<1x256xf32> to vector<16x256xf32>
    %465 = arith.mulf %462, %464 : vector<16x256xf32>
    %466 = arith.truncf %465 : vector<16x256xf32> to vector<16x256xbf16>
    %c176_323 = arith.constant 176 : index
    %c0_324 = arith.constant 0 : index
    %467 = vector.load %arg20[%c176_323, %c0_324] : memref<288x256xbf16, #tpu.memory_space<vmem>>, vector<16x256xbf16>
    tpu.vector_store %arg20[%c176_323, %c0_324], %466 {strides = array<i32>} : memref<288x256xbf16, #tpu.memory_space<vmem>>, vector<16x256xbf16>,
    %c2_i32_325 = arith.constant 2 : i32
    %468 = tpu.dynamic_rotate %175 by %c2_i32_325 dim 1 : vector<16x256xf32>, i32 -> vector<16x256xf32>
    %c12_326 = arith.constant 12 : index
    %c0_327 = arith.constant 0 : index
    %469 = vector.load %arg2[%c12_326, %c0_327] : memref<36x256xf32, #tpu.memory_space<vmem>>, vector<1x256xf32>
    %470 = vector.broadcast %469 : vector<1x256xf32> to vector<16x256xf32>
    %471 = arith.mulf %468, %470 : vector<16x256xf32>
    %472 = arith.truncf %471 : vector<16x256xf32> to vector<16x256xbf16>
    %c192_328 = arith.constant 192 : index
    %c0_329 = arith.constant 0 : index
    %473 = vector.load %arg20[%c192_328, %c0_329] : memref<288x256xbf16, #tpu.memory_space<vmem>>, vector<16x256xbf16>
    tpu.vector_store %arg20[%c192_328, %c0_329], %472 {strides = array<i32>} : memref<288x256xbf16, #tpu.memory_space<vmem>>, vector<16x256xbf16>,
    %474 = arith.truncf %175 : vector<16x256xf32> to vector<16x256xbf16>
    %c208_330 = arith.constant 208 : index
    %c0_331 = arith.constant 0 : index
    %475 = vector.load %arg20[%c208_330, %c0_331] : memref<288x256xbf16, #tpu.memory_space<vmem>>, vector<16x256xbf16>
    tpu.vector_store %arg20[%c208_330, %c0_331], %474 {strides = array<i32>} : memref<288x256xbf16, #tpu.memory_space<vmem>>, vector<16x256xbf16>,
    %c254_i32_332 = arith.constant 254 : i32
    %476 = tpu.dynamic_rotate %175 by %c254_i32_332 dim 1 : vector<16x256xf32>, i32 -> vector<16x256xf32>
    %c14_333 = arith.constant 14 : index
    %c0_334 = arith.constant 0 : index
    %477 = vector.load %arg2[%c14_333, %c0_334] : memref<36x256xf32, #tpu.memory_space<vmem>>, vector<1x256xf32>
    %478 = vector.broadcast %477 : vector<1x256xf32> to vector<16x256xf32>
    %479 = arith.mulf %476, %478 : vector<16x256xf32>
    %480 = arith.truncf %479 : vector<16x256xf32> to vector<16x256xbf16>
    %c224_335 = arith.constant 224 : index
    %c0_336 = arith.constant 0 : index
    %481 = vector.load %arg20[%c224_335, %c0_336] : memref<288x256xbf16, #tpu.memory_space<vmem>>, vector<16x256xbf16>
    tpu.vector_store %arg20[%c224_335, %c0_336], %480 {strides = array<i32>} : memref<288x256xbf16, #tpu.memory_space<vmem>>, vector<16x256xbf16>,
    %c226_i32_337 = arith.constant 226 : i32
    %482 = tpu.dynamic_rotate %175 by %c226_i32_337 dim 1 : vector<16x256xf32>, i32 -> vector<16x256xf32>
    %c15_338 = arith.constant 15 : index
    %c0_339 = arith.constant 0 : index
    %483 = vector.load %arg2[%c15_338, %c0_339] : memref<36x256xf32, #tpu.memory_space<vmem>>, vector<1x256xf32>
    %484 = vector.broadcast %483 : vector<1x256xf32> to vector<16x256xf32>
    %485 = arith.mulf %482, %484 : vector<16x256xf32>
    %486 = arith.truncf %485 : vector<16x256xf32> to vector<16x256xbf16>
    %c240_340 = arith.constant 240 : index
    %c0_341 = arith.constant 0 : index
    %487 = vector.load %arg20[%c240_340, %c0_341] : memref<288x256xbf16, #tpu.memory_space<vmem>>, vector<16x256xbf16>
    tpu.vector_store %arg20[%c240_340, %c0_341], %486 {strides = array<i32>} : memref<288x256xbf16, #tpu.memory_space<vmem>>, vector<16x256xbf16>,
    %c224_i32_342 = arith.constant 224 : i32
    %488 = tpu.dynamic_rotate %175 by %c224_i32_342 dim 1 : vector<16x256xf32>, i32 -> vector<16x256xf32>
    %c16_343 = arith.constant 16 : index
    %c0_344 = arith.constant 0 : index
    %489 = vector.load %arg2[%c16_343, %c0_344] : memref<36x256xf32, #tpu.memory_space<vmem>>, vector<1x256xf32>
    %490 = vector.broadcast %489 : vector<1x256xf32> to vector<16x256xf32>
    %491 = arith.mulf %488, %490 : vector<16x256xf32>
    %492 = arith.truncf %491 : vector<16x256xf32> to vector<16x256xbf16>
    %c256_345 = arith.constant 256 : index
    %c0_346 = arith.constant 0 : index
    %493 = vector.load %arg20[%c256_345, %c0_346] : memref<288x256xbf16, #tpu.memory_space<vmem>>, vector<16x256xbf16>
    tpu.vector_store %arg20[%c256_345, %c0_346], %492 {strides = array<i32>} : memref<288x256xbf16, #tpu.memory_space<vmem>>, vector<16x256xbf16>,
    %c222_i32_347 = arith.constant 222 : i32
    %494 = tpu.dynamic_rotate %175 by %c222_i32_347 dim 1 : vector<16x256xf32>, i32 -> vector<16x256xf32>
    %c17_348 = arith.constant 17 : index
    %c0_349 = arith.constant 0 : index
    %495 = vector.load %arg2[%c17_348, %c0_349] : memref<36x256xf32, #tpu.memory_space<vmem>>, vector<1x256xf32>
    %496 = vector.broadcast %495 : vector<1x256xf32> to vector<16x256xf32>
    %497 = arith.mulf %494, %496 : vector<16x256xf32>
    %498 = arith.truncf %497 : vector<16x256xf32> to vector<16x256xbf16>
    %c272_350 = arith.constant 272 : index
    %c0_351 = arith.constant 0 : index
    %499 = vector.load %arg20[%c272_350, %c0_351] : memref<288x256xbf16, #tpu.memory_space<vmem>>, vector<16x256xbf16>
    tpu.vector_store %arg20[%c272_350, %c0_351], %498 {strides = array<i32>} : memref<288x256xbf16, #tpu.memory_space<vmem>>, vector<16x256xbf16>,
    %c0_352 = arith.constant 0 : index
    %c0_353 = arith.constant 0 : index
    %500 = vector.load %arg15[%c0_352, %c0_353] : memref<16x288xbf16, #tpu.memory_space<vmem>>, vector<16x288xbf16>
    %c0_354 = arith.constant 0 : index
    %c0_355 = arith.constant 0 : index
    %501 = vector.load %arg20[%c0_354, %c0_355] : memref<288x256xbf16, #tpu.memory_space<vmem>>, vector<288x256xbf16>
    %cst_356 = arith.constant dense<0.000000e+00> : vector<16x256xf32>
    %502 = tpu.matmul %500, %501, %cst_356 {dimension_numbers = #tpu.dot_dimension_numbers<[1], [0], [0], [1], [0, 0, 1, 1], [], []>} : vector<16x288xbf16>, vector<288x256xbf16>, vector<16x256xf32> -> vector<16x256xf32>
    %c0_357 = arith.constant 0 : index
    %c0_358 = arith.constant 0 : index
    %503 = vector.load %arg16[%c0_357, %c0_358] : memref<16x1xf32, #tpu.memory_space<vmem>>, vector<16x1xf32>
    %504 = vector.broadcast %503 : vector<16x1xf32> to vector<16x256xf32>
    %505 = arith.addf %502, %504 : vector<16x256xf32>
    %cst_359 = arith.constant 0.000000e+00 : f32
    %506 = vector.broadcast %cst_359 : f32 to vector<16x256xf32>
    %507 = arith.maximumf %505, %506 : vector<16x256xf32>
    %c17_i32_360 = arith.constant 17 : i32
    %508 = tpu.dynamic_rotate %507 by %c17_i32_360 dim 1 : vector<16x256xf32>, i32 -> vector<16x256xf32>
    %c0_361 = arith.constant 0 : index
    %c0_362 = arith.constant 0 : index
    %509 = vector.load %arg2[%c0_361, %c0_362] : memref<36x256xf32, #tpu.memory_space<vmem>>, vector<1x256xf32>
    %510 = vector.broadcast %509 : vector<1x256xf32> to vector<16x256xf32>
    %511 = arith.mulf %508, %510 : vector<16x256xf32>
    %512 = arith.truncf %511 : vector<16x256xf32> to vector<16x256xbf16>
    %c0_363 = arith.constant 0 : index
    %c0_364 = arith.constant 0 : index
    %513 = vector.load %arg20[%c0_363, %c0_364] : memref<288x256xbf16, #tpu.memory_space<vmem>>, vector<16x256xbf16>
    tpu.vector_store %arg20[%c0_363, %c0_364], %512 {strides = array<i32>} : memref<288x256xbf16, #tpu.memory_space<vmem>>, vector<16x256xbf16>,
    %c16_i32_365 = arith.constant 16 : i32
    %514 = tpu.dynamic_rotate %507 by %c16_i32_365 dim 1 : vector<16x256xf32>, i32 -> vector<16x256xf32>
    %c1_366 = arith.constant 1 : index
    %c0_367 = arith.constant 0 : index
    %515 = vector.load %arg2[%c1_366, %c0_367] : memref<36x256xf32, #tpu.memory_space<vmem>>, vector<1x256xf32>
    %516 = vector.broadcast %515 : vector<1x256xf32> to vector<16x256xf32>
    %517 = arith.mulf %514, %516 : vector<16x256xf32>
    %518 = arith.truncf %517 : vector<16x256xf32> to vector<16x256xbf16>
    %c16_368 = arith.constant 16 : index
    %c0_369 = arith.constant 0 : index
    %519 = vector.load %arg20[%c16_368, %c0_369] : memref<288x256xbf16, #tpu.memory_space<vmem>>, vector<16x256xbf16>
    tpu.vector_store %arg20[%c16_368, %c0_369], %518 {strides = array<i32>} : memref<288x256xbf16, #tpu.memory_space<vmem>>, vector<16x256xbf16>,
    %c15_i32_370 = arith.constant 15 : i32
    %520 = tpu.dynamic_rotate %507 by %c15_i32_370 dim 1 : vector<16x256xf32>, i32 -> vector<16x256xf32>
    %c2_371 = arith.constant 2 : index
    %c0_372 = arith.constant 0 : index
    %521 = vector.load %arg2[%c2_371, %c0_372] : memref<36x256xf32, #tpu.memory_space<vmem>>, vector<1x256xf32>
    %522 = vector.broadcast %521 : vector<1x256xf32> to vector<16x256xf32>
    %523 = arith.mulf %520, %522 : vector<16x256xf32>
    %524 = arith.truncf %523 : vector<16x256xf32> to vector<16x256xbf16>
    %c32_373 = arith.constant 32 : index
    %c0_374 = arith.constant 0 : index
    %525 = vector.load %arg20[%c32_373, %c0_374] : memref<288x256xbf16, #tpu.memory_space<vmem>>, vector<16x256xbf16>
    tpu.vector_store %arg20[%c32_373, %c0_374], %524 {strides = array<i32>} : memref<288x256xbf16, #tpu.memory_space<vmem>>, vector<16x256xbf16>,
    %c1_i32_375 = arith.constant 1 : i32
    %526 = tpu.dynamic_rotate %507 by %c1_i32_375 dim 1 : vector<16x256xf32>, i32 -> vector<16x256xf32>
    %c3_376 = arith.constant 3 : index
    %c0_377 = arith.constant 0 : index
    %527 = vector.load %arg2[%c3_376, %c0_377] : memref<36x256xf32, #tpu.memory_space<vmem>>, vector<1x256xf32>
    %528 = vector.broadcast %527 : vector<1x256xf32> to vector<16x256xf32>
    %529 = arith.mulf %526, %528 : vector<16x256xf32>
    %530 = arith.truncf %529 : vector<16x256xf32> to vector<16x256xbf16>
    %c48_378 = arith.constant 48 : index
    %c0_379 = arith.constant 0 : index
    %531 = vector.load %arg20[%c48_378, %c0_379] : memref<288x256xbf16, #tpu.memory_space<vmem>>, vector<16x256xbf16>
    tpu.vector_store %arg20[%c48_378, %c0_379], %530 {strides = array<i32>} : memref<288x256xbf16, #tpu.memory_space<vmem>>, vector<16x256xbf16>,
    %532 = arith.truncf %507 : vector<16x256xf32> to vector<16x256xbf16>
    %c64_380 = arith.constant 64 : index
    %c0_381 = arith.constant 0 : index
    %533 = vector.load %arg20[%c64_380, %c0_381] : memref<288x256xbf16, #tpu.memory_space<vmem>>, vector<16x256xbf16>
    tpu.vector_store %arg20[%c64_380, %c0_381], %532 {strides = array<i32>} : memref<288x256xbf16, #tpu.memory_space<vmem>>, vector<16x256xbf16>,
    %c255_i32_382 = arith.constant 255 : i32
    %534 = tpu.dynamic_rotate %507 by %c255_i32_382 dim 1 : vector<16x256xf32>, i32 -> vector<16x256xf32>
    %c5_383 = arith.constant 5 : index
    %c0_384 = arith.constant 0 : index
    %535 = vector.load %arg2[%c5_383, %c0_384] : memref<36x256xf32, #tpu.memory_space<vmem>>, vector<1x256xf32>
    %536 = vector.broadcast %535 : vector<1x256xf32> to vector<16x256xf32>
    %537 = arith.mulf %534, %536 : vector<16x256xf32>
    %538 = arith.truncf %537 : vector<16x256xf32> to vector<16x256xbf16>
    %c80_385 = arith.constant 80 : index
    %c0_386 = arith.constant 0 : index
    %539 = vector.load %arg20[%c80_385, %c0_386] : memref<288x256xbf16, #tpu.memory_space<vmem>>, vector<16x256xbf16>
    tpu.vector_store %arg20[%c80_385, %c0_386], %538 {strides = array<i32>} : memref<288x256xbf16, #tpu.memory_space<vmem>>, vector<16x256xbf16>,
    %c241_i32_387 = arith.constant 241 : i32
    %540 = tpu.dynamic_rotate %507 by %c241_i32_387 dim 1 : vector<16x256xf32>, i32 -> vector<16x256xf32>
    %c6_388 = arith.constant 6 : index
    %c0_389 = arith.constant 0 : index
    %541 = vector.load %arg2[%c6_388, %c0_389] : memref<36x256xf32, #tpu.memory_space<vmem>>, vector<1x256xf32>
    %542 = vector.broadcast %541 : vector<1x256xf32> to vector<16x256xf32>
    %543 = arith.mulf %540, %542 : vector<16x256xf32>
    %544 = arith.truncf %543 : vector<16x256xf32> to vector<16x256xbf16>
    %c96_390 = arith.constant 96 : index
    %c0_391 = arith.constant 0 : index
    %545 = vector.load %arg20[%c96_390, %c0_391] : memref<288x256xbf16, #tpu.memory_space<vmem>>, vector<16x256xbf16>
    tpu.vector_store %arg20[%c96_390, %c0_391], %544 {strides = array<i32>} : memref<288x256xbf16, #tpu.memory_space<vmem>>, vector<16x256xbf16>,
    %c240_i32_392 = arith.constant 240 : i32
    %546 = tpu.dynamic_rotate %507 by %c240_i32_392 dim 1 : vector<16x256xf32>, i32 -> vector<16x256xf32>
    %c7_393 = arith.constant 7 : index
    %c0_394 = arith.constant 0 : index
    %547 = vector.load %arg2[%c7_393, %c0_394] : memref<36x256xf32, #tpu.memory_space<vmem>>, vector<1x256xf32>
    %548 = vector.broadcast %547 : vector<1x256xf32> to vector<16x256xf32>
    %549 = arith.mulf %546, %548 : vector<16x256xf32>
    %550 = arith.truncf %549 : vector<16x256xf32> to vector<16x256xbf16>
    %c112_395 = arith.constant 112 : index
    %c0_396 = arith.constant 0 : index
    %551 = vector.load %arg20[%c112_395, %c0_396] : memref<288x256xbf16, #tpu.memory_space<vmem>>, vector<16x256xbf16>
    tpu.vector_store %arg20[%c112_395, %c0_396], %550 {strides = array<i32>} : memref<288x256xbf16, #tpu.memory_space<vmem>>, vector<16x256xbf16>,
    %c239_i32_397 = arith.constant 239 : i32
    %552 = tpu.dynamic_rotate %507 by %c239_i32_397 dim 1 : vector<16x256xf32>, i32 -> vector<16x256xf32>
    %c8_398 = arith.constant 8 : index
    %c0_399 = arith.constant 0 : index
    %553 = vector.load %arg2[%c8_398, %c0_399] : memref<36x256xf32, #tpu.memory_space<vmem>>, vector<1x256xf32>
    %554 = vector.broadcast %553 : vector<1x256xf32> to vector<16x256xf32>
    %555 = arith.mulf %552, %554 : vector<16x256xf32>
    %556 = arith.truncf %555 : vector<16x256xf32> to vector<16x256xbf16>
    %c128_400 = arith.constant 128 : index
    %c0_401 = arith.constant 0 : index
    %557 = vector.load %arg20[%c128_400, %c0_401] : memref<288x256xbf16, #tpu.memory_space<vmem>>, vector<16x256xbf16>
    tpu.vector_store %arg20[%c128_400, %c0_401], %556 {strides = array<i32>} : memref<288x256xbf16, #tpu.memory_space<vmem>>, vector<16x256xbf16>,
    %c17_i32_402 = arith.constant 17 : i32
    %558 = tpu.dynamic_rotate %117 by %c17_i32_402 dim 1 : vector<16x256xf32>, i32 -> vector<16x256xf32>
    %c0_403 = arith.constant 0 : index
    %c0_404 = arith.constant 0 : index
    %559 = vector.load %arg2[%c0_403, %c0_404] : memref<36x256xf32, #tpu.memory_space<vmem>>, vector<1x256xf32>
    %560 = vector.broadcast %559 : vector<1x256xf32> to vector<16x256xf32>
    %561 = arith.mulf %558, %560 : vector<16x256xf32>
    %562 = arith.truncf %561 : vector<16x256xf32> to vector<16x256xbf16>
    %c144_405 = arith.constant 144 : index
    %c0_406 = arith.constant 0 : index
    %563 = vector.load %arg20[%c144_405, %c0_406] : memref<288x256xbf16, #tpu.memory_space<vmem>>, vector<16x256xbf16>
    tpu.vector_store %arg20[%c144_405, %c0_406], %562 {strides = array<i32>} : memref<288x256xbf16, #tpu.memory_space<vmem>>, vector<16x256xbf16>,
    %c16_i32_407 = arith.constant 16 : i32
    %564 = tpu.dynamic_rotate %117 by %c16_i32_407 dim 1 : vector<16x256xf32>, i32 -> vector<16x256xf32>
    %c1_408 = arith.constant 1 : index
    %c0_409 = arith.constant 0 : index
    %565 = vector.load %arg2[%c1_408, %c0_409] : memref<36x256xf32, #tpu.memory_space<vmem>>, vector<1x256xf32>
    %566 = vector.broadcast %565 : vector<1x256xf32> to vector<16x256xf32>
    %567 = arith.mulf %564, %566 : vector<16x256xf32>
    %568 = arith.truncf %567 : vector<16x256xf32> to vector<16x256xbf16>
    %c160_410 = arith.constant 160 : index
    %c0_411 = arith.constant 0 : index
    %569 = vector.load %arg20[%c160_410, %c0_411] : memref<288x256xbf16, #tpu.memory_space<vmem>>, vector<16x256xbf16>
    tpu.vector_store %arg20[%c160_410, %c0_411], %568 {strides = array<i32>} : memref<288x256xbf16, #tpu.memory_space<vmem>>, vector<16x256xbf16>,
    %c15_i32_412 = arith.constant 15 : i32
    %570 = tpu.dynamic_rotate %117 by %c15_i32_412 dim 1 : vector<16x256xf32>, i32 -> vector<16x256xf32>
    %c2_413 = arith.constant 2 : index
    %c0_414 = arith.constant 0 : index
    %571 = vector.load %arg2[%c2_413, %c0_414] : memref<36x256xf32, #tpu.memory_space<vmem>>, vector<1x256xf32>
    %572 = vector.broadcast %571 : vector<1x256xf32> to vector<16x256xf32>
    %573 = arith.mulf %570, %572 : vector<16x256xf32>
    %574 = arith.truncf %573 : vector<16x256xf32> to vector<16x256xbf16>
    %c176_415 = arith.constant 176 : index
    %c0_416 = arith.constant 0 : index
    %575 = vector.load %arg20[%c176_415, %c0_416] : memref<288x256xbf16, #tpu.memory_space<vmem>>, vector<16x256xbf16>
    tpu.vector_store %arg20[%c176_415, %c0_416], %574 {strides = array<i32>} : memref<288x256xbf16, #tpu.memory_space<vmem>>, vector<16x256xbf16>,
    %c1_i32_417 = arith.constant 1 : i32
    %576 = tpu.dynamic_rotate %117 by %c1_i32_417 dim 1 : vector<16x256xf32>, i32 -> vector<16x256xf32>
    %c3_418 = arith.constant 3 : index
    %c0_419 = arith.constant 0 : index
    %577 = vector.load %arg2[%c3_418, %c0_419] : memref<36x256xf32, #tpu.memory_space<vmem>>, vector<1x256xf32>
    %578 = vector.broadcast %577 : vector<1x256xf32> to vector<16x256xf32>
    %579 = arith.mulf %576, %578 : vector<16x256xf32>
    %580 = arith.truncf %579 : vector<16x256xf32> to vector<16x256xbf16>
    %c192_420 = arith.constant 192 : index
    %c0_421 = arith.constant 0 : index
    %581 = vector.load %arg20[%c192_420, %c0_421] : memref<288x256xbf16, #tpu.memory_space<vmem>>, vector<16x256xbf16>
    tpu.vector_store %arg20[%c192_420, %c0_421], %580 {strides = array<i32>} : memref<288x256xbf16, #tpu.memory_space<vmem>>, vector<16x256xbf16>,
    %582 = arith.truncf %117 : vector<16x256xf32> to vector<16x256xbf16>
    %c208_422 = arith.constant 208 : index
    %c0_423 = arith.constant 0 : index
    %583 = vector.load %arg20[%c208_422, %c0_423] : memref<288x256xbf16, #tpu.memory_space<vmem>>, vector<16x256xbf16>
    tpu.vector_store %arg20[%c208_422, %c0_423], %582 {strides = array<i32>} : memref<288x256xbf16, #tpu.memory_space<vmem>>, vector<16x256xbf16>,
    %c255_i32_424 = arith.constant 255 : i32
    %584 = tpu.dynamic_rotate %117 by %c255_i32_424 dim 1 : vector<16x256xf32>, i32 -> vector<16x256xf32>
    %c5_425 = arith.constant 5 : index
    %c0_426 = arith.constant 0 : index
    %585 = vector.load %arg2[%c5_425, %c0_426] : memref<36x256xf32, #tpu.memory_space<vmem>>, vector<1x256xf32>
    %586 = vector.broadcast %585 : vector<1x256xf32> to vector<16x256xf32>
    %587 = arith.mulf %584, %586 : vector<16x256xf32>
    %588 = arith.truncf %587 : vector<16x256xf32> to vector<16x256xbf16>
    %c224_427 = arith.constant 224 : index
    %c0_428 = arith.constant 0 : index
    %589 = vector.load %arg20[%c224_427, %c0_428] : memref<288x256xbf16, #tpu.memory_space<vmem>>, vector<16x256xbf16>
    tpu.vector_store %arg20[%c224_427, %c0_428], %588 {strides = array<i32>} : memref<288x256xbf16, #tpu.memory_space<vmem>>, vector<16x256xbf16>,
    %c241_i32_429 = arith.constant 241 : i32
    %590 = tpu.dynamic_rotate %117 by %c241_i32_429 dim 1 : vector<16x256xf32>, i32 -> vector<16x256xf32>
    %c6_430 = arith.constant 6 : index
    %c0_431 = arith.constant 0 : index
    %591 = vector.load %arg2[%c6_430, %c0_431] : memref<36x256xf32, #tpu.memory_space<vmem>>, vector<1x256xf32>
    %592 = vector.broadcast %591 : vector<1x256xf32> to vector<16x256xf32>
    %593 = arith.mulf %590, %592 : vector<16x256xf32>
    %594 = arith.truncf %593 : vector<16x256xf32> to vector<16x256xbf16>
    %c240_432 = arith.constant 240 : index
    %c0_433 = arith.constant 0 : index
    %595 = vector.load %arg20[%c240_432, %c0_433] : memref<288x256xbf16, #tpu.memory_space<vmem>>, vector<16x256xbf16>
    tpu.vector_store %arg20[%c240_432, %c0_433], %594 {strides = array<i32>} : memref<288x256xbf16, #tpu.memory_space<vmem>>, vector<16x256xbf16>,
    %c240_i32_434 = arith.constant 240 : i32
    %596 = tpu.dynamic_rotate %117 by %c240_i32_434 dim 1 : vector<16x256xf32>, i32 -> vector<16x256xf32>
    %c7_435 = arith.constant 7 : index
    %c0_436 = arith.constant 0 : index
    %597 = vector.load %arg2[%c7_435, %c0_436] : memref<36x256xf32, #tpu.memory_space<vmem>>, vector<1x256xf32>
    %598 = vector.broadcast %597 : vector<1x256xf32> to vector<16x256xf32>
    %599 = arith.mulf %596, %598 : vector<16x256xf32>
    %600 = arith.truncf %599 : vector<16x256xf32> to vector<16x256xbf16>
    %c256_437 = arith.constant 256 : index
    %c0_438 = arith.constant 0 : index
    %601 = vector.load %arg20[%c256_437, %c0_438] : memref<288x256xbf16, #tpu.memory_space<vmem>>, vector<16x256xbf16>
    tpu.vector_store %arg20[%c256_437, %c0_438], %600 {strides = array<i32>} : memref<288x256xbf16, #tpu.memory_space<vmem>>, vector<16x256xbf16>,
    %c239_i32_439 = arith.constant 239 : i32
    %602 = tpu.dynamic_rotate %117 by %c239_i32_439 dim 1 : vector<16x256xf32>, i32 -> vector<16x256xf32>
    %c8_440 = arith.constant 8 : index
    %c0_441 = arith.constant 0 : index
    %603 = vector.load %arg2[%c8_440, %c0_441] : memref<36x256xf32, #tpu.memory_space<vmem>>, vector<1x256xf32>
    %604 = vector.broadcast %603 : vector<1x256xf32> to vector<16x256xf32>
    %605 = arith.mulf %602, %604 : vector<16x256xf32>
    %606 = arith.truncf %605 : vector<16x256xf32> to vector<16x256xbf16>
    %c272_442 = arith.constant 272 : index
    %c0_443 = arith.constant 0 : index
    %607 = vector.load %arg20[%c272_442, %c0_443] : memref<288x256xbf16, #tpu.memory_space<vmem>>, vector<16x256xbf16>
    tpu.vector_store %arg20[%c272_442, %c0_443], %606 {strides = array<i32>} : memref<288x256xbf16, #tpu.memory_space<vmem>>, vector<16x256xbf16>,
    %c0_444 = arith.constant 0 : index
    %c0_445 = arith.constant 0 : index
    %608 = vector.load %arg17[%c0_444, %c0_445] : memref<16x288xbf16, #tpu.memory_space<vmem>>, vector<16x288xbf16>
    %c0_446 = arith.constant 0 : index
    %c0_447 = arith.constant 0 : index
    %609 = vector.load %arg20[%c0_446, %c0_447] : memref<288x256xbf16, #tpu.memory_space<vmem>>, vector<288x256xbf16>
    %cst_448 = arith.constant dense<0.000000e+00> : vector<16x256xf32>
    %610 = tpu.matmul %608, %609, %cst_448 {dimension_numbers = #tpu.dot_dimension_numbers<[1], [0], [0], [1], [0, 0, 1, 1], [], []>} : vector<16x288xbf16>, vector<288x256xbf16>, vector<16x256xf32> -> vector<16x256xf32>
    %c0_449 = arith.constant 0 : index
    %c0_450 = arith.constant 0 : index
    %611 = vector.load %arg18[%c0_449, %c0_450] : memref<16x1xf32, #tpu.memory_space<vmem>>, vector<16x1xf32>
    %612 = vector.broadcast %611 : vector<16x1xf32> to vector<16x256xf32>
    %613 = arith.addf %610, %612 : vector<16x256xf32>
    %cst_451 = arith.constant 0.000000e+00 : f32
    %614 = vector.broadcast %cst_451 : f32 to vector<16x256xf32>
    %615 = arith.maximumf %613, %614 : vector<16x256xf32>
    %616 = arith.addf %615, %59 : vector<16x256xf32>
    %617 = vector.extract_strided_slice %616 {offsets = [0, 0], sizes = [4, 256], strides = [1, 1]} : vector<16x256xf32> to vector<4x256xf32>
    %c0_452 = arith.constant 0 : index
    %c0_453 = arith.constant 0 : index
    %c0_454 = arith.constant 0 : index
    %618 = vector.load %arg19[%c0_452, %c0_453, %c0_454] : memref<1x4x256xf32, #tpu.memory_space<vmem>>, vector<1x4x256xf32>
    %619 = vector.shape_cast %618 : vector<1x4x256xf32> to vector<4x256xf32>
    %620 = vector.shape_cast %617 : vector<4x256xf32> to vector<1x4x256xf32>
    tpu.vector_store %arg19[%c0_452, %c0_453, %c0_454], %620 {strides = array<i32>} : memref<1x4x256xf32, #tpu.memory_space<vmem>>, vector<1x4x256xf32>,
    return
  }
  func.func @transform_0(%arg0: i32) -> (i32, i32, i32) {
    %c0_i32 = arith.constant 0 : i32
    %c0_i32_0 = arith.constant 0 : i32
    %c0_i32_1 = arith.constant 0 : i32
    return %arg0, %c0_i32, %c0_i32_0 : i32, i32, i32
  }
  func.func @transform_1(%arg0: i32) -> (i32, i32) {
    %c0_i32 = arith.constant 0 : i32
    %c0_i32_0 = arith.constant 0 : i32
    %c0_i32_1 = arith.constant 0 : i32
    return %c0_i32, %c0_i32_0 : i32, i32
  }
  func.func @transform_2(%arg0: i32) -> (i32, i32) {
    %c0_i32 = arith.constant 0 : i32
    %c0_i32_0 = arith.constant 0 : i32
    %c0_i32_1 = arith.constant 0 : i32
    return %c0_i32, %c0_i32_0 : i32, i32
  }
  func.func @transform_3(%arg0: i32) -> (i32, i32) {
    %c0_i32 = arith.constant 0 : i32
    %c0_i32_0 = arith.constant 0 : i32
    %c0_i32_1 = arith.constant 0 : i32
    return %c0_i32, %c0_i32_0 : i32, i32
  }
  func.func @transform_4(%arg0: i32) -> (i32, i32) {
    %c0_i32 = arith.constant 0 : i32
    %c0_i32_0 = arith.constant 0 : i32
    %c0_i32_1 = arith.constant 0 : i32
    return %c0_i32, %c0_i32_0 : i32, i32
  }
  func.func @transform_5(%arg0: i32) -> (i32, i32) {
    %c0_i32 = arith.constant 0 : i32
    %c0_i32_0 = arith.constant 0 : i32
    %c0_i32_1 = arith.constant 0 : i32
    return %c0_i32, %c0_i32_0 : i32, i32
  }
  func.func @transform_6(%arg0: i32) -> (i32, i32) {
    %c0_i32 = arith.constant 0 : i32
    %c0_i32_0 = arith.constant 0 : i32
    %c0_i32_1 = arith.constant 0 : i32
    return %c0_i32, %c0_i32_0 : i32, i32
  }
  func.func @transform_7(%arg0: i32) -> (i32, i32) {
    %c0_i32 = arith.constant 0 : i32
    %c0_i32_0 = arith.constant 0 : i32
    %c0_i32_1 = arith.constant 0 : i32
    return %c0_i32, %c0_i32_0 : i32, i32
  }
  func.func @transform_8(%arg0: i32) -> (i32, i32) {
    %c0_i32 = arith.constant 0 : i32
    %c0_i32_0 = arith.constant 0 : i32
    %c0_i32_1 = arith.constant 0 : i32
    return %c0_i32, %c0_i32_0 : i32, i32
  }
  func.func @transform_9(%arg0: i32) -> (i32, i32) {
    %c0_i32 = arith.constant 0 : i32
    %c0_i32_0 = arith.constant 0 : i32
    %c0_i32_1 = arith.constant 0 : i32
    return %c0_i32, %c0_i32_0 : i32, i32
  }
  func.func @transform_10(%arg0: i32) -> (i32, i32) {
    %c0_i32 = arith.constant 0 : i32
    %c0_i32_0 = arith.constant 0 : i32
    %c0_i32_1 = arith.constant 0 : i32
    return %c0_i32, %c0_i32_0 : i32, i32
  }
  func.func @transform_11(%arg0: i32) -> (i32, i32) {
    %c0_i32 = arith.constant 0 : i32
    %c0_i32_0 = arith.constant 0 : i32
    %c0_i32_1 = arith.constant 0 : i32
    return %c0_i32, %c0_i32_0 : i32, i32
  }
  func.func @transform_12(%arg0: i32) -> (i32, i32) {
    %c0_i32 = arith.constant 0 : i32
    %c0_i32_0 = arith.constant 0 : i32
    %c0_i32_1 = arith.constant 0 : i32
    return %c0_i32, %c0_i32_0 : i32, i32
  }
  func.func @transform_13(%arg0: i32) -> (i32, i32) {
    %c0_i32 = arith.constant 0 : i32
    %c0_i32_0 = arith.constant 0 : i32
    %c0_i32_1 = arith.constant 0 : i32
    return %c0_i32, %c0_i32_0 : i32, i32
  }
  func.func @transform_14(%arg0: i32) -> (i32, i32) {
    %c0_i32 = arith.constant 0 : i32
    %c0_i32_0 = arith.constant 0 : i32
    %c0_i32_1 = arith.constant 0 : i32
    return %c0_i32, %c0_i32_0 : i32, i32
  }
  func.func @transform_15(%arg0: i32) -> (i32, i32) {
    %c0_i32 = arith.constant 0 : i32
    %c0_i32_0 = arith.constant 0 : i32
    %c0_i32_1 = arith.constant 0 : i32
    return %c0_i32, %c0_i32_0 : i32, i32
  }
  func.func @transform_16(%arg0: i32) -> (i32, i32) {
    %c0_i32 = arith.constant 0 : i32
    %c0_i32_0 = arith.constant 0 : i32
    %c0_i32_1 = arith.constant 0 : i32
    return %c0_i32, %c0_i32_0 : i32, i32
  }
  func.func @transform_17(%arg0: i32) -> (i32, i32) {
    %c0_i32 = arith.constant 0 : i32
    %c0_i32_0 = arith.constant 0 : i32
    %c0_i32_1 = arith.constant 0 : i32
    return %c0_i32, %c0_i32_0 : i32, i32
  }
  func.func @transform_18(%arg0: i32) -> (i32, i32, i32) {
    %c0_i32 = arith.constant 0 : i32
    %c0_i32_0 = arith.constant 0 : i32
    %c0_i32_1 = arith.constant 0 : i32
    return %arg0, %c0_i32, %c0_i32_0 : i32, i32, i32
  }
}

</mosaic_0001>

<llo_original>
// kernel: rsu4f_forward.1
$region0: #{rsu4f_forward.1}
  #allocation0 [shape = 'u32[]', space=smem, size = 0x4, offset = 0x4, fixed_abs, tag = 'smem constant byte address 0x4 - core index']
  #allocation1 [shape = 'u32[144,128]{1,0:T(1,128)}', space=vmem, size = 0x12000, scoped, tag = 'internal scratch']
  #allocation2 [shape = 'bf16[288,256]{1,0:T(16,128)(2,1)}', space=vmem, size = 0x24000, scoped, tag = 'scratch operand']
  %s0 = inlined_call_operand.vmem [shape: f32[2,16,256], index: 0, kind: input, shape index: {}]
  %s1 = inlined_call_operand.vmem [shape: f32[36,256], index: 1, kind: input, shape index: {}]
  %s2 = inlined_call_operand.vmem [shape: bf16[16,144], index: 2, kind: input, shape index: {}]
  %s3 = inlined_call_operand.vmem [shape: f32[16,1], index: 3, kind: input, shape index: {}]
  %s4 = inlined_call_operand.vmem [shape: bf16[16,144], index: 4, kind: input, shape index: {}]
  %s5 = inlined_call_operand.vmem [shape: f32[16,1], index: 5, kind: input, shape index: {}]
  %s6 = inlined_call_operand.vmem [shape: bf16[16,144], index: 6, kind: input, shape index: {}]
  %s7 = inlined_call_operand.vmem [shape: f32[16,1], index: 7, kind: input, shape index: {}]
  %s8 = inlined_call_operand.vmem [shape: bf16[16,144], index: 8, kind: input, shape index: {}]
  %s9 = inlined_call_operand.vmem [shape: f32[16,1], index: 9, kind: input, shape index: {}]
  %s10 = inlined_call_operand.vmem [shape: bf16[16,144], index: 10, kind: input, shape index: {}]
  %s11 = inlined_call_operand.vmem [shape: f32[16,1], index: 11, kind: input, shape index: {}]
  %s12 = inlined_call_operand.vmem [shape: bf16[16,288], index: 12, kind: input, shape index: {}]
  %s13 = inlined_call_operand.vmem [shape: f32[16,1], index: 13, kind: input, shape index: {}]
  %s14 = inlined_call_operand.vmem [shape: bf16[16,288], index: 14, kind: input, shape index: {}]
  %s15 = inlined_call_operand.vmem [shape: f32[16,1], index: 15, kind: input, shape index: {}]
  %s16 = inlined_call_operand.vmem [shape: bf16[16,288], index: 16, kind: input, shape index: {}]
  %s17 = inlined_call_operand.vmem [shape: f32[16,1], index: 17, kind: input, shape index: {}]
  %s18 = inlined_call_operand.vmem [shape: f32[2,4,256], index: 18, kind: output, shape index: {}]
  %s19 = sld [smem:[#allocation0]]
  $region105: #{rsu4f_forward.1} parent=0
    _
  %s21 = ssub.s32 1, %s19
  %s22 = scalar_select 0, %s21, %s19
  loop: start=0, step=1, limit=4
  $region2: #{rsu4f_forward.1} parent=0 // loop_pre_header
    _
  $region3: #{rsu4f_forward.1} parent=0 // loop_header
    %s24 = sphi 0, %s28
    %p25 = scmp.ge.s32.totalorder %s24, 4
    %s34 = sphi 0, %s36
    %s37 = sphi 0, %s34
    %s38 = sphi 0, %s37
    %s54 = sphi 0, %s38
    %s58 = sphi 0, %s58
    %s60 = sphi 0, %s58
    %s61 = sphi 0, %s60
    %s75 = sphi 0, %s61
    %s79 = sphi 0, %s79
    %s81 = sphi 0, %s79
    %s82 = sphi 0, %s81
    %s96 = sphi 0, %s82
    %s100 = sphi 0, %s100
    %s102 = sphi 0, %s100
    %s103 = sphi 0, %s102
    %s117 = sphi 0, %s103
    %s121 = sphi 0, %s121
    %s123 = sphi 0, %s121
    %s124 = sphi 0, %s123
    %s138 = sphi 0, %s124
    %s142 = sphi 0, %s142
    %s144 = sphi 0, %s142
    %s145 = sphi 0, %s144
    %s159 = sphi 0, %s145
    %s163 = sphi 0, %s163
    %s165 = sphi 0, %s163
    %s166 = sphi 0, %s165
    %s180 = sphi 0, %s166
    %s184 = sphi 0, %s184
    %s186 = sphi 0, %s184
    %s187 = sphi 0, %s186
    %s201 = sphi 0, %s187
    %s205 = sphi 0, %s205
    %s207 = sphi 0, %s205
    %s208 = sphi 0, %s207
    %s222 = sphi 0, %s208
    %s226 = sphi 0, %s226
    %s228 = sphi 0, %s226
    %s229 = sphi 0, %s228
    %s243 = sphi 0, %s229
    %s247 = sphi 0, %s247
    %s249 = sphi 0, %s247
    %s250 = sphi 0, %s249
    %s264 = sphi 0, %s250
    %s268 = sphi 0, %s268
    %s270 = sphi 0, %s268
    %s271 = sphi 0, %s270
    %s285 = sphi 0, %s271
    %s289 = sphi 0, %s289
    %s291 = sphi 0, %s289
    %s292 = sphi 0, %s291
    %s306 = sphi 0, %s292
    %s310 = sphi 0, %s310
    %s312 = sphi 0, %s310
    %s313 = sphi 0, %s312
    %s327 = sphi 0, %s313
    %s331 = sphi 0, %s331
    %s333 = sphi 0, %s331
    %s334 = sphi 0, %s333
    %s348 = sphi 0, %s334
    %s352 = sphi 0, %s352
    %s354 = sphi 0, %s352
    %s355 = sphi 0, %s354
    %s369 = sphi 0, %s355
    %s373 = sphi 0, %s373
    %s375 = sphi 0, %s373
    %s376 = sphi 0, %s375
    %s390 = sphi 0, %s376
    %s394 = sphi 0, %s394
    %s396 = sphi 0, %s394
    %s397 = sphi 0, %s396
    %s411 = sphi 0, %s397
    %s417 = sphi 0, %s419
    %s420 = sphi 0, %s417
    %s421 = sphi 0, %s420
    %s437 = sphi 0, %s421
  $region4: #{rsu4f_forward.1} parent=0 // loop_header_branch
    %27 = sbr.rel (%p25) target = $region8
  $region5: #{rsu4f_forward.1} parent=0 // loop_body
    %s29 = ssub.s32 %s24, 1
    %s30 = ssub.s32 %s24, 2
    %s31 = sadd.s32 %s24, 1
    %s32 = ssub.s32 %s24, %s31
    %p33 = scmp.eq.s32.totalorder %s32, 0
    %s35 = sadd.s32 %s34, 1
    %s36 = scalar_select %p33, %s34, %s35
    %p39 = pneg %p33
    %p40 = scmp.eq.s32.totalorder %s24, 1
    %p41 = por %p39, %p40
    %p42 = scmp.ne.s32.totalorder %s34, %s37
    %p43 = scmp.eq.s32.totalorder %s24, 0
    %p44 = por %p42, %p43
    %p45 = scmp.ne.s32.totalorder %s34, %s37
    %p46 = scmp.eq.s32.totalorder %s29, 1
    %p47 = por %p45, %p46
    %p48 = scmp.ne.s32.totalorder %s37, %s38
    %p49 = scmp.eq.s32.totalorder %s29, 0
    %p50 = por %p48, %p49
    %p51 = scmp.ne.s32.totalorder %s37, %s38
    %p52 = scmp.eq.s32.totalorder %s30, 1
    %p53 = por %p51, %p52
    %p55 = scmp.ne.s32.totalorder %s38, %s54
    %p56 = scmp.eq.s32.totalorder %s30, 0
    %p57 = por %p55, %p56
    %s59 = sadd.s32 %s58, 1
    %p62 = scmp.eq.s32.totalorder %s24, 1
    %p63 = scmp.ne.s32.totalorder %s58, %s60
    %p64 = scmp.eq.s32.totalorder %s24, 0
    %p65 = por %p63, %p64
    %p66 = scmp.ne.s32.totalorder %s58, %s60
    %p67 = scmp.eq.s32.totalorder %s29, 1
    %p68 = por %p66, %p67
    %p69 = scmp.ne.s32.totalorder %s60, %s61
    %p70 = scmp.eq.s32.totalorder %s29, 0
    %p71 = por %p69, %p70
    %p72 = scmp.ne.s32.totalorder %s60, %s61
    %p73 = scmp.eq.s32.totalorder %s30, 1
    %p74 = por %p72, %p73
    %p76 = scmp.ne.s32.totalorder %s61, %s75
    %p77 = scmp.eq.s32.totalorder %s30, 0
    %p78 = por %p76, %p77
    %s80 = sadd.s32 %s79, 1
    %p83 = scmp.eq.s32.totalorder %s24, 1
    %p84 = scmp.ne.s32.totalorder %s79, %s81
    %p85 = scmp.eq.s32.totalorder %s24, 0
    %p86 = por %p84, %p85
    %p87 = scmp.ne.s32.totalorder %s79, %s81
    %p88 = scmp.eq.s32.totalorder %s29, 1
    %p89 = por %p87, %p88
    %p90 = scmp.ne.s32.totalorder %s81, %s82
    %p91 = scmp.eq.s32.totalorder %s29, 0
    %p92 = por %p90, %p91
    %p93 = scmp.ne.s32.totalorder %s81, %s82
    %p94 = scmp.eq.s32.totalorder %s30, 1
    %p95 = por %p93, %p94
    %p97 = scmp.ne.s32.totalorder %s82, %s96
    %p98 = scmp.eq.s32.totalorder %s30, 0
    %p99 = por %p97, %p98
    %s101 = sadd.s32 %s100, 1
    %p104 = scmp.eq.s32.totalorder %s24, 1
    %p105 = scmp.ne.s32.totalorder %s100, %s102
    %p106 = scmp.eq.s32.totalorder %s24, 0
    %p107 = por %p105, %p106
    %p108 = scmp.ne.s32.totalorder %s100, %s102
    %p109 = scmp.eq.s32.totalorder %s29, 1
    %p110 = por %p108, %p109
    %p111 = scmp.ne.s32.totalorder %s102, %s103
    %p112 = scmp.eq.s32.totalorder %s29, 0
    %p113 = por %p111, %p112
    %p114 = scmp.ne.s32.totalorder %s102, %s103
    %p115 = scmp.eq.s32.totalorder %s30, 1
    %p116 = por %p114, %p115
    %p118 = scmp.ne.s32.totalorder %s103, %s117
    %p119 = scmp.eq.s32.totalorder %s30, 0
    %p120 = por %p118, %p119
    %s122 = sadd.s32 %s121, 1
    %p125 = scmp.eq.s32.totalorder %s24, 1
    %p126 = scmp.ne.s32.totalorder %s121, %s123
    %p127 = scmp.eq.s32.totalorder %s24, 0
    %p128 = por %p126, %p127
    %p129 = scmp.ne.s32.totalorder %s121, %s123
    %p130 = scmp.eq.s32.totalorder %s29, 1
    %p131 = por %p129, %p130
    %p132 = scmp.ne.s32.totalorder %s123, %s124
    %p133 = scmp.eq.s32.totalorder %s29, 0
    %p134 = por %p132, %p133
    %p135 = scmp.ne.s32.totalorder %s123, %s124
    %p136 = scmp.eq.s32.totalorder %s30, 1
    %p137 = por %p135, %p136
    %p139 = scmp.ne.s32.totalorder %s124, %s138
    %p140 = scmp.eq.s32.totalorder %s30, 0
    %p141 = por %p139, %p140
    %s143 = sadd.s32 %s142, 1
    %p146 = scmp.eq.s32.totalorder %s24, 1
    %p147 = scmp.ne.s32.totalorder %s142, %s144
    %p148 = scmp.eq.s32.totalorder %s24, 0
    %p149 = por %p147, %p148
    %p150 = scmp.ne.s32.totalorder %s142, %s144
    %p151 = scmp.eq.s32.totalorder %s29, 1
    %p152 = por %p150, %p151
    %p153 = scmp.ne.s32.totalorder %s144, %s145
    %p154 = scmp.eq.s32.totalorder %s29, 0
    %p155 = por %p153, %p154
    %p156 = scmp.ne.s32.totalorder %s144, %s145
    %p157 = scmp.eq.s32.totalorder %s30, 1
    %p158 = por %p156, %p157
    %p160 = scmp.ne.s32.totalorder %s145, %s159
    %p161 = scmp.eq.s32.totalorder %s30, 0
    %p162 = por %p160, %p161
    %s164 = sadd.s32 %s163, 1
    %p167 = scmp.eq.s32.totalorder %s24, 1
    %p168 = scmp.ne.s32.totalorder %s163, %s165
    %p169 = scmp.eq.s32.totalorder %s24, 0
    %p170 = por %p168, %p169
    %p171 = scmp.ne.s32.totalorder %s163, %s165
    %p172 = scmp.eq.s32.totalorder %s29, 1
    %p173 = por %p171, %p172
    %p174 = scmp.ne.s32.totalorder %s165, %s166
    %p175 = scmp.eq.s32.totalorder %s29, 0
    %p176 = por %p174, %p175
    %p177 = scmp.ne.s32.totalorder %s165, %s166
    %p178 = scmp.eq.s32.totalorder %s30, 1
    %p179 = por %p177, %p178
    %p181 = scmp.ne.s32.totalorder %s166, %s180
    %p182 = scmp.eq.s32.totalorder %s30, 0
    %p183 = por %p181, %p182
    %s185 = sadd.s32 %s184, 1
    %p188 = scmp.eq.s32.totalorder %s24, 1
    %p189 = scmp.ne.s32.totalorder %s184, %s186
    %p190 = scmp.eq.s32.totalorder %s24, 0
    %p191 = por %p189, %p190
    %p192 = scmp.ne.s32.totalorder %s184, %s186
    %p193 = scmp.eq.s32.totalorder %s29, 1
    %p194 = por %p192, %p193
    %p195 = scmp.ne.s32.totalorder %s186, %s187
    %p196 = scmp.eq.s32.totalorder %s29, 0
    %p197 = por %p195, %p196
    %p198 = scmp.ne.s32.totalorder %s186, %s187
    %p199 = scmp.eq.s32.totalorder %s30, 1
    %p200 = por %p198, %p199
    %p202 = scmp.ne.s32.totalorder %s187, %s201
    %p203 = scmp.eq.s32.totalorder %s30, 0
    %p204 = por %p202, %p203
    %s206 = sadd.s32 %s205, 1
    %p209 = scmp.eq.s32.totalorder %s24, 1
    %p210 = scmp.ne.s32.totalorder %s205, %s207
    %p211 = scmp.eq.s32.totalorder %s24, 0
    %p212 = por %p210, %p211
    %p213 = scmp.ne.s32.totalorder %s205, %s207
    %p214 = scmp.eq.s32.totalorder %s29, 1
    %p215 = por %p213, %p214
    %p216 = scmp.ne.s32.totalorder %s207, %s208
    %p217 = scmp.eq.s32.totalorder %s29, 0
    %p218 = por %p216, %p217
    %p219 = scmp.ne.s32.totalorder %s207, %s208
    %p220 = scmp.eq.s32.totalorder %s30, 1
    %p221 = por %p219, %p220
    %p223 = scmp.ne.s32.totalorder %s208, %s222
    %p224 = scmp.eq.s32.totalorder %s30, 0
    %p225 = por %p223, %p224
    %s227 = sadd.s32 %s226, 1
    %p230 = scmp.eq.s32.totalorder %s24, 1
    %p231 = scmp.ne.s32.totalorder %s226, %s228
    %p232 = scmp.eq.s32.totalorder %s24, 0
    %p233 = por %p231, %p232
    %p234 = scmp.ne.s32.totalorder %s226, %s228
    %p235 = scmp.eq.s32.totalorder %s29, 1
    %p236 = por %p234, %p235
    %p237 = scmp.ne.s32.totalorder %s228, %s229
    %p238 = scmp.eq.s32.totalorder %s29, 0
    %p239 = por %p237, %p238
    %p240 = scmp.ne.s32.totalorder %s228, %s229
    %p241 = scmp.eq.s32.totalorder %s30, 1
    %p242 = por %p240, %p241
    %p244 = scmp.ne.s32.totalorder %s229, %s243
    %p245 = scmp.eq.s32.totalorder %s30, 0
    %p246 = por %p244, %p245
    %s248 = sadd.s32 %s247, 1
    %p251 = scmp.eq.s32.totalorder %s24, 1
    %p252 = scmp.ne.s32.totalorder %s247, %s249
    %p253 = scmp.eq.s32.totalorder %s24, 0
    %p254 = por %p252, %p253
    %p255 = scmp.ne.s32.totalorder %s247, %s249
    %p256 = scmp.eq.s32.totalorder %s29, 1
    %p257 = por %p255, %p256
    %p258 = scmp.ne.s32.totalorder %s249, %s250
    %p259 = scmp.eq.s32.totalorder %s29, 0
    %p260 = por %p258, %p259
    %p261 = scmp.ne.s32.totalorder %s249, %s250
    %p262 = scmp.eq.s32.totalorder %s30, 1
    %p263 = por %p261, %p262
    %p265 = scmp.ne.s32.totalorder %s250, %s264
    %p266 = scmp.eq.s32.totalorder %s30, 0
    %p267 = por %p265, %p266
    %s269 = sadd.s32 %s268, 1
    %p272 = scmp.eq.s32.totalorder %s24, 1
    %p273 = scmp.ne.s32.totalorder %s268, %s270
    %p274 = scmp.eq.s32.totalorder %s24, 0
    %p275 = por %p273, %p274
    %p276 = scmp.ne.s32.totalorder %s268, %s270
    %p277 = scmp.eq.s32.totalorder %s29, 1
    %p278 = por %p276, %p277
    %p279 = scmp.ne.s32.totalorder %s270, %s271
    %p280 = scmp.eq.s32.totalorder %s29, 0
    %p281 = por %p279, %p280
    %p282 = scmp.ne.s32.totalorder %s270, %s271
    %p283 = scmp.eq.s32.totalorder %s30, 1
    %p284 = por %p282, %p283
    %p286 = scmp.ne.s32.totalorder %s271, %s285
    %p287 = scmp.eq.s32.totalorder %s30, 0
    %p288 = por %p286, %p287
    %s290 = sadd.s32 %s289, 1
    %p293 = scmp.eq.s32.totalorder %s24, 1
    %p294 = scmp.ne.s32.totalorder %s289, %s291
    %p295 = scmp.eq.s32.totalorder %s24, 0
    %p296 = por %p294, %p295
    %p297 = scmp.ne.s32.totalorder %s289, %s291
    %p298 = scmp.eq.s32.totalorder %s29, 1
    %p299 = por %p297, %p298
    %p300 = scmp.ne.s32.totalorder %s291, %s292
    %p301 = scmp.eq.s32.totalorder %s29, 0
    %p302 = por %p300, %p301
    %p303 = scmp.ne.s32.totalorder %s291, %s292
    %p304 = scmp.eq.s32.totalorder %s30, 1
    %p305 = por %p303, %p304
    %p307 = scmp.ne.s32.totalorder %s292, %s306
    %p308 = scmp.eq.s32.totalorder %s30, 0
    %p309 = por %p307, %p308
    %s311 = sadd.s32 %s310, 1
    %p314 = scmp.eq.s32.totalorder %s24, 1
    %p315 = scmp.ne.s32.totalorder %s310, %s312
    %p316 = scmp.eq.s32.totalorder %s24, 0
    %p317 = por %p315, %p316
    %p318 = scmp.ne.s32.totalorder %s310, %s312
    %p319 = scmp.eq.s32.totalorder %s29, 1
    %p320 = por %p318, %p319
    %p321 = scmp.ne.s32.totalorder %s312, %s313
    %p322 = scmp.eq.s32.totalorder %s29, 0
    %p323 = por %p321, %p322
    %p324 = scmp.ne.s32.totalorder %s312, %s313
    %p325 = scmp.eq.s32.totalorder %s30, 1
    %p326 = por %p324, %p325
    %p328 = scmp.ne.s32.totalorder %s313, %s327
    %p329 = scmp.eq.s32.totalorder %s30, 0
    %p330 = por %p328, %p329
    %s332 = sadd.s32 %s331, 1
    %p335 = scmp.eq.s32.totalorder %s24, 1
    %p336 = scmp.ne.s32.totalorder %s331, %s333
    %p337 = scmp.eq.s32.totalorder %s24, 0
    %p338 = por %p336, %p337
    %p339 = scmp.ne.s32.totalorder %s331, %s333
    %p340 = scmp.eq.s32.totalorder %s29, 1
    %p341 = por %p339, %p340
    %p342 = scmp.ne.s32.totalorder %s333, %s334
    %p343 = scmp.eq.s32.totalorder %s29, 0
    %p344 = por %p342, %p343
    %p345 = scmp.ne.s32.totalorder %s333, %s334
    %p346 = scmp.eq.s32.totalorder %s30, 1
    %p347 = por %p345, %p346
    %p349 = scmp.ne.s32.totalorder %s334, %s348
    %p350 = scmp.eq.s32.totalorder %s30, 0
    %p351 = por %p349, %p350
    %s353 = sadd.s32 %s352, 1
    %p356 = scmp.eq.s32.totalorder %s24, 1
    %p357 = scmp.ne.s32.totalorder %s352, %s354
    %p358 = scmp.eq.s32.totalorder %s24, 0
    %p359 = por %p357, %p358
    %p360 = scmp.ne.s32.totalorder %s352, %s354
    %p361 = scmp.eq.s32.totalorder %s29, 1
    %p362 = por %p360, %p361
    %p363 = scmp.ne.s32.totalorder %s354, %s355
    %p364 = scmp.eq.s32.totalorder %s29, 0
    %p365 = por %p363, %p364
    %p366 = scmp.ne.s32.totalorder %s354, %s355
    %p367 = scmp.eq.s32.totalorder %s30, 1
    %p368 = por %p366, %p367
    %p370 = scmp.ne.s32.totalorder %s355, %s369
    %p371 = scmp.eq.s32.totalorder %s30, 0
    %p372 = por %p370, %p371
    %s374 = sadd.s32 %s373, 1
    %p377 = scmp.eq.s32.totalorder %s24, 1
    %p378 = scmp.ne.s32.totalorder %s373, %s375
    %p379 = scmp.eq.s32.totalorder %s24, 0
    %p380 = por %p378, %p379
    %p381 = scmp.ne.s32.totalorder %s373, %s375
    %p382 = scmp.eq.s32.totalorder %s29, 1
    %p383 = por %p381, %p382
    %p384 = scmp.ne.s32.totalorder %s375, %s376
    %p385 = scmp.eq.s32.totalorder %s29, 0
    %p386 = por %p384, %p385
    %p387 = scmp.ne.s32.totalorder %s375, %s376
    %p388 = scmp.eq.s32.totalorder %s30, 1
    %p389 = por %p387, %p388
    %p391 = scmp.ne.s32.totalorder %s376, %s390
    %p392 = scmp.eq.s32.totalorder %s30, 0
    %p393 = por %p391, %p392
    %s395 = sadd.s32 %s394, 1
    %p398 = scmp.eq.s32.totalorder %s24, 1
    %p399 = scmp.ne.s32.totalorder %s394, %s396
    %p400 = scmp.eq.s32.totalorder %s24, 0
    %p401 = por %p399, %p400
    %p402 = scmp.ne.s32.totalorder %s394, %s396
    %p403 = scmp.eq.s32.totalorder %s29, 1
    %p404 = por %p402, %p403
    %p405 = scmp.ne.s32.totalorder %s396, %s397
    %p406 = scmp.eq.s32.totalorder %s29, 0
    %p407 = por %p405, %p406
    %p408 = scmp.ne.s32.totalorder %s396, %s397
    %p409 = scmp.eq.s32.totalorder %s30, 1
    %p410 = por %p408, %p409
    %p412 = scmp.ne.s32.totalorder %s397, %s411
    %p413 = scmp.eq.s32.totalorder %s30, 0
    %p414 = por %p412, %p413
    %s415 = ssub.s32 %s24, %s31
    %p416 = scmp.eq.s32.totalorder %s415, 0
    %s418 = sadd.s32 %s417, 1
    %s419 = scalar_select %p416, %s417, %s418
    %p422 = pneg %p416
    %p423 = scmp.eq.s32.totalorder %s24, 1
    %p424 = por %p422, %p423
    %p425 = scmp.ne.s32.totalorder %s417, %s420
    %p426 = scmp.eq.s32.totalorder %s24, 0
    %p427 = por %p425, %p426
    %p428 = scmp.ne.s32.totalorder %s417, %s420
    %p429 = scmp.eq.s32.totalorder %s29, 1
    %p430 = por %p428, %p429
    %p431 = scmp.ne.s32.totalorder %s420, %s421
    %p432 = scmp.eq.s32.totalorder %s29, 0
    %p433 = por %p431, %p432
    %p434 = scmp.ne.s32.totalorder %s420, %s421
    %p435 = scmp.eq.s32.totalorder %s30, 1
    %p436 = por %p434, %p435
    %p438 = scmp.ne.s32.totalorder %s421, %s437
    %p439 = scmp.eq.s32.totalorder %s30, 0
    %p440 = por %p438, %p439
    %p441 = scmp.le.s32.totalorder 1, %s24
    %p442 = scmp.lt.s32.totalorder %s24, 3
    %p443 = pnand %p441, %p442
    %p444 = pneg %p443
    // Predicated region
    $region9: #{rsu4f_forward.1} parent=5 // pred_check
      _
    $region10: #{rsu4f_forward.1} parent=5 // pred_check_branch
      %446 = sbr.rel (%p443) target = $region12
    $region11: #{rsu4f_forward.1} parent=5 // pred_region
      %s447 = ssub.s32 %s24, 1
      // Predicated region
      $region13: #{rsu4f_forward.1} parent=11 // pred_check
        %p448 = pneg %p71
      $region14: #{rsu4f_forward.1} parent=11 // pred_check_branch
        %450 = sbr.rel (%p448) target = $region16
      $region15: #{rsu4f_forward.1} parent=11 // pred_region
        _
      $region16: #{rsu4f_forward.1} parent=11 // pred_fallthru
        _
      // Predicated region
      $region17: #{rsu4f_forward.1} parent=11 // pred_check
        %p451 = pneg %p92
      $region18: #{rsu4f_forward.1} parent=11 // pred_check_branch
        %453 = sbr.rel (%p451) target = $region20
      $region19: #{rsu4f_forward.1} parent=11 // pred_region
        _
      $region20: #{rsu4f_forward.1} parent=11 // pred_fallthru
        _
      // Predicated region
      $region21: #{rsu4f_forward.1} parent=11 // pred_check
        %p454 = pneg %p113
      $region22: #{rsu4f_forward.1} parent=11 // pred_check_branch
        %456 = sbr.rel (%p454) target = $region24
      $region23: #{rsu4f_forward.1} parent=11 // pred_region
        _
      $region24: #{rsu4f_forward.1} parent=11 // pred_fallthru
        _
      // Predicated region
      $region25: #{rsu4f_forward.1} parent=11 // pred_check
        %p457 = pneg %p134
      $region26: #{rsu4f_forward.1} parent=11 // pred_check_branch
        %459 = sbr.rel (%p457) target = $region28
      $region27: #{rsu4f_forward.1} parent=11 // pred_region
        _
      $region28: #{rsu4f_forward.1} parent=11 // pred_fallthru
        _
      // Predicated region
      $region29: #{rsu4f_forward.1} parent=11 // pred_check
        %p460 = pneg %p155
      $region30: #{rsu4f_forward.1} parent=11 // pred_check_branch
        %462 = sbr.rel (%p460) target = $region32
      $region31: #{rsu4f_forward.1} parent=11 // pred_region
        _
      $region32: #{rsu4f_forward.1} parent=11 // pred_fallthru
        _
      // Predicated region
      $region33: #{rsu4f_forward.1} parent=11 // pred_check
        %p463 = pneg %p176
      $region34: #{rsu4f_forward.1} parent=11 // pred_check_branch
        %465 = sbr.rel (%p463) target = $region36
      $region35: #{rsu4f_forward.1} parent=11 // pred_region
        _
      $region36: #{rsu4f_forward.1} parent=11 // pred_fallthru
        _
      // Predicated region
      $region37: #{rsu4f_forward.1} parent=11 // pred_check
        %p466 = pneg %p197
      $region38: #{rsu4f_forward.1} parent=11 // pred_check_branch
        %468 = sbr.rel (%p466) target = $region40
      $region39: #{rsu4f_forward.1} parent=11 // pred_region
        _
      $region40: #{rsu4f_forward.1} parent=11 // pred_fallthru
        _
      // Predicated region
      $region41: #{rsu4f_forward.1} parent=11 // pred_check
        %p469 = pneg %p218
      $region42: #{rsu4f_forward.1} parent=11 // pred_check_branch
        %471 = sbr.rel (%p469) target = $region44
      $region43: #{rsu4f_forward.1} parent=11 // pred_region
        _
      $region44: #{rsu4f_forward.1} parent=11 // pred_fallthru
        _
      // Predicated region
      $region45: #{rsu4f_forward.1} parent=11 // pred_check
        %p472 = pneg %p239
      $region46: #{rsu4f_forward.1} parent=11 // pred_check_branch
        %474 = sbr.rel (%p472) target = $region48
      $region47: #{rsu4f_forward.1} parent=11 // pred_region
        _
      $region48: #{rsu4f_forward.1} parent=11 // pred_fallthru
        _
      // Predicated region
      $region49: #{rsu4f_forward.1} parent=11 // pred_check
        %p475 = pneg %p260
      $region50: #{rsu4f_forward.1} parent=11 // pred_check_branch
        %477 = sbr.rel (%p475) target = $region52
      $region51: #{rsu4f_forward.1} parent=11 // pred_region
        _
      $region52: #{rsu4f_forward.1} parent=11 // pred_fallthru
        _
      // Predicated region
      $region53: #{rsu4f_forward.1} parent=11 // pred_check
        %p478 = pneg %p281
      $region54: #{rsu4f_forward.1} parent=11 // pred_check_branch
        %480 = sbr.rel (%p478) target = $region56
      $region55: #{rsu4f_forward.1} parent=11 // pred_region
        _
      $region56: #{rsu4f_forward.1} parent=11 // pred_fallthru
        _
      // Predicated region
      $region57: #{rsu4f_forward.1} parent=11 // pred_check
        %p481 = pneg %p302
      $region58: #{rsu4f_forward.1} parent=11 // pred_check_branch
        %483 = sbr.rel (%p481) target = $region60
      $region59: #{rsu4f_forward.1} parent=11 // pred_region
        _
      $region60: #{rsu4f_forward.1} parent=11 // pred_fallthru
        _
      // Predicated region
      $region61: #{rsu4f_forward.1} parent=11 // pred_check
        %p484 = pneg %p323
      $region62: #{rsu4f_forward.1} parent=11 // pred_check_branch
        %486 = sbr.rel (%p484) target = $region64
      $region63: #{rsu4f_forward.1} parent=11 // pred_region
        _
      $region64: #{rsu4f_forward.1} parent=11 // pred_fallthru
        _
      // Predicated region
      $region65: #{rsu4f_forward.1} parent=11 // pred_check
        %p487 = pneg %p344
      $region66: #{rsu4f_forward.1} parent=11 // pred_check_branch
        %489 = sbr.rel (%p487) target = $region68
      $region67: #{rsu4f_forward.1} parent=11 // pred_region
        _
      $region68: #{rsu4f_forward.1} parent=11 // pred_fallthru
        _
      // Predicated region
      $region69: #{rsu4f_forward.1} parent=11 // pred_check
        %p490 = pneg %p365
      $region70: #{rsu4f_forward.1} parent=11 // pred_check_branch
        %492 = sbr.rel (%p490) target = $region72
      $region71: #{rsu4f_forward.1} parent=11 // pred_region
        _
      $region72: #{rsu4f_forward.1} parent=11 // pred_fallthru
        _
      // Predicated region
      $region73: #{rsu4f_forward.1} parent=11 // pred_check
        %p493 = pneg %p386
      $region74: #{rsu4f_forward.1} parent=11 // pred_check_branch
        %495 = sbr.rel (%p493) target = $region76
      $region75: #{rsu4f_forward.1} parent=11 // pred_region
        _
      $region76: #{rsu4f_forward.1} parent=11 // pred_fallthru
        _
      // Predicated region
      $region77: #{rsu4f_forward.1} parent=11 // pred_check
        %p496 = pneg %p407
      $region78: #{rsu4f_forward.1} parent=11 // pred_check_branch
        %498 = sbr.rel (%p496) target = $region80
      $region79: #{rsu4f_forward.1} parent=11 // pred_region
        _
      $region80: #{rsu4f_forward.1} parent=11 // pred_fallthru
        _
    $region12: #{rsu4f_forward.1} parent=5 // pred_fallthru
      _
    %p499 = scmp.lt.s32.totalorder %s24, 2
    // Predicated region
    $region81: #{rsu4f_forward.1} parent=5 // pred_check
      %p500 = pneg %p499
    $region82: #{rsu4f_forward.1} parent=5 // pred_check_branch
      %502 = sbr.rel (%p500) target = $region84
    $region83: #{rsu4f_forward.1} parent=5 // pred_region
      // Predicated region
      $region85: #{rsu4f_forward.1} parent=83 // pred_check
        %p503 = pneg %p44
      $region86: #{rsu4f_forward.1} parent=83 // pred_check_branch
        %505 = sbr.rel (%p503) target = $region88
      $region87: #{rsu4f_forward.1} parent=83 // pred_region
        %p506 = scmp.lt.s32.totalorder %s24, 1
        %s507 = scalar_select %p506, %s24, 1
        %s508 = smul.addr %s507, 4
        %s509 = smul.addr %s508, 8
        %s510 = scalar_lea.vmem %s0, %s509
      $region88: #{rsu4f_forward.1} parent=83 // pred_fallthru
        _
    $region84: #{rsu4f_forward.1} parent=5 // pred_fallthru
      _
    %p511 = scmp.le.s32.totalorder 1, %s24
    %p512 = scmp.lt.s32.totalorder %s24, 3
    %p513 = pnand %p511, %p512
    %p514 = pneg %p513
    // Predicated region
    $region89: #{rsu4f_forward.1} parent=5 // pred_check
      _
    $region90: #{rsu4f_forward.1} parent=5 // pred_check_branch
      %516 = sbr.rel (%p513) target = $region92
    $region91: #{rsu4f_forward.1} parent=5 // pred_region
      %s517 = ssub.s32 %s24, 1
      %p518 = scmp.lt.s32.totalorder %s29, 1
      %s519 = scalar_select %p518, %s29, 1
      %s520 = smul.addr %s519, 4
      %s521 = smul.addr %s520, 8
      %s522 = scalar_lea.vmem %s0, %s521
      %p523 = pneg %p50
      %p524 = pneg %p47
      %p525 = pneg %p71
      %p526 = pneg %p68
      %p527 = pneg %p92
      %p528 = pneg %p89
      %p529 = pneg %p113
      %p530 = pneg %p110
      %p531 = pneg %p134
      %p532 = pneg %p131
      %p533 = pneg %p155
      %p534 = pneg %p152
      %p535 = pneg %p176
      %p536 = pneg %p173
      %p537 = pneg %p197
      %p538 = pneg %p194
      %p539 = pneg %p218
      %p540 = pneg %p215
      %p541 = pneg %p239
      %p542 = pneg %p236
      %p543 = pneg %p260
      %p544 = pneg %p257
      %p545 = pneg %p281
      %p546 = pneg %p278
      %p547 = pneg %p302
      %p548 = pneg %p299
      %p549 = pneg %p323
      %p550 = pneg %p320
      %p551 = pneg %p344
      %p552 = pneg %p341
      %p553 = pneg %p365
      %p554 = pneg %p362
      %p555 = pneg %p386
      %p556 = pneg %p383
      %p557 = pneg %p407
      %p558 = pneg %p404
      %p559 = pneg %p433
      %p560 = pneg %p430
      %p561 = scmp.lt.s32.totalorder %s29, 1
      %s562 = scalar_select %p561, %s29, 1
      %s563 = smul.addr %s562, 2
      %s564 = smul.addr %s563, 4
      %s565 = scalar_lea.vmem %s18, %s564
      %p566 = scmp.lt.s32.totalorder %s29, 1
      %s567 = scalar_select %p566, %s29, 1
      %s568 = smul.addr %s567, 4
      %s569 = smul.addr %s568, 8
      %s570 = scalar_lea.vmem %s0, %s569
      %p571 = scmp.lt.s32.totalorder %s29, 1
      %s572 = scalar_select %p571, %s29, 1
      %s573 = smul.addr %s572, 2
      %s574 = smul.addr %s573, 4
      %s575 = scalar_lea.vmem %s18, %s574
      %v577 = vld [vmem:[%s570] sm:$0xff]
      %v578 = vld [vmem:[%s570 + $0x8] sm:$0xff]
      %v579 = vld [vmem:[%s570 + $0x10] sm:$0xff]
      %v580 = vld [vmem:[%s570 + $0x18] sm:$0xff]
      %581 = vrot.lane.b32.xlu0 %v577, 17
      %v582 = vpop.permute.xlu0 %581
      %583 = vrot.lane.b32.xlu0 %v579, 17
      %v584 = vpop.permute.xlu0 %583
      %585 = vrot.lane.b32.xlu0 %v578, 17
      %v586 = vpop.permute.xlu0 %585
      %587 = vrot.lane.b32.xlu0 %v580, 17
      %v588 = vpop.permute.xlu0 %587
      %v589 = vlaneseq
      %v590 = vand.u32 %v589, 127
      %vm591 = vcmp.lt.s32.totalorder %v590, 17
      %v592 = vsel %vm591, %v582, %v586
      %v593 = vsel %vm591, %v584, %v588
      %v594 = vsel %vm591, %v586, %v582
      %v595 = vsel %vm591, %v588, %v584
      %v596 = vld [vmem:[%s1] ss:$8 sm:$0x3]
      %v598 = vlaneseq
      %v599 = vshrl.u32 %v598, 7
      %v600 = vsub.s32 0, %v599
      %v601 = vrot.slane %v596, %v600
      %v602 = vlaneseq
      %v603 = vshrl.u32 %v602, 7
      %v604 = vsub.s32 1, %v603
      %v605 = vrot.slane %v596, %v604
      %v608 = vmul.f32 %v594, %v601
      %v609 = vmul.f32 %v592, %v605
      %v610 = vmul.f32 %v595, %v601
      %v611 = vmul.f32 %v593, %v605
      %v612 = vpack.c.bf16 %v610, %v608
      %v613 = vpack.c.bf16 %v611, %v609
      %614 = vst [vmem:[#allocation2] sm:$0xff] %v612
      %615 = vst [vmem:[#allocation2 + $0x8] sm:$0xff] %v613
      %616 = vrot.lane.b32.xlu0 %v577, 16
      %v617 = vpop.permute.xlu0 %616
      %618 = vrot.lane.b32.xlu0 %v579, 16
      %v619 = vpop.permute.xlu0 %618
      %620 = vrot.lane.b32.xlu0 %v578, 16
      %v621 = vpop.permute.xlu0 %620
      %622 = vrot.lane.b32.xlu0 %v580, 16
      %v623 = vpop.permute.xlu0 %622
      %vm624 = vcmp.lt.s32.totalorder %v590, 16
      %v625 = vsel %vm624, %v617, %v621
      %v626 = vsel %vm624, %v619, %v623
      %v627 = vsel %vm624, %v621, %v617
      %v628 = vsel %vm624, %v623, %v619
      %s629 = scalar_lea.vmem %s1, 1
      %v630 = vld [vmem:[%s629] ss:$8 sm:$0x3]
      %v632 = vlaneseq
      %v633 = vshrl.u32 %v632, 7
      %v634 = vsub.s32 0, %v633
      %v635 = vrot.slane %v630, %v634
      %v636 = vlaneseq
      %v637 = vshrl.u32 %v636, 7
      %v638 = vsub.s32 1, %v637
      %v639 = vrot.slane %v630, %v638
      %v642 = vmul.f32 %v627, %v635
      %v643 = vmul.f32 %v625, %v639
      %v644 = vmul.f32 %v628, %v635
      %v645 = vmul.f32 %v626, %v639
      %v646 = vpack.c.bf16 %v644, %v642
      %v647 = vpack.c.bf16 %v645, %v643
      %648 = vst [vmem:[#allocation2 + $0x10] sm:$0xff] %v646
      %649 = vst [vmem:[#allocation2 + $0x18] sm:$0xff] %v647
      %650 = vrot.lane.b32.xlu0 %v577, 15
      %v651 = vpop.permute.xlu0 %650
      %652 = vrot.lane.b32.xlu0 %v579, 15
      %v653 = vpop.permute.xlu0 %652
      %654 = vrot.lane.b32.xlu0 %v578, 15
      %v655 = vpop.permute.xlu0 %654
      %656 = vrot.lane.b32.xlu0 %v580, 15
      %v657 = vpop.permute.xlu0 %656
      %vm658 = vcmp.lt.s32.totalorder %v590, 15
      %v659 = vsel %vm658, %v651, %v655
      %v660 = vsel %vm658, %v653, %v657
      %v661 = vsel %vm658, %v655, %v651
      %v662 = vsel %vm658, %v657, %v653
      %s663 = scalar_lea.vmem %s1, 2
      %v664 = vld [vmem:[%s663] ss:$8 sm:$0x3]
      %v666 = vlaneseq
      %v667 = vshrl.u32 %v666, 7
      %v668 = vsub.s32 0, %v667
      %v669 = vrot.slane %v664, %v668
      %v670 = vlaneseq
      %v671 = vshrl.u32 %v670, 7
      %v672 = vsub.s32 1, %v671
      %v673 = vrot.slane %v664, %v672
      %v676 = vmul.f32 %v661, %v669
      %v677 = vmul.f32 %v659, %v673
      %v678 = vmul.f32 %v662, %v669
      %v679 = vmul.f32 %v660, %v673
      %v680 = vpack.c.bf16 %v678, %v676
      %v681 = vpack.c.bf16 %v679, %v677
      %682 = vst [vmem:[#allocation2 + $0x20] sm:$0xff] %v680
      %683 = vst [vmem:[#allocation2 + $0x28] sm:$0xff] %v681
      %684 = vrot.lane.b32.xlu0 %v577, 1
      %v685 = vpop.permute.xlu0 %684
      %686 = vrot.lane.b32.xlu0 %v579, 1
      %v687 = vpop.permute.xlu0 %686
      %688 = vrot.lane.b32.xlu0 %v578, 1
      %v689 = vpop.permute.xlu0 %688
      %690 = vrot.lane.b32.xlu0 %v580, 1
      %v691 = vpop.permute.xlu0 %690
      %vm692 = vcmp.lt.s32.totalorder %v590, 1
      %v693 = vsel %vm692, %v685, %v689
      %v694 = vsel %vm692, %v687, %v691
      %v695 = vsel %vm692, %v689, %v685
      %v696 = vsel %vm692, %v691, %v687
      %s697 = scalar_lea.vmem %s1, 3
      %v698 = vld [vmem:[%s697] ss:$8 sm:$0x3]
      %v700 = vlaneseq
      %v701 = vshrl.u32 %v700, 7
      %v702 = vsub.s32 0, %v701
      %v703 = vrot.slane %v698, %v702
      %v704 = vlaneseq
      %v705 = vshrl.u32 %v704, 7
      %v706 = vsub.s32 1, %v705
      %v707 = vrot.slane %v698, %v706
      %v710 = vmul.f32 %v695, %v703
      %v711 = vmul.f32 %v693, %v707
      %v712 = vmul.f32 %v696, %v703
      %v713 = vmul.f32 %v694, %v707
      %v714 = vpack.c.bf16 %v712, %v710
      %v715 = vpack.c.bf16 %v713, %v711
      %716 = vst [vmem:[#allocation2 + $0x30] sm:$0xff] %v714
      %717 = vst [vmem:[#allocation2 + $0x38] sm:$0xff] %v715
      %v718 = vpack.c.bf16 %v579, %v577
      %v719 = vpack.c.bf16 %v580, %v578
      %720 = vst [vmem:[#allocation2 + $0x40] sm:$0xff] %v718
      %721 = vst [vmem:[#allocation2 + $0x48] sm:$0xff] %v719
      %722 = vrot.lane.b32.xlu0 %v577, 127
      %v723 = vpop.permute.xlu0 %722
      %724 = vrot.lane.b32.xlu0 %v579, 127
      %v725 = vpop.permute.xlu0 %724
      %726 = vrot.lane.b32.xlu0 %v578, 127
      %v727 = vpop.permute.xlu0 %726
      %728 = vrot.lane.b32.xlu0 %v580, 127
      %v729 = vpop.permute.xlu0 %728
      %vm730 = vcmp.lt.s32.totalorder %v590, 127
      %v731 = vsel %vm730, %v723, %v727
      %v732 = vsel %vm730, %v725, %v729
      %v733 = vsel %vm730, %v727, %v723
      %v734 = vsel %vm730, %v729, %v725
      %s735 = scalar_lea.vmem %s1, 5
      %v736 = vld [vmem:[%s735] ss:$8 sm:$0x3]
      %v738 = vlaneseq
      %v739 = vshrl.u32 %v738, 7
      %v740 = vsub.s32 0, %v739
      %v741 = vrot.slane %v736, %v740
      %v742 = vlaneseq
      %v743 = vshrl.u32 %v742, 7
      %v744 = vsub.s32 1, %v743
      %v745 = vrot.slane %v736, %v744
      %v748 = vmul.f32 %v731, %v741
      %v749 = vmul.f32 %v733, %v745
      %v750 = vmul.f32 %v732, %v741
      %v751 = vmul.f32 %v734, %v745
      %v752 = vpack.c.bf16 %v750, %v748
      %v753 = vpack.c.bf16 %v751, %v749
      %754 = vst [vmem:[#allocation2 + $0x50] sm:$0xff] %v752
      %755 = vst [vmem:[#allocation2 + $0x58] sm:$0xff] %v753
      %756 = vrot.lane.b32.xlu0 %v577, 113
      %v757 = vpop.permute.xlu0 %756
      %758 = vrot.lane.b32.xlu0 %v579, 113
      %v759 = vpop.permute.xlu0 %758
      %760 = vrot.lane.b32.xlu0 %v578, 113
      %v761 = vpop.permute.xlu0 %760
      %762 = vrot.lane.b32.xlu0 %v580, 113
      %v763 = vpop.permute.xlu0 %762
      %vm764 = vcmp.lt.s32.totalorder %v590, 113
      %v765 = vsel %vm764, %v757, %v761
      %v766 = vsel %vm764, %v759, %v763
      %v767 = vsel %vm764, %v761, %v757
      %v768 = vsel %vm764, %v763, %v759
      %s769 = scalar_lea.vmem %s1, 6
      %v770 = vld [vmem:[%s769] ss:$8 sm:$0x3]
      %v772 = vlaneseq
      %v773 = vshrl.u32 %v772, 7
      %v774 = vsub.s32 0, %v773
      %v775 = vrot.slane %v770, %v774
      %v776 = vlaneseq
      %v777 = vshrl.u32 %v776, 7
      %v778 = vsub.s32 1, %v777
      %v779 = vrot.slane %v770, %v778
      %v782 = vmul.f32 %v765, %v775
      %v783 = vmul.f32 %v767, %v779
      %v784 = vmul.f32 %v766, %v775
      %v785 = vmul.f32 %v768, %v779
      %v786 = vpack.c.bf16 %v784, %v782
      %v787 = vpack.c.bf16 %v785, %v783
      %788 = vst [vmem:[#allocation2 + $0x60] sm:$0xff] %v786
      %789 = vst [vmem:[#allocation2 + $0x68] sm:$0xff] %v787
      %790 = vrot.lane.b32.xlu0 %v577, 112
      %v791 = vpop.permute.xlu0 %790
      %792 = vrot.lane.b32.xlu0 %v579, 112
      %v793 = vpop.permute.xlu0 %792
      %794 = vrot.lane.b32.xlu0 %v578, 112
      %v795 = vpop.permute.xlu0 %794
      %796 = vrot.lane.b32.xlu0 %v580, 112
      %v797 = vpop.permute.xlu0 %796
      %vm798 = vcmp.lt.s32.totalorder %v590, 112
      %v799 = vsel %vm798, %v791, %v795
      %v800 = vsel %vm798, %v793, %v797
      %v801 = vsel %vm798, %v795, %v791
      %v802 = vsel %vm798, %v797, %v793
      %s803 = scalar_lea.vmem %s1, 7
      %v804 = vld [vmem:[%s803] ss:$8 sm:$0x3]
      %v806 = vlaneseq
      %v807 = vshrl.u32 %v806, 7
      %v808 = vsub.s32 0, %v807
      %v809 = vrot.slane %v804, %v808
      %v810 = vlaneseq
      %v811 = vshrl.u32 %v810, 7
      %v812 = vsub.s32 1, %v811
      %v813 = vrot.slane %v804, %v812
      %v816 = vmul.f32 %v799, %v809
      %v817 = vmul.f32 %v801, %v813
      %v818 = vmul.f32 %v800, %v809
      %v819 = vmul.f32 %v802, %v813
      %v820 = vpack.c.bf16 %v818, %v816
      %v821 = vpack.c.bf16 %v819, %v817
      %822 = vst [vmem:[#allocation2 + $0x70] sm:$0xff] %v820
      %823 = vst [vmem:[#allocation2 + $0x78] sm:$0xff] %v821
      %824 = vrot.lane.b32.xlu0 %v577, 111
      %v825 = vpop.permute.xlu0 %824
      %826 = vrot.lane.b32.xlu0 %v579, 111
      %v827 = vpop.permute.xlu0 %826
      %828 = vrot.lane.b32.xlu0 %v578, 111
      %v829 = vpop.permute.xlu0 %828
      %830 = vrot.lane.b32.xlu0 %v580, 111
      %v831 = vpop.permute.xlu0 %830
      %vm832 = vcmp.lt.s32.totalorder %v590, 111
      %v833 = vsel %vm832, %v825, %v829
      %v834 = vsel %vm832, %v827, %v831
      %v835 = vsel %vm832, %v829, %v825
      %v836 = vsel %vm832, %v831, %v827
      %s837 = scalar_lea.vmem %s1, 16
      %v838 = vld [vmem:[%s837] ss:$8 sm:$0x3]
      %v840 = vlaneseq
      %v841 = vshrl.u32 %v840, 7
      %v842 = vsub.s32 0, %v841
      %v843 = vrot.slane %v838, %v842
      %v844 = vlaneseq
      %v845 = vshrl.u32 %v844, 7
      %v846 = vsub.s32 1, %v845
      %v847 = vrot.slane %v838, %v846
      %v850 = vmul.f32 %v833, %v843
      %v851 = vmul.f32 %v835, %v847
      %v852 = vmul.f32 %v834, %v843
      %v853 = vmul.f32 %v836, %v847
      %v854 = vpack.c.bf16 %v852, %v850
      %v855 = vpack.c.bf16 %v853, %v851
      %856 = vst [vmem:[#allocation2 + $0x80] sm:$0xff] %v854
      %857 = vst [vmem:[#allocation2 + $0x88] sm:$0xff] %v855
      %v858 = vld [vmem:[%s2] sm:$0xff]
      %v859 = vld [vmem:[%s2 + $0x8] sm:$0xff]
      %v860 = vld [vmem:[#allocation2] sm:$0xff]
      %v861 = vld [vmem:[#allocation2 + $0x8] sm:$0xff]
      %v862 = vld [vmem:[#allocation2 + $0x10] sm:$0xff]
      %v863 = vld [vmem:[#allocation2 + $0x18] sm:$0xff]
      %v864 = vld [vmem:[#allocation2 + $0x20] sm:$0xff]
      %v865 = vld [vmem:[#allocation2 + $0x28] sm:$0xff]
      %v866 = vld [vmem:[#allocation2 + $0x30] sm:$0xff]
      %v867 = vld [vmem:[#allocation2 + $0x38] sm:$0xff]
      %v868 = vld [vmem:[#allocation2 + $0x40] sm:$0xff]
      %v869 = vld [vmem:[#allocation2 + $0x48] sm:$0xff]
      %v870 = vld [vmem:[#allocation2 + $0x50] sm:$0xff]
      %v871 = vld [vmem:[#allocation2 + $0x58] sm:$0xff]
      %v872 = vld [vmem:[#allocation2 + $0x60] sm:$0xff]
      %v873 = vld [vmem:[#allocation2 + $0x68] sm:$0xff]
      %v874 = vld [vmem:[#allocation2 + $0x70] sm:$0xff]
      %v875 = vld [vmem:[#allocation2 + $0x78] sm:$0xff]
      %v876 = vld [vmem:[#allocation2 + $0x80] sm:$0xff]
      %v877 = vld [vmem:[#allocation2 + $0x88] sm:$0xff]
      %v878 = vld [vmem:[%s3] sm:$0xff]
      %v879 = vld [vmem:[%s3 + $0x8] sm:$0xff]
      %881 = vset.pattern.permute.xlu0 0
      %882 = vperm.xlu0 %881, %v878
      %v883 = vpop.permute.xlu0 %882
      %886 = vset.pattern.permute.xlu0 0
      %887 = vperm.xlu0 %886, %v879
      %v888 = vpop.permute.xlu0 %887
      %v892 = vunpack.c.l.b16 %v858
      %v893 = vunpack.c.h.b16 %v858
      %v894 = vunpack.c.l.b16 %v859
      %v895 = vunpack.c.h.b16 %v859
      %v896 = vpack.c.b16 %v894, %v892
      %v897 = vpack.c.b16 %v895, %v893
      %vm899 = vcmask 130048
      %v901 = vsel %vm899, %v897, 0
      %903 = vmatprep.subr.bf16.mxu0 %v861
      %904 = vmatpush1.bf16.msra.mxu0 %v860
      %905 = vmatprep.subr.bf16.mxu0 %v863
      %906 = vmatpush1.bf16.msra.mxu0 %v862
      %907 = vmatprep.subr.bf16.mxu0 %v865
      %908 = vmatpush1.bf16.msra.mxu0 %v864
      %909 = vmatprep.subr.bf16.mxu0 %v867
      %910 = vmatpush1.bf16.msra.mxu0 %v866
      %911 = vmatprep.subr.bf16.mxu0 %v869
      %912 = vmatpush1.bf16.msra.mxu0 %v868
      %913 = vmatprep.subr.bf16.mxu0 %v871
      %914 = vmatpush1.bf16.msra.mxu0 %v870
      %915 = vmatprep.subr.bf16.mxu0 %v873
      %916 = vmatpush1.bf16.msra.mxu0 %v872
      %917 = vmatprep.subr.bf16.mxu0 %v875
      %918 = vmatpush1.bf16.msra.mxu0 %v874
      %919 = vmatprep.subr.bf16.mxu0 %v877
      %920 = vmatpush1.bf16.msra.mxu0 %v876
      %921 = vmatprep.subr.bf16.mxu0 0
      %922 = vmatpush1.bf16.msra.mxu0 0
      %923 = vmatprep.subr.bf16.mxu0 0
      %924 = vmatpush1.bf16.msra.mxu0 0
      %925 = vmatprep.subr.bf16.mxu0 0
      %926 = vmatpush1.bf16.msra.mxu0 0
      %927 = vmatprep.subr.bf16.mxu0 0
      %928 = vmatpush1.bf16.msra.mxu0 0
      %929 = vmatprep.subr.bf16.mxu0 0
      %930 = vmatpush1.bf16.msra.mxu0 0
      %931 = vmatprep.subr.bf16.mxu0 0
      %932 = vmatpush1.bf16.msra.mxu0 0
      %933 = vmatprep.subr.bf16.mxu0 0
      %934 = vmatpush1.bf16.msra.mxu0 0
      %935 = vmatprep.mubr.bf16.mxu0 %v901
      %936 = vmatmul.mubr.bf16.gmra.mrb[0].mxu0 %v896
      %v937 = vpop.f32.mrb[0].mxu0
      %v938 = vadd.f32 %v883, %v937
      %v939 = vpop.f32.mrb[0].mxu0
      %v940 = vadd.f32 %v883, %v939
      %v941 = vpop.f32.mrb[0].mxu0
      %v942 = vadd.f32 %v888, %v941
      %v943 = vpop.f32.mrb[0].mxu0
      %v944 = vadd.f32 %v888, %v943
      %945 = vdwg.mxu0
      %v946 = vmax.f32 %v938, 0.0
      %v947 = vmax.f32 %v940, 0.0
      %v948 = vmax.f32 %v942, 0.0
      %v949 = vmax.f32 %v944, 0.0
      %950 = vrot.lane.b32.xlu0 %v946, 17
      %v951 = vpop.permute.xlu0 %950
      %952 = vrot.lane.b32.xlu0 %v948, 17
      %v953 = vpop.permute.xlu0 %952
      %954 = vrot.lane.b32.xlu0 %v947, 17
      %v955 = vpop.permute.xlu0 %954
      %956 = vrot.lane.b32.xlu0 %v949, 17
      %v957 = vpop.permute.xlu0 %956
      %v958 = vsel %vm591, %v951, %v955
      %v959 = vsel %vm591, %v953, %v957
      %v960 = vsel %vm591, %v955, %v951
      %v961 = vsel %vm591, %v957, %v953
      %v962 = vld [vmem:[%s1] ss:$8 sm:$0x3]
      %v964 = vlaneseq
      %v965 = vshrl.u32 %v964, 7
      %v966 = vsub.s32 0, %v965
      %v967 = vrot.slane %v962, %v966
      %v968 = vlaneseq
      %v969 = vshrl.u32 %v968, 7
      %v970 = vsub.s32 1, %v969
      %v971 = vrot.slane %v962, %v970
      %v974 = vmul.f32 %v960, %v967
      %v975 = vmul.f32 %v958, %v971
      %v976 = vmul.f32 %v961, %v967
      %v977 = vmul.f32 %v959, %v971
      %v978 = vpack.c.bf16 %v976, %v974
      %v979 = vpack.c.bf16 %v977, %v975
      %980 = vst [vmem:[#allocation2] sm:$0xff] %v978
      %981 = vst [vmem:[#allocation2 + $0x8] sm:$0xff] %v979
      %982 = vrot.lane.b32.xlu0 %v946, 16
      %v983 = vpop.permute.xlu0 %982
      %984 = vrot.lane.b32.xlu0 %v948, 16
      %v985 = vpop.permute.xlu0 %984
      %986 = vrot.lane.b32.xlu0 %v947, 16
      %v987 = vpop.permute.xlu0 %986
      %988 = vrot.lane.b32.xlu0 %v949, 16
      %v989 = vpop.permute.xlu0 %988
      %v990 = vsel %vm624, %v983, %v987
      %v991 = vsel %vm624, %v985, %v989
      %v992 = vsel %vm624, %v987, %v983
      %v993 = vsel %vm624, %v989, %v985
      %v994 = vld [vmem:[%s629] ss:$8 sm:$0x3]
      %v996 = vlaneseq
      %v997 = vshrl.u32 %v996, 7
      %v998 = vsub.s32 0, %v997
      %v999 = vrot.slane %v994, %v998
      %v1000 = vlaneseq
      %v1001 = vshrl.u32 %v1000, 7
      %v1002 = vsub.s32 1, %v1001
      %v1003 = vrot.slane %v994, %v1002
      %v1006 = vmul.f32 %v992, %v999
      %v1007 = vmul.f32 %v990, %v1003
      %v1008 = vmul.f32 %v993, %v999
      %v1009 = vmul.f32 %v991, %v1003
      %v1010 = vpack.c.bf16 %v1008, %v1006
      %v1011 = vpack.c.bf16 %v1009, %v1007
      %1012 = vst [vmem:[#allocation2 + $0x10] sm:$0xff] %v1010
      %1013 = vst [vmem:[#allocation2 + $0x18] sm:$0xff] %v1011
      %1014 = vrot.lane.b32.xlu0 %v946, 15
      %v1015 = vpop.permute.xlu0 %1014
      %1016 = vrot.lane.b32.xlu0 %v948, 15
      %v1017 = vpop.permute.xlu0 %1016
      %1018 = vrot.lane.b32.xlu0 %v947, 15
      %v1019 = vpop.permute.xlu0 %1018
      %1020 = vrot.lane.b32.xlu0 %v949, 15
      %v1021 = vpop.permute.xlu0 %1020
      %v1022 = vsel %vm658, %v1015, %v1019
      %v1023 = vsel %vm658, %v1017, %v1021
      %v1024 = vsel %vm658, %v1019, %v1015
      %v1025 = vsel %vm658, %v1021, %v1017
      %v1026 = vld [vmem:[%s663] ss:$8 sm:$0x3]
      %v1028 = vlaneseq
      %v1029 = vshrl.u32 %v1028, 7
      %v1030 = vsub.s32 0, %v1029
      %v1031 = vrot.slane %v1026, %v1030
      %v1032 = vlaneseq
      %v1033 = vshrl.u32 %v1032, 7
      %v1034 = vsub.s32 1, %v1033
      %v1035 = vrot.slane %v1026, %v1034
      %v1038 = vmul.f32 %v1024, %v1031
      %v1039 = vmul.f32 %v1022, %v1035
      %v1040 = vmul.f32 %v1025, %v1031
      %v1041 = vmul.f32 %v1023, %v1035
      %v1042 = vpack.c.bf16 %v1040, %v1038
      %v1043 = vpack.c.bf16 %v1041, %v1039
      %1044 = vst [vmem:[#allocation2 + $0x20] sm:$0xff] %v1042
      %1045 = vst [vmem:[#allocation2 + $0x28] sm:$0xff] %v1043
      %1046 = vrot.lane.b32.xlu0 %v946, 1
      %v1047 = vpop.permute.xlu0 %1046
      %1048 = vrot.lane.b32.xlu0 %v948, 1
      %v1049 = vpop.permute.xlu0 %1048
      %1050 = vrot.lane.b32.xlu0 %v947, 1
      %v1051 = vpop.permute.xlu0 %1050
      %1052 = vrot.lane.b32.xlu0 %v949, 1
      %v1053 = vpop.permute.xlu0 %1052
      %v1054 = vsel %vm692, %v1047, %v1051
      %v1055 = vsel %vm692, %v1049, %v1053
      %v1056 = vsel %vm692, %v1051, %v1047
      %v1057 = vsel %vm692, %v1053, %v1049
      %v1058 = vld [vmem:[%s697] ss:$8 sm:$0x3]
      %v1060 = vlaneseq
      %v1061 = vshrl.u32 %v1060, 7
      %v1062 = vsub.s32 0, %v1061
      %v1063 = vrot.slane %v1058, %v1062
      %v1064 = vlaneseq
      %v1065 = vshrl.u32 %v1064, 7
      %v1066 = vsub.s32 1, %v1065
      %v1067 = vrot.slane %v1058, %v1066
      %v1070 = vmul.f32 %v1056, %v1063
      %v1071 = vmul.f32 %v1054, %v1067
      %v1072 = vmul.f32 %v1057, %v1063
      %v1073 = vmul.f32 %v1055, %v1067
      %v1074 = vpack.c.bf16 %v1072, %v1070
      %v1075 = vpack.c.bf16 %v1073, %v1071
      %1076 = vst [vmem:[#allocation2 + $0x30] sm:$0xff] %v1074
      %1077 = vst [vmem:[#allocation2 + $0x38] sm:$0xff] %v1075
      %v1078 = vpack.c.bf16 %v948, %v946
      %v1079 = vpack.c.bf16 %v949, %v947
      %1080 = vst [vmem:[#allocation2 + $0x40] sm:$0xff] %v1078
      %1081 = vst [vmem:[#allocation2 + $0x48] sm:$0xff] %v1079
      %1082 = vrot.lane.b32.xlu0 %v946, 127
      %v1083 = vpop.permute.xlu0 %1082
      %1084 = vrot.lane.b32.xlu0 %v948, 127
      %v1085 = vpop.permute.xlu0 %1084
      %1086 = vrot.lane.b32.xlu0 %v947, 127
      %v1087 = vpop.permute.xlu0 %1086
      %1088 = vrot.lane.b32.xlu0 %v949, 127
      %v1089 = vpop.permute.xlu0 %1088
      %v1090 = vsel %vm730, %v1083, %v1087
      %v1091 = vsel %vm730, %v1085, %v1089
      %v1092 = vsel %vm730, %v1087, %v1083
      %v1093 = vsel %vm730, %v1089, %v1085
      %v1094 = vld [vmem:[%s735] ss:$8 sm:$0x3]
      %v1096 = vlaneseq
      %v1097 = vshrl.u32 %v1096, 7
      %v1098 = vsub.s32 0, %v1097
      %v1099 = vrot.slane %v1094, %v1098
      %v1100 = vlaneseq
      %v1101 = vshrl.u32 %v1100, 7
      %v1102 = vsub.s32 1, %v1101
      %v1103 = vrot.slane %v1094, %v1102
      %v1106 = vmul.f32 %v1090, %v1099
      %v1107 = vmul.f32 %v1092, %v1103
      %v1108 = vmul.f32 %v1091, %v1099
      %v1109 = vmul.f32 %v1093, %v1103
      %v1110 = vpack.c.bf16 %v1108, %v1106
      %v1111 = vpack.c.bf16 %v1109, %v1107
      %1112 = vst [vmem:[#allocation2 + $0x50] sm:$0xff] %v1110
      %1113 = vst [vmem:[#allocation2 + $0x58] sm:$0xff] %v1111
      %1114 = vrot.lane.b32.xlu0 %v946, 113
      %v1115 = vpop.permute.xlu0 %1114
      %1116 = vrot.lane.b32.xlu0 %v948, 113
      %v1117 = vpop.permute.xlu0 %1116
      %1118 = vrot.lane.b32.xlu0 %v947, 113
      %v1119 = vpop.permute.xlu0 %1118
      %1120 = vrot.lane.b32.xlu0 %v949, 113
      %v1121 = vpop.permute.xlu0 %1120
      %v1122 = vsel %vm764, %v1115, %v1119
      %v1123 = vsel %vm764, %v1117, %v1121
      %v1124 = vsel %vm764, %v1119, %v1115
      %v1125 = vsel %vm764, %v1121, %v1117
      %v1126 = vld [vmem:[%s769] ss:$8 sm:$0x3]
      %v1128 = vlaneseq
      %v1129 = vshrl.u32 %v1128, 7
      %v1130 = vsub.s32 0, %v1129
      %v1131 = vrot.slane %v1126, %v1130
      %v1132 = vlaneseq
      %v1133 = vshrl.u32 %v1132, 7
      %v1134 = vsub.s32 1, %v1133
      %v1135 = vrot.slane %v1126, %v1134
      %v1138 = vmul.f32 %v1122, %v1131
      %v1139 = vmul.f32 %v1124, %v1135
      %v1140 = vmul.f32 %v1123, %v1131
      %v1141 = vmul.f32 %v1125, %v1135
      %v1142 = vpack.c.bf16 %v1140, %v1138
      %v1143 = vpack.c.bf16 %v1141, %v1139
      %1144 = vst [vmem:[#allocation2 + $0x60] sm:$0xff] %v1142
      %1145 = vst [vmem:[#allocation2 + $0x68] sm:$0xff] %v1143
      %1146 = vrot.lane.b32.xlu0 %v946, 112
      %v1147 = vpop.permute.xlu0 %1146
      %1148 = vrot.lane.b32.xlu0 %v948, 112
      %v1149 = vpop.permute.xlu0 %1148
      %1150 = vrot.lane.b32.xlu0 %v947, 112
      %v1151 = vpop.permute.xlu0 %1150
      %1152 = vrot.lane.b32.xlu0 %v949, 112
      %v1153 = vpop.permute.xlu0 %1152
      %v1154 = vsel %vm798, %v1147, %v1151
      %v1155 = vsel %vm798, %v1149, %v1153
      %v1156 = vsel %vm798, %v1151, %v1147
      %v1157 = vsel %vm798, %v1153, %v1149
      %v1158 = vld [vmem:[%s803] ss:$8 sm:$0x3]
      %v1160 = vlaneseq
      %v1161 = vshrl.u32 %v1160, 7
      %v1162 = vsub.s32 0, %v1161
      %v1163 = vrot.slane %v1158, %v1162
      %v1164 = vlaneseq
      %v1165 = vshrl.u32 %v1164, 7
      %v1166 = vsub.s32 1, %v1165
      %v1167 = vrot.slane %v1158, %v1166
      %v1170 = vmul.f32 %v1154, %v1163
      %v1171 = vmul.f32 %v1156, %v1167
      %v1172 = vmul.f32 %v1155, %v1163
      %v1173 = vmul.f32 %v1157, %v1167
      %v1174 = vpack.c.bf16 %v1172, %v1170
      %v1175 = vpack.c.bf16 %v1173, %v1171
      %1176 = vst [vmem:[#allocation2 + $0x70] sm:$0xff] %v1174
      %1177 = vst [vmem:[#allocation2 + $0x78] sm:$0xff] %v1175
      %1178 = vrot.lane.b32.xlu0 %v946, 111
      %v1179 = vpop.permute.xlu0 %1178
      %1180 = vrot.lane.b32.xlu0 %v948, 111
      %v1181 = vpop.permute.xlu0 %1180
      %1182 = vrot.lane.b32.xlu0 %v947, 111
      %v1183 = vpop.permute.xlu0 %1182
      %1184 = vrot.lane.b32.xlu0 %v949, 111
      %v1185 = vpop.permute.xlu0 %1184
      %v1186 = vsel %vm832, %v1179, %v1183
      %v1187 = vsel %vm832, %v1181, %v1185
      %v1188 = vsel %vm832, %v1183, %v1179
      %v1189 = vsel %vm832, %v1185, %v1181
      %v1190 = vld [vmem:[%s837] ss:$8 sm:$0x3]
      %v1192 = vlaneseq
      %v1193 = vshrl.u32 %v1192, 7
      %v1194 = vsub.s32 0, %v1193
      %v1195 = vrot.slane %v1190, %v1194
      %v1196 = vlaneseq
      %v1197 = vshrl.u32 %v1196, 7
      %v1198 = vsub.s32 1, %v1197
      %v1199 = vrot.slane %v1190, %v1198
      %v1202 = vmul.f32 %v1186, %v1195
      %v1203 = vmul.f32 %v1188, %v1199
      %v1204 = vmul.f32 %v1187, %v1195
      %v1205 = vmul.f32 %v1189, %v1199
      %v1206 = vpack.c.bf16 %v1204, %v1202
      %v1207 = vpack.c.bf16 %v1205, %v1203
      %1208 = vst [vmem:[#allocation2 + $0x80] sm:$0xff] %v1206
      %1209 = vst [vmem:[#allocation2 + $0x88] sm:$0xff] %v1207
      %v1210 = vld [vmem:[%s4] sm:$0xff]
      %v1211 = vld [vmem:[%s4 + $0x8] sm:$0xff]
      %v1212 = vld [vmem:[#allocation2] sm:$0xff]
      %v1213 = vld [vmem:[#allocation2 + $0x8] sm:$0xff]
      %v1214 = vld [vmem:[#allocation2 + $0x10] sm:$0xff]
      %v1215 = vld [vmem:[#allocation2 + $0x18] sm:$0xff]
      %v1216 = vld [vmem:[#allocation2 + $0x20] sm:$0xff]
      %v1217 = vld [vmem:[#allocation2 + $0x28] sm:$0xff]
      %v1218 = vld [vmem:[#allocation2 + $0x30] sm:$0xff]
      %v1219 = vld [vmem:[#allocation2 + $0x38] sm:$0xff]
      %v1220 = vld [vmem:[#allocation2 + $0x40] sm:$0xff]
      %v1221 = vld [vmem:[#allocation2 + $0x48] sm:$0xff]
      %v1222 = vld [vmem:[#allocation2 + $0x50] sm:$0xff]
      %v1223 = vld [vmem:[#allocation2 + $0x58] sm:$0xff]
      %v1224 = vld [vmem:[#allocation2 + $0x60] sm:$0xff]
      %v1225 = vld [vmem:[#allocation2 + $0x68] sm:$0xff]
      %v1226 = vld [vmem:[#allocation2 + $0x70] sm:$0xff]
      %v1227 = vld [vmem:[#allocation2 + $0x78] sm:$0xff]
      %v1228 = vld [vmem:[#allocation2 + $0x80] sm:$0xff]
      %v1229 = vld [vmem:[#allocation2 + $0x88] sm:$0xff]
      %v1230 = vld [vmem:[%s5] sm:$0xff]
      %v1231 = vld [vmem:[%s5 + $0x8] sm:$0xff]
      %1233 = vset.pattern.permute.xlu0 0
      %1234 = vperm.xlu0 %1233, %v1230
      %v1235 = vpop.permute.xlu0 %1234
      %1238 = vset.pattern.permute.xlu0 0
      %1239 = vperm.xlu0 %1238, %v1231
      %v1240 = vpop.permute.xlu0 %1239
      %v1244 = vunpack.c.l.b16 %v1210
      %v1245 = vunpack.c.h.b16 %v1210
      %v1246 = vunpack.c.l.b16 %v1211
      %v1247 = vunpack.c.h.b16 %v1211
      %v1248 = vpack.c.b16 %v1246, %v1244
      %v1249 = vpack.c.b16 %v1247, %v1245
      %v1252 = vsel %vm899, %v1249, 0
      %1254 = vmatprep.subr.bf16.mxu0 %v1213
      %1255 = vmatpush1.bf16.msra.mxu0 %v1212
      %1256 = vmatprep.subr.bf16.mxu0 %v1215
      %1257 = vmatpush1.bf16.msra.mxu0 %v1214
      %1258 = vmatprep.subr.bf16.mxu0 %v1217
      %1259 = vmatpush1.bf16.msra.mxu0 %v1216
      %1260 = vmatprep.subr.bf16.mxu0 %v1219
      %1261 = vmatpush1.bf16.msra.mxu0 %v1218
      %1262 = vmatprep.subr.bf16.mxu0 %v1221
      %1263 = vmatpush1.bf16.msra.mxu0 %v1220
      %1264 = vmatprep.subr.bf16.mxu0 %v1223
      %1265 = vmatpush1.bf16.msra.mxu0 %v1222
      %1266 = vmatprep.subr.bf16.mxu0 %v1225
      %1267 = vmatpush1.bf16.msra.mxu0 %v1224
      %1268 = vmatprep.subr.bf16.mxu0 %v1227
      %1269 = vmatpush1.bf16.msra.mxu0 %v1226
      %1270 = vmatprep.subr.bf16.mxu0 %v1229
      %1271 = vmatpush1.bf16.msra.mxu0 %v1228
      %1272 = vmatprep.subr.bf16.mxu0 0
      %1273 = vmatpush1.bf16.msra.mxu0 0
      %1274 = vmatprep.subr.bf16.mxu0 0
      %1275 = vmatpush1.bf16.msra.mxu0 0
      %1276 = vmatprep.subr.bf16.mxu0 0
      %1277 = vmatpush1.bf16.msra.mxu0 0
      %1278 = vmatprep.subr.bf16.mxu0 0
      %1279 = vmatpush1.bf16.msra.mxu0 0
      %1280 = vmatprep.subr.bf16.mxu0 0
      %1281 = vmatpush1.bf16.msra.mxu0 0
      %1282 = vmatprep.subr.bf16.mxu0 0
      %1283 = vmatpush1.bf16.msra.mxu0 0
      %1284 = vmatprep.subr.bf16.mxu0 0
      %1285 = vmatpush1.bf16.msra.mxu0 0
      %1286 = vmatprep.mubr.bf16.mxu0 %v1252
      %1287 = vmatmul.mubr.bf16.gmra.mrb[0].mxu0 %v1248
      %v1288 = vpop.f32.mrb[0].mxu0
      %v1289 = vadd.f32 %v1235, %v1288
      %v1290 = vpop.f32.mrb[0].mxu0
      %v1291 = vadd.f32 %v1235, %v1290
      %v1292 = vpop.f32.mrb[0].mxu0
      %v1293 = vadd.f32 %v1240, %v1292
      %v1294 = vpop.f32.mrb[0].mxu0
      %v1295 = vadd.f32 %v1240, %v1294
      %1296 = vdwg.mxu0
      %v1297 = vmax.f32 %v1289, 0.0
      %v1298 = vmax.f32 %v1291, 0.0
      %v1299 = vmax.f32 %v1293, 0.0
      %v1300 = vmax.f32 %v1295, 0.0
      %1301 = vrot.lane.b32.xlu0 %v1297, 34
      %v1302 = vpop.permute.xlu0 %1301
      %1303 = vrot.lane.b32.xlu0 %v1299, 34
      %v1304 = vpop.permute.xlu0 %1303
      %1305 = vrot.lane.b32.xlu0 %v1298, 34
      %v1306 = vpop.permute.xlu0 %1305
      %1307 = vrot.lane.b32.xlu0 %v1300, 34
      %v1308 = vpop.permute.xlu0 %1307
      %vm1309 = vcmp.lt.s32.totalorder %v590, 34
      %v1310 = vsel %vm1309, %v1302, %v1306
      %v1311 = vsel %vm1309, %v1304, %v1308
      %v1312 = vsel %vm1309, %v1306, %v1302
      %v1313 = vsel %vm1309, %v1308, %v1304
      %s1314 = scalar_lea.vmem %s1, 17
      %v1315 = vld [vmem:[%s1314] ss:$8 sm:$0x3]
      %v1317 = vlaneseq
      %v1318 = vshrl.u32 %v1317, 7
      %v1319 = vsub.s32 0, %v1318
      %v1320 = vrot.slane %v1315, %v1319
      %v1321 = vlaneseq
      %v1322 = vshrl.u32 %v1321, 7
      %v1323 = vsub.s32 1, %v1322
      %v1324 = vrot.slane %v1315, %v1323
      %v1327 = vmul.f32 %v1312, %v1320
      %v1328 = vmul.f32 %v1310, %v1324
      %v1329 = vmul.f32 %v1313, %v1320
      %v1330 = vmul.f32 %v1311, %v1324
      %v1331 = vpack.c.bf16 %v1329, %v1327
      %v1332 = vpack.c.bf16 %v1330, %v1328
      %1333 = vst [vmem:[#allocation2] sm:$0xff] %v1331
      %1334 = vst [vmem:[#allocation2 + $0x8] sm:$0xff] %v1332
      %1335 = vrot.lane.b32.xlu0 %v1297, 32
      %v1336 = vpop.permute.xlu0 %1335
      %1337 = vrot.lane.b32.xlu0 %v1299, 32
      %v1338 = vpop.permute.xlu0 %1337
      %1339 = vrot.lane.b32.xlu0 %v1298, 32
      %v1340 = vpop.permute.xlu0 %1339
      %1341 = vrot.lane.b32.xlu0 %v1300, 32
      %v1342 = vpop.permute.xlu0 %1341
      %vm1343 = vcmp.lt.s32.totalorder %v590, 32
      %v1344 = vsel %vm1343, %v1336, %v1340
      %v1345 = vsel %vm1343, %v1338, %v1342
      %v1346 = vsel %vm1343, %v1340, %v1336
      %v1347 = vsel %vm1343, %v1342, %v1338
      %s1348 = scalar_lea.vmem %s1, 18
      %v1349 = vld [vmem:[%s1348] ss:$8 sm:$0x3]
      %v1351 = vlaneseq
      %v1352 = vshrl.u32 %v1351, 7
      %v1353 = vsub.s32 0, %v1352
      %v1354 = vrot.slane %v1349, %v1353
      %v1355 = vlaneseq
      %v1356 = vshrl.u32 %v1355, 7
      %v1357 = vsub.s32 1, %v1356
      %v1358 = vrot.slane %v1349, %v1357
      %v1361 = vmul.f32 %v1346, %v1354
      %v1362 = vmul.f32 %v1344, %v1358
      %v1363 = vmul.f32 %v1347, %v1354
      %v1364 = vmul.f32 %v1345, %v1358
      %v1365 = vpack.c.bf16 %v1363, %v1361
      %v1366 = vpack.c.bf16 %v1364, %v1362
      %1367 = vst [vmem:[#allocation2 + $0x10] sm:$0xff] %v1365
      %1368 = vst [vmem:[#allocation2 + $0x18] sm:$0xff] %v1366
      %1369 = vrot.lane.b32.xlu0 %v1297, 30
      %v1370 = vpop.permute.xlu0 %1369
      %1371 = vrot.lane.b32.xlu0 %v1299, 30
      %v1372 = vpop.permute.xlu0 %1371
      %1373 = vrot.lane.b32.xlu0 %v1298, 30
      %v1374 = vpop.permute.xlu0 %1373
      %1375 = vrot.lane.b32.xlu0 %v1300, 30
      %v1376 = vpop.permute.xlu0 %1375
      %vm1377 = vcmp.lt.s32.totalorder %v590, 30
      %v1378 = vsel %vm1377, %v1370, %v1374
      %v1379 = vsel %vm1377, %v1372, %v1376
      %v1380 = vsel %vm1377, %v1374, %v1370
      %v1381 = vsel %vm1377, %v1376, %v1372
      %s1382 = scalar_lea.vmem %s1, 19
      %v1383 = vld [vmem:[%s1382] ss:$8 sm:$0x3]
      %v1385 = vlaneseq
      %v1386 = vshrl.u32 %v1385, 7
      %v1387 = vsub.s32 0, %v1386
      %v1388 = vrot.slane %v1383, %v1387
      %v1389 = vlaneseq
      %v1390 = vshrl.u32 %v1389, 7
      %v1391 = vsub.s32 1, %v1390
      %v1392 = vrot.slane %v1383, %v1391
      %v1395 = vmul.f32 %v1380, %v1388
      %v1396 = vmul.f32 %v1378, %v1392
      %v1397 = vmul.f32 %v1381, %v1388
      %v1398 = vmul.f32 %v1379, %v1392
      %v1399 = vpack.c.bf16 %v1397, %v1395
      %v1400 = vpack.c.bf16 %v1398, %v1396
      %1401 = vst [vmem:[#allocation2 + $0x20] sm:$0xff] %v1399
      %1402 = vst [vmem:[#allocation2 + $0x28] sm:$0xff] %v1400
      %1403 = vrot.lane.b32.xlu0 %v1297, 2
      %v1404 = vpop.permute.xlu0 %1403
      %1405 = vrot.lane.b32.xlu0 %v1299, 2
      %v1406 = vpop.permute.xlu0 %1405
      %1407 = vrot.lane.b32.xlu0 %v1298, 2
      %v1408 = vpop.permute.xlu0 %1407
      %1409 = vrot.lane.b32.xlu0 %v1300, 2
      %v1410 = vpop.permute.xlu0 %1409
      %vm1411 = vcmp.lt.s32.totalorder %v590, 2
      %v1412 = vsel %vm1411, %v1404, %v1408
      %v1413 = vsel %vm1411, %v1406, %v1410
      %v1414 = vsel %vm1411, %v1408, %v1404
      %v1415 = vsel %vm1411, %v1410, %v1406
      %s1416 = scalar_lea.vmem %s1, 20
      %v1417 = vld [vmem:[%s1416] ss:$8 sm:$0x3]
      %v1419 = vlaneseq
      %v1420 = vshrl.u32 %v1419, 7
      %v1421 = vsub.s32 0, %v1420
      %v1422 = vrot.slane %v1417, %v1421
      %v1423 = vlaneseq
      %v1424 = vshrl.u32 %v1423, 7
      %v1425 = vsub.s32 1, %v1424
      %v1426 = vrot.slane %v1417, %v1425
      %v1429 = vmul.f32 %v1414, %v1422
      %v1430 = vmul.f32 %v1412, %v1426
      %v1431 = vmul.f32 %v1415, %v1422
      %v1432 = vmul.f32 %v1413, %v1426
      %v1433 = vpack.c.bf16 %v1431, %v1429
      %v1434 = vpack.c.bf16 %v1432, %v1430
      %1435 = vst [vmem:[#allocation2 + $0x30] sm:$0xff] %v1433
      %1436 = vst [vmem:[#allocation2 + $0x38] sm:$0xff] %v1434
      %v1437 = vpack.c.bf16 %v1299, %v1297
      %v1438 = vpack.c.bf16 %v1300, %v1298
      %1439 = vst [vmem:[#allocation2 + $0x40] sm:$0xff] %v1437
      %1440 = vst [vmem:[#allocation2 + $0x48] sm:$0xff] %v1438
      %1441 = vrot.lane.b32.xlu0 %v1297, 126
      %v1442 = vpop.permute.xlu0 %1441
      %1443 = vrot.lane.b32.xlu0 %v1299, 126
      %v1444 = vpop.permute.xlu0 %1443
      %1445 = vrot.lane.b32.xlu0 %v1298, 126
      %v1446 = vpop.permute.xlu0 %1445
      %1447 = vrot.lane.b32.xlu0 %v1300, 126
      %v1448 = vpop.permute.xlu0 %1447
      %vm1449 = vcmp.lt.s32.totalorder %v590, 126
      %v1450 = vsel %vm1449, %v1442, %v1446
      %v1451 = vsel %vm1449, %v1444, %v1448
      %v1452 = vsel %vm1449, %v1446, %v1442
      %v1453 = vsel %vm1449, %v1448, %v1444
      %s1454 = scalar_lea.vmem %s1, 22
      %v1455 = vld [vmem:[%s1454] ss:$8 sm:$0x3]
      %v1457 = vlaneseq
      %v1458 = vshrl.u32 %v1457, 7
      %v1459 = vsub.s32 0, %v1458
      %v1460 = vrot.slane %v1455, %v1459
      %v1461 = vlaneseq
      %v1462 = vshrl.u32 %v1461, 7
      %v1463 = vsub.s32 1, %v1462
      %v1464 = vrot.slane %v1455, %v1463
      %v1467 = vmul.f32 %v1450, %v1460
      %v1468 = vmul.f32 %v1452, %v1464
      %v1469 = vmul.f32 %v1451, %v1460
      %v1470 = vmul.f32 %v1453, %v1464
      %v1471 = vpack.c.bf16 %v1469, %v1467
      %v1472 = vpack.c.bf16 %v1470, %v1468
      %1473 = vst [vmem:[#allocation2 + $0x50] sm:$0xff] %v1471
      %1474 = vst [vmem:[#allocation2 + $0x58] sm:$0xff] %v1472
      %1475 = vrot.lane.b32.xlu0 %v1297, 98
      %v1476 = vpop.permute.xlu0 %1475
      %1477 = vrot.lane.b32.xlu0 %v1299, 98
      %v1478 = vpop.permute.xlu0 %1477
      %1479 = vrot.lane.b32.xlu0 %v1298, 98
      %v1480 = vpop.permute.xlu0 %1479
      %1481 = vrot.lane.b32.xlu0 %v1300, 98
      %v1482 = vpop.permute.xlu0 %1481
      %vm1483 = vcmp.lt.s32.totalorder %v590, 98
      %v1484 = vsel %vm1483, %v1476, %v1480
      %v1485 = vsel %vm1483, %v1478, %v1482
      %v1486 = vsel %vm1483, %v1480, %v1476
      %v1487 = vsel %vm1483, %v1482, %v1478
      %s1488 = scalar_lea.vmem %s1, 23
      %v1489 = vld [vmem:[%s1488] ss:$8 sm:$0x3]
      %v1491 = vlaneseq
      %v1492 = vshrl.u32 %v1491, 7
      %v1493 = vsub.s32 0, %v1492
      %v1494 = vrot.slane %v1489, %v1493
      %v1495 = vlaneseq
      %v1496 = vshrl.u32 %v1495, 7
      %v1497 = vsub.s32 1, %v1496
      %v1498 = vrot.slane %v1489, %v1497
      %v1501 = vmul.f32 %v1484, %v1494
      %v1502 = vmul.f32 %v1486, %v1498
      %v1503 = vmul.f32 %v1485, %v1494
      %v1504 = vmul.f32 %v1487, %v1498
      %v1505 = vpack.c.bf16 %v1503, %v1501
      %v1506 = vpack.c.bf16 %v1504, %v1502
      %1507 = vst [vmem:[#allocation2 + $0x60] sm:$0xff] %v1505
      %1508 = vst [vmem:[#allocation2 + $0x68] sm:$0xff] %v1506
      %1509 = vrot.lane.b32.xlu0 %v1297, 96
      %v1510 = vpop.permute.xlu0 %1509
      %1511 = vrot.lane.b32.xlu0 %v1299, 96
      %v1512 = vpop.permute.xlu0 %1511
      %1513 = vrot.lane.b32.xlu0 %v1298, 96
      %v1514 = vpop.permute.xlu0 %1513
      %1515 = vrot.lane.b32.xlu0 %v1300, 96
      %v1516 = vpop.permute.xlu0 %1515
      %vm1517 = vcmp.lt.s32.totalorder %v590, 96
      %v1518 = vsel %vm1517, %v1510, %v1514
      %v1519 = vsel %vm1517, %v1512, %v1516
      %v1520 = vsel %vm1517, %v1514, %v1510
      %v1521 = vsel %vm1517, %v1516, %v1512
      %s1522 = scalar_lea.vmem %s1, 32
      %v1523 = vld [vmem:[%s1522] ss:$8 sm:$0x3]
      %v1525 = vlaneseq
      %v1526 = vshrl.u32 %v1525, 7
      %v1527 = vsub.s32 0, %v1526
      %v1528 = vrot.slane %v1523, %v1527
      %v1529 = vlaneseq
      %v1530 = vshrl.u32 %v1529, 7
      %v1531 = vsub.s32 1, %v1530
      %v1532 = vrot.slane %v1523, %v1531
      %v1535 = vmul.f32 %v1518, %v1528
      %v1536 = vmul.f32 %v1520, %v1532
      %v1537 = vmul.f32 %v1519, %v1528
      %v1538 = vmul.f32 %v1521, %v1532
      %v1539 = vpack.c.bf16 %v1537, %v1535
      %v1540 = vpack.c.bf16 %v1538, %v1536
      %1541 = vst [vmem:[#allocation2 + $0x70] sm:$0xff] %v1539
      %1542 = vst [vmem:[#allocation2 + $0x78] sm:$0xff] %v1540
      %1543 = vrot.lane.b32.xlu0 %v1297, 94
      %v1544 = vpop.permute.xlu0 %1543
      %1545 = vrot.lane.b32.xlu0 %v1299, 94
      %v1546 = vpop.permute.xlu0 %1545
      %1547 = vrot.lane.b32.xlu0 %v1298, 94
      %v1548 = vpop.permute.xlu0 %1547
      %1549 = vrot.lane.b32.xlu0 %v1300, 94
      %v1550 = vpop.permute.xlu0 %1549
      %vm1551 = vcmp.lt.s32.totalorder %v590, 94
      %v1552 = vsel %vm1551, %v1544, %v1548
      %v1553 = vsel %vm1551, %v1546, %v1550
      %v1554 = vsel %vm1551, %v1548, %v1544
      %v1555 = vsel %vm1551, %v1550, %v1546
      %s1556 = scalar_lea.vmem %s1, 33
      %v1557 = vld [vmem:[%s1556] ss:$8 sm:$0x3]
      %v1559 = vlaneseq
      %v1560 = vshrl.u32 %v1559, 7
      %v1561 = vsub.s32 0, %v1560
      %v1562 = vrot.slane %v1557, %v1561
      %v1563 = vlaneseq
      %v1564 = vshrl.u32 %v1563, 7
      %v1565 = vsub.s32 1, %v1564
      %v1566 = vrot.slane %v1557, %v1565
      %v1569 = vmul.f32 %v1552, %v1562
      %v1570 = vmul.f32 %v1554, %v1566
      %v1571 = vmul.f32 %v1553, %v1562
      %v1572 = vmul.f32 %v1555, %v1566
      %v1573 = vpack.c.bf16 %v1571, %v1569
      %v1574 = vpack.c.bf16 %v1572, %v1570
      %1575 = vst [vmem:[#allocation2 + $0x80] sm:$0xff] %v1573
      %1576 = vst [vmem:[#allocation2 + $0x88] sm:$0xff] %v1574
      %v1577 = vld [vmem:[%s6] sm:$0xff]
      %v1578 = vld [vmem:[%s6 + $0x8] sm:$0xff]
      %v1579 = vld [vmem:[#allocation2] sm:$0xff]
      %v1580 = vld [vmem:[#allocation2 + $0x8] sm:$0xff]
      %v1581 = vld [vmem:[#allocation2 + $0x10] sm:$0xff]
      %v1582 = vld [vmem:[#allocation2 + $0x18] sm:$0xff]
      %v1583 = vld [vmem:[#allocation2 + $0x20] sm:$0xff]
      %v1584 = vld [vmem:[#allocation2 + $0x28] sm:$0xff]
      %v1585 = vld [vmem:[#allocation2 + $0x30] sm:$0xff]
      %v1586 = vld [vmem:[#allocation2 + $0x38] sm:$0xff]
      %v1587 = vld [vmem:[#allocation2 + $0x40] sm:$0xff]
      %v1588 = vld [vmem:[#allocation2 + $0x48] sm:$0xff]
      %v1589 = vld [vmem:[#allocation2 + $0x50] sm:$0xff]
      %v1590 = vld [vmem:[#allocation2 + $0x58] sm:$0xff]
      %v1591 = vld [vmem:[#allocation2 + $0x60] sm:$0xff]
      %v1592 = vld [vmem:[#allocation2 + $0x68] sm:$0xff]
      %v1593 = vld [vmem:[#allocation2 + $0x70] sm:$0xff]
      %v1594 = vld [vmem:[#allocation2 + $0x78] sm:$0xff]
      %v1595 = vld [vmem:[#allocation2 + $0x80] sm:$0xff]
      %v1596 = vld [vmem:[#allocation2 + $0x88] sm:$0xff]
      %v1597 = vld [vmem:[%s7] sm:$0xff]
      %v1598 = vld [vmem:[%s7 + $0x8] sm:$0xff]
      %1600 = vset.pattern.permute.xlu0 0
      %1601 = vperm.xlu0 %1600, %v1597
      %v1602 = vpop.permute.xlu0 %1601
      %1605 = vset.pattern.permute.xlu0 0
      %1606 = vperm.xlu0 %1605, %v1598
      %v1607 = vpop.permute.xlu0 %1606
      %v1611 = vunpack.c.l.b16 %v1577
      %v1612 = vunpack.c.h.b16 %v1577
      %v1613 = vunpack.c.l.b16 %v1578
      %v1614 = vunpack.c.h.b16 %v1578
      %v1615 = vpack.c.b16 %v1613, %v1611
      %v1616 = vpack.c.b16 %v1614, %v1612
      %v1619 = vsel %vm899, %v1616, 0
      %1621 = vmatprep.subr.bf16.mxu0 %v1580
      %1622 = vmatpush1.bf16.msra.mxu0 %v1579
      %1623 = vmatprep.subr.bf16.mxu0 %v1582
      %1624 = vmatpush1.bf16.msra.mxu0 %v1581
      %1625 = vmatprep.subr.bf16.mxu0 %v1584
      %1626 = vmatpush1.bf16.msra.mxu0 %v1583
      %1627 = vmatprep.subr.bf16.mxu0 %v1586
      %1628 = vmatpush1.bf16.msra.mxu0 %v1585
      %1629 = vmatprep.subr.bf16.mxu0 %v1588
      %1630 = vmatpush1.bf16.msra.mxu0 %v1587
      %1631 = vmatprep.subr.bf16.mxu0 %v1590
      %1632 = vmatpush1.bf16.msra.mxu0 %v1589
      %1633 = vmatprep.subr.bf16.mxu0 %v1592
      %1634 = vmatpush1.bf16.msra.mxu0 %v1591
      %1635 = vmatprep.subr.bf16.mxu0 %v1594
      %1636 = vmatpush1.bf16.msra.mxu0 %v1593
      %1637 = vmatprep.subr.bf16.mxu0 %v1596
      %1638 = vmatpush1.bf16.msra.mxu0 %v1595
      %1639 = vmatprep.subr.bf16.mxu0 0
      %1640 = vmatpush1.bf16.msra.mxu0 0
      %1641 = vmatprep.subr.bf16.mxu0 0
      %1642 = vmatpush1.bf16.msra.mxu0 0
      %1643 = vmatprep.subr.bf16.mxu0 0
      %1644 = vmatpush1.bf16.msra.mxu0 0
      %1645 = vmatprep.subr.bf16.mxu0 0
      %1646 = vmatpush1.bf16.msra.mxu0 0
      %1647 = vmatprep.subr.bf16.mxu0 0
      %1648 = vmatpush1.bf16.msra.mxu0 0
      %1649 = vmatprep.subr.bf16.mxu0 0
      %1650 = vmatpush1.bf16.msra.mxu0 0
      %1651 = vmatprep.subr.bf16.mxu0 0
      %1652 = vmatpush1.bf16.msra.mxu0 0
      %1653 = vmatprep.mubr.bf16.mxu0 %v1619
      %1654 = vmatmul.mubr.bf16.gmra.mrb[0].mxu0 %v1615
      %v1655 = vpop.f32.mrb[0].mxu0
      %v1656 = vadd.f32 %v1602, %v1655
      %v1657 = vpop.f32.mrb[0].mxu0
      %v1658 = vadd.f32 %v1602, %v1657
      %v1659 = vpop.f32.mrb[0].mxu0
      %v1660 = vadd.f32 %v1607, %v1659
      %v1661 = vpop.f32.mrb[0].mxu0
      %v1662 = vadd.f32 %v1607, %v1661
      %1663 = vdwg.mxu0
      %v1664 = vmax.f32 %v1656, 0.0
      %v1665 = vmax.f32 %v1658, 0.0
      %v1666 = vmax.f32 %v1660, 0.0
      %v1667 = vmax.f32 %v1662, 0.0
      %1668 = vrot.lane.b32.xlu0 %v1664, 68
      %v1669 = vpop.permute.xlu0 %1668
      %1670 = vrot.lane.b32.xlu0 %v1666, 68
      %v1671 = vpop.permute.xlu0 %1670
      %1672 = vrot.lane.b32.xlu0 %v1665, 68
      %v1673 = vpop.permute.xlu0 %1672
      %1674 = vrot.lane.b32.xlu0 %v1667, 68
      %v1675 = vpop.permute.xlu0 %1674
      %vm1676 = vcmp.lt.s32.totalorder %v590, 68
      %v1677 = vsel %vm1676, %v1669, %v1673
      %v1678 = vsel %vm1676, %v1671, %v1675
      %v1679 = vsel %vm1676, %v1673, %v1669
      %v1680 = vsel %vm1676, %v1675, %v1671
      %s1681 = scalar_lea.vmem %s1, 34
      %v1682 = vld [vmem:[%s1681] ss:$8 sm:$0x3]
      %v1684 = vlaneseq
      %v1685 = vshrl.u32 %v1684, 7
      %v1686 = vsub.s32 0, %v1685
      %v1687 = vrot.slane %v1682, %v1686
      %v1688 = vlaneseq
      %v1689 = vshrl.u32 %v1688, 7
      %v1690 = vsub.s32 1, %v1689
      %v1691 = vrot.slane %v1682, %v1690
      %v1694 = vmul.f32 %v1679, %v1687
      %v1695 = vmul.f32 %v1677, %v1691
      %v1696 = vmul.f32 %v1680, %v1687
      %v1697 = vmul.f32 %v1678, %v1691
      %v1698 = vpack.c.bf16 %v1696, %v1694
      %v1699 = vpack.c.bf16 %v1697, %v1695
      %1700 = vst [vmem:[#allocation2] sm:$0xff] %v1698
      %1701 = vst [vmem:[#allocation2 + $0x8] sm:$0xff] %v1699
      %1702 = vrot.lane.b32.xlu0 %v1664, 64
      %v1703 = vpop.permute.xlu0 %1702
      %1704 = vrot.lane.b32.xlu0 %v1666, 64
      %v1705 = vpop.permute.xlu0 %1704
      %1706 = vrot.lane.b32.xlu0 %v1665, 64
      %v1707 = vpop.permute.xlu0 %1706
      %1708 = vrot.lane.b32.xlu0 %v1667, 64
      %v1709 = vpop.permute.xlu0 %1708
      %vm1710 = vcmp.lt.s32.totalorder %v590, 64
      %v1711 = vsel %vm1710, %v1703, %v1707
      %v1712 = vsel %vm1710, %v1705, %v1709
      %v1713 = vsel %vm1710, %v1707, %v1703
      %v1714 = vsel %vm1710, %v1709, %v1705
      %s1715 = scalar_lea.vmem %s1, 35
      %v1716 = vld [vmem:[%s1715] ss:$8 sm:$0x3]
      %v1718 = vlaneseq
      %v1719 = vshrl.u32 %v1718, 7
      %v1720 = vsub.s32 0, %v1719
      %v1721 = vrot.slane %v1716, %v1720
      %v1722 = vlaneseq
      %v1723 = vshrl.u32 %v1722, 7
      %v1724 = vsub.s32 1, %v1723
      %v1725 = vrot.slane %v1716, %v1724
      %v1728 = vmul.f32 %v1713, %v1721
      %v1729 = vmul.f32 %v1711, %v1725
      %v1730 = vmul.f32 %v1714, %v1721
      %v1731 = vmul.f32 %v1712, %v1725
      %v1732 = vpack.c.bf16 %v1730, %v1728
      %v1733 = vpack.c.bf16 %v1731, %v1729
      %1734 = vst [vmem:[#allocation2 + $0x10] sm:$0xff] %v1732
      %1735 = vst [vmem:[#allocation2 + $0x18] sm:$0xff] %v1733
      %1736 = vrot.lane.b32.xlu0 %v1664, 60
      %v1737 = vpop.permute.xlu0 %1736
      %1738 = vrot.lane.b32.xlu0 %v1666, 60
      %v1739 = vpop.permute.xlu0 %1738
      %1740 = vrot.lane.b32.xlu0 %v1665, 60
      %v1741 = vpop.permute.xlu0 %1740
      %1742 = vrot.lane.b32.xlu0 %v1667, 60
      %v1743 = vpop.permute.xlu0 %1742
      %vm1744 = vcmp.lt.s32.totalorder %v590, 60
      %v1745 = vsel %vm1744, %v1737, %v1741
      %v1746 = vsel %vm1744, %v1739, %v1743
      %v1747 = vsel %vm1744, %v1741, %v1737
      %v1748 = vsel %vm1744, %v1743, %v1739
      %s1749 = scalar_lea.vmem %s1, 36
      %v1750 = vld [vmem:[%s1749] ss:$8 sm:$0x3]
      %v1752 = vlaneseq
      %v1753 = vshrl.u32 %v1752, 7
      %v1754 = vsub.s32 0, %v1753
      %v1755 = vrot.slane %v1750, %v1754
      %v1756 = vlaneseq
      %v1757 = vshrl.u32 %v1756, 7
      %v1758 = vsub.s32 1, %v1757
      %v1759 = vrot.slane %v1750, %v1758
      %v1762 = vmul.f32 %v1747, %v1755
      %v1763 = vmul.f32 %v1745, %v1759
      %v1764 = vmul.f32 %v1748, %v1755
      %v1765 = vmul.f32 %v1746, %v1759
      %v1766 = vpack.c.bf16 %v1764, %v1762
      %v1767 = vpack.c.bf16 %v1765, %v1763
      %1768 = vst [vmem:[#allocation2 + $0x20] sm:$0xff] %v1766
      %1769 = vst [vmem:[#allocation2 + $0x28] sm:$0xff] %v1767
      %1770 = vrot.lane.b32.xlu0 %v1664, 4
      %v1771 = vpop.permute.xlu0 %1770
      %1772 = vrot.lane.b32.xlu0 %v1666, 4
      %v1773 = vpop.permute.xlu0 %1772
      %1774 = vrot.lane.b32.xlu0 %v1665, 4
      %v1775 = vpop.permute.xlu0 %1774
      %1776 = vrot.lane.b32.xlu0 %v1667, 4
      %v1777 = vpop.permute.xlu0 %1776
      %vm1778 = vcmp.lt.s32.totalorder %v590, 4
      %v1779 = vsel %vm1778, %v1771, %v1775
      %v1780 = vsel %vm1778, %v1773, %v1777
      %v1781 = vsel %vm1778, %v1775, %v1771
      %v1782 = vsel %vm1778, %v1777, %v1773
      %s1783 = scalar_lea.vmem %s1, 37
      %v1784 = vld [vmem:[%s1783] ss:$8 sm:$0x3]
      %v1786 = vlaneseq
      %v1787 = vshrl.u32 %v1786, 7
      %v1788 = vsub.s32 0, %v1787
      %v1789 = vrot.slane %v1784, %v1788
      %v1790 = vlaneseq
      %v1791 = vshrl.u32 %v1790, 7
      %v1792 = vsub.s32 1, %v1791
      %v1793 = vrot.slane %v1784, %v1792
      %v1796 = vmul.f32 %v1781, %v1789
      %v1797 = vmul.f32 %v1779, %v1793
      %v1798 = vmul.f32 %v1782, %v1789
      %v1799 = vmul.f32 %v1780, %v1793
      %v1800 = vpack.c.bf16 %v1798, %v1796
      %v1801 = vpack.c.bf16 %v1799, %v1797
      %1802 = vst [vmem:[#allocation2 + $0x30] sm:$0xff] %v1800
      %1803 = vst [vmem:[#allocation2 + $0x38] sm:$0xff] %v1801
      %v1804 = vpack.c.bf16 %v1666, %v1664
      %v1805 = vpack.c.bf16 %v1667, %v1665
      %1806 = vst [vmem:[#allocation2 + $0x40] sm:$0xff] %v1804
      %1807 = vst [vmem:[#allocation2 + $0x48] sm:$0xff] %v1805
      %1808 = vrot.lane.b32.xlu0 %v1664, 124
      %v1809 = vpop.permute.xlu0 %1808
      %1810 = vrot.lane.b32.xlu0 %v1666, 124
      %v1811 = vpop.permute.xlu0 %1810
      %1812 = vrot.lane.b32.xlu0 %v1665, 124
      %v1813 = vpop.permute.xlu0 %1812
      %1814 = vrot.lane.b32.xlu0 %v1667, 124
      %v1815 = vpop.permute.xlu0 %1814
      %vm1816 = vcmp.lt.s32.totalorder %v590, 124
      %v1817 = vsel %vm1816, %v1809, %v1813
      %v1818 = vsel %vm1816, %v1811, %v1815
      %v1819 = vsel %vm1816, %v1813, %v1809
      %v1820 = vsel %vm1816, %v1815, %v1811
      %s1821 = scalar_lea.vmem %s1, 39
      %v1822 = vld [vmem:[%s1821] ss:$8 sm:$0x3]
      %v1824 = vlaneseq
      %v1825 = vshrl.u32 %v1824, 7
      %v1826 = vsub.s32 0, %v1825
      %v1827 = vrot.slane %v1822, %v1826
      %v1828 = vlaneseq
      %v1829 = vshrl.u32 %v1828, 7
      %v1830 = vsub.s32 1, %v1829
      %v1831 = vrot.slane %v1822, %v1830
      %v1834 = vmul.f32 %v1817, %v1827
      %v1835 = vmul.f32 %v1819, %v1831
      %v1836 = vmul.f32 %v1818, %v1827
      %v1837 = vmul.f32 %v1820, %v1831
      %v1838 = vpack.c.bf16 %v1836, %v1834
      %v1839 = vpack.c.bf16 %v1837, %v1835
      %1840 = vst [vmem:[#allocation2 + $0x50] sm:$0xff] %v1838
      %1841 = vst [vmem:[#allocation2 + $0x58] sm:$0xff] %v1839
      %s1842 = scalar_lea.vmem %s1, 48
      %v1843 = vld [vmem:[%s1842] ss:$8 sm:$0x3]
      %v1845 = vlaneseq
      %v1846 = vshrl.u32 %v1845, 7
      %v1847 = vsub.s32 0, %v1846
      %v1848 = vrot.slane %v1843, %v1847
      %v1849 = vlaneseq
      %v1850 = vshrl.u32 %v1849, 7
      %v1851 = vsub.s32 1, %v1850
      %v1852 = vrot.slane %v1843, %v1851
      %v1855 = vmul.f32 %v1677, %v1848
      %v1856 = vmul.f32 %v1679, %v1852
      %v1857 = vmul.f32 %v1678, %v1848
      %v1858 = vmul.f32 %v1680, %v1852
      %v1859 = vpack.c.bf16 %v1857, %v1855
      %v1860 = vpack.c.bf16 %v1858, %v1856
      %1861 = vst [vmem:[#allocation2 + $0x60] sm:$0xff] %v1859
      %1862 = vst [vmem:[#allocation2 + $0x68] sm:$0xff] %v1860
      %s1863 = scalar_lea.vmem %s1, 49
      %v1864 = vld [vmem:[%s1863] ss:$8 sm:$0x3]
      %v1866 = vlaneseq
      %v1867 = vshrl.u32 %v1866, 7
      %v1868 = vsub.s32 0, %v1867
      %v1869 = vrot.slane %v1864, %v1868
      %v1870 = vlaneseq
      %v1871 = vshrl.u32 %v1870, 7
      %v1872 = vsub.s32 1, %v1871
      %v1873 = vrot.slane %v1864, %v1872
      %v1876 = vmul.f32 %v1711, %v1869
      %v1877 = vmul.f32 %v1713, %v1873
      %v1878 = vmul.f32 %v1712, %v1869
      %v1879 = vmul.f32 %v1714, %v1873
      %v1880 = vpack.c.bf16 %v1878, %v1876
      %v1881 = vpack.c.bf16 %v1879, %v1877
      %1882 = vst [vmem:[#allocation2 + $0x70] sm:$0xff] %v1880
      %1883 = vst [vmem:[#allocation2 + $0x78] sm:$0xff] %v1881
      %s1884 = scalar_lea.vmem %s1, 50
      %v1885 = vld [vmem:[%s1884] ss:$8 sm:$0x3]
      %v1887 = vlaneseq
      %v1888 = vshrl.u32 %v1887, 7
      %v1889 = vsub.s32 0, %v1888
      %v1890 = vrot.slane %v1885, %v1889
      %v1891 = vlaneseq
      %v1892 = vshrl.u32 %v1891, 7
      %v1893 = vsub.s32 1, %v1892
      %v1894 = vrot.slane %v1885, %v1893
      %v1897 = vmul.f32 %v1745, %v1890
      %v1898 = vmul.f32 %v1747, %v1894
      %v1899 = vmul.f32 %v1746, %v1890
      %v1900 = vmul.f32 %v1748, %v1894
      %v1901 = vpack.c.bf16 %v1899, %v1897
      %v1902 = vpack.c.bf16 %v1900, %v1898
      %1903 = vst [vmem:[#allocation2 + $0x80] sm:$0xff] %v1901
      %1904 = vst [vmem:[#allocation2 + $0x88] sm:$0xff] %v1902
      %v1905 = vld [vmem:[%s8] sm:$0xff]
      %v1906 = vld [vmem:[%s8 + $0x8] sm:$0xff]
      %v1907 = vld [vmem:[#allocation2] sm:$0xff]
      %v1908 = vld [vmem:[#allocation2 + $0x8] sm:$0xff]
      %v1909 = vld [vmem:[#allocation2 + $0x10] sm:$0xff]
      %v1910 = vld [vmem:[#allocation2 + $0x18] sm:$0xff]
      %v1911 = vld [vmem:[#allocation2 + $0x20] sm:$0xff]
      %v1912 = vld [vmem:[#allocation2 + $0x28] sm:$0xff]
      %v1913 = vld [vmem:[#allocation2 + $0x30] sm:$0xff]
      %v1914 = vld [vmem:[#allocation2 + $0x38] sm:$0xff]
      %v1915 = vld [vmem:[#allocation2 + $0x40] sm:$0xff]
      %v1916 = vld [vmem:[#allocation2 + $0x48] sm:$0xff]
      %v1917 = vld [vmem:[#allocation2 + $0x50] sm:$0xff]
      %v1918 = vld [vmem:[#allocation2 + $0x58] sm:$0xff]
      %v1919 = vld [vmem:[#allocation2 + $0x60] sm:$0xff]
      %v1920 = vld [vmem:[#allocation2 + $0x68] sm:$0xff]
      %v1921 = vld [vmem:[#allocation2 + $0x70] sm:$0xff]
      %v1922 = vld [vmem:[#allocation2 + $0x78] sm:$0xff]
      %v1923 = vld [vmem:[#allocation2 + $0x80] sm:$0xff]
      %v1924 = vld [vmem:[#allocation2 + $0x88] sm:$0xff]
      %v1925 = vld [vmem:[%s9] sm:$0xff]
      %v1926 = vld [vmem:[%s9 + $0x8] sm:$0xff]
      %1928 = vset.pattern.permute.xlu0 0
      %1929 = vperm.xlu0 %1928, %v1925
      %v1930 = vpop.permute.xlu0 %1929
      %1933 = vset.pattern.permute.xlu0 0
      %1934 = vperm.xlu0 %1933, %v1926
      %v1935 = vpop.permute.xlu0 %1934
      %v1939 = vunpack.c.l.b16 %v1905
      %v1940 = vunpack.c.h.b16 %v1905
      %v1941 = vunpack.c.l.b16 %v1906
      %v1942 = vunpack.c.h.b16 %v1906
      %v1943 = vpack.c.b16 %v1941, %v1939
      %v1944 = vpack.c.b16 %v1942, %v1940
      %v1947 = vsel %vm899, %v1944, 0
      %1949 = vmatprep.subr.bf16.mxu0 %v1908
      %1950 = vmatpush1.bf16.msra.mxu0 %v1907
      %1951 = vmatprep.subr.bf16.mxu0 %v1910
      %1952 = vmatpush1.bf16.msra.mxu0 %v1909
      %1953 = vmatprep.subr.bf16.mxu0 %v1912
      %1954 = vmatpush1.bf16.msra.mxu0 %v1911
      %1955 = vmatprep.subr.bf16.mxu0 %v1914
      %1956 = vmatpush1.bf16.msra.mxu0 %v1913
      %1957 = vmatprep.subr.bf16.mxu0 %v1916
      %1958 = vmatpush1.bf16.msra.mxu0 %v1915
      %1959 = vmatprep.subr.bf16.mxu0 %v1918
      %1960 = vmatpush1.bf16.msra.mxu0 %v1917
      %1961 = vmatprep.subr.bf16.mxu0 %v1920
      %1962 = vmatpush1.bf16.msra.mxu0 %v1919
      %1963 = vmatprep.subr.bf16.mxu0 %v1922
      %1964 = vmatpush1.bf16.msra.mxu0 %v1921
      %1965 = vmatprep.subr.bf16.mxu0 %v1924
      %1966 = vmatpush1.bf16.msra.mxu0 %v1923
      %1967 = vmatprep.subr.bf16.mxu0 0
      %1968 = vmatpush1.bf16.msra.mxu0 0
      %1969 = vmatprep.subr.bf16.mxu0 0
      %1970 = vmatpush1.bf16.msra.mxu0 0
      %1971 = vmatprep.subr.bf16.mxu0 0
      %1972 = vmatpush1.bf16.msra.mxu0 0
      %1973 = vmatprep.subr.bf16.mxu0 0
      %1974 = vmatpush1.bf16.msra.mxu0 0
      %1975 = vmatprep.subr.bf16.mxu0 0
      %1976 = vmatpush1.bf16.msra.mxu0 0
      %1977 = vmatprep.subr.bf16.mxu0 0
      %1978 = vmatpush1.bf16.msra.mxu0 0
      %1979 = vmatprep.subr.bf16.mxu0 0
      %1980 = vmatpush1.bf16.msra.mxu0 0
      %1981 = vmatprep.mubr.bf16.mxu0 %v1947
      %1982 = vmatmul.mubr.bf16.gmra.mrb[0].mxu0 %v1943
      %v1983 = vpop.f32.mrb[0].mxu0
      %v1984 = vadd.f32 %v1930, %v1983
      %v1985 = vpop.f32.mrb[0].mxu0
      %v1986 = vadd.f32 %v1930, %v1985
      %v1987 = vpop.f32.mrb[0].mxu0
      %v1988 = vadd.f32 %v1935, %v1987
      %v1989 = vpop.f32.mrb[0].mxu0
      %v1990 = vadd.f32 %v1935, %v1989
      %1991 = vdwg.mxu0
      %v1992 = vmax.f32 %v1984, 0.0
      %v1993 = vmax.f32 %v1986, 0.0
      %v1994 = vmax.f32 %v1988, 0.0
      %v1995 = vmax.f32 %v1990, 0.0
      %1996 = vrot.lane.b32.xlu0 %v1992, 8
      %v1997 = vpop.permute.xlu0 %1996
      %1998 = vrot.lane.b32.xlu0 %v1994, 8
      %v1999 = vpop.permute.xlu0 %1998
      %2000 = vrot.lane.b32.xlu0 %v1993, 8
      %v2001 = vpop.permute.xlu0 %2000
      %2002 = vrot.lane.b32.xlu0 %v1995, 8
      %v2003 = vpop.permute.xlu0 %2002
      %vm2004 = vcmp.lt.s32.totalorder %v590, 8
      %v2005 = vsel %vm2004, %v1997, %v2001
      %v2006 = vsel %vm2004, %v1999, %v2003
      %v2007 = vsel %vm2004, %v2001, %v1997
      %v2008 = vsel %vm2004, %v2003, %v1999
      %s2009 = scalar_lea.vmem %s1, 51
      %v2010 = vld [vmem:[%s2009] ss:$8 sm:$0x3]
      %v2012 = vlaneseq
      %v2013 = vshrl.u32 %v2012, 7
      %v2014 = vsub.s32 0, %v2013
      %v2015 = vrot.slane %v2010, %v2014
      %v2016 = vlaneseq
      %v2017 = vshrl.u32 %v2016, 7
      %v2018 = vsub.s32 1, %v2017
      %v2019 = vrot.slane %v2010, %v2018
      %v2022 = vmul.f32 %v2005, %v2015
      %v2023 = vmul.f32 %v2007, %v2019
      %v2024 = vmul.f32 %v2006, %v2015
      %v2025 = vmul.f32 %v2008, %v2019
      %v2026 = vpack.c.bf16 %v2024, %v2022
      %v2027 = vpack.c.bf16 %v2025, %v2023
      %2028 = vst [vmem:[#allocation2] sm:$0xff] %v2026
      %2029 = vst [vmem:[#allocation2 + $0x8] sm:$0xff] %v2027
      %s2030 = scalar_lea.vmem %s1, 52
      %v2031 = vld [vmem:[%s2030] ss:$8 sm:$0x3]
      %v2033 = vlaneseq
      %v2034 = vshrl.u32 %v2033, 7
      %v2035 = vsub.s32 0, %v2034
      %v2036 = vrot.slane %v2031, %v2035
      %v2037 = vlaneseq
      %v2038 = vshrl.u32 %v2037, 7
      %v2039 = vsub.s32 1, %v2038
      %v2040 = vrot.slane %v2031, %v2039
      %v2043 = vmul.f32 %v1993, %v2036
      %v2044 = vmul.f32 %v1992, %v2040
      %v2045 = vmul.f32 %v1995, %v2036
      %v2046 = vmul.f32 %v1994, %v2040
      %v2047 = vpack.c.bf16 %v2045, %v2043
      %v2048 = vpack.c.bf16 %v2046, %v2044
      %2049 = vst [vmem:[#allocation2 + $0x10] sm:$0xff] %v2047
      %2050 = vst [vmem:[#allocation2 + $0x18] sm:$0xff] %v2048
      %2051 = vrot.lane.b32.xlu0 %v1992, 120
      %v2052 = vpop.permute.xlu0 %2051
      %2053 = vrot.lane.b32.xlu0 %v1994, 120
      %v2054 = vpop.permute.xlu0 %2053
      %2055 = vrot.lane.b32.xlu0 %v1993, 120
      %v2056 = vpop.permute.xlu0 %2055
      %2057 = vrot.lane.b32.xlu0 %v1995, 120
      %v2058 = vpop.permute.xlu0 %2057
      %vm2059 = vcmp.lt.s32.totalorder %v590, 120
      %v2060 = vsel %vm2059, %v2052, %v2056
      %v2061 = vsel %vm2059, %v2054, %v2058
      %v2062 = vsel %vm2059, %v2056, %v2052
      %v2063 = vsel %vm2059, %v2058, %v2054
      %s2064 = scalar_lea.vmem %s1, 53
      %v2065 = vld [vmem:[%s2064] ss:$8 sm:$0x3]
      %v2067 = vlaneseq
      %v2068 = vshrl.u32 %v2067, 7
      %v2069 = vsub.s32 0, %v2068
      %v2070 = vrot.slane %v2065, %v2069
      %v2071 = vlaneseq
      %v2072 = vshrl.u32 %v2071, 7
      %v2073 = vsub.s32 1, %v2072
      %v2074 = vrot.slane %v2065, %v2073
      %v2077 = vmul.f32 %v2062, %v2070
      %v2078 = vmul.f32 %v2060, %v2074
      %v2079 = vmul.f32 %v2063, %v2070
      %v2080 = vmul.f32 %v2061, %v2074
      %v2081 = vpack.c.bf16 %v2079, %v2077
      %v2082 = vpack.c.bf16 %v2080, %v2078
      %2083 = vst [vmem:[#allocation2 + $0x20] sm:$0xff] %v2081
      %2084 = vst [vmem:[#allocation2 + $0x28] sm:$0xff] %v2082
      %s2085 = scalar_lea.vmem %s1, 54
      %v2086 = vld [vmem:[%s2085] ss:$8 sm:$0x3]
      %v2088 = vlaneseq
      %v2089 = vshrl.u32 %v2088, 7
      %v2090 = vsub.s32 0, %v2089
      %v2091 = vrot.slane %v2086, %v2090
      %v2092 = vlaneseq
      %v2093 = vshrl.u32 %v2092, 7
      %v2094 = vsub.s32 1, %v2093
      %v2095 = vrot.slane %v2086, %v2094
      %v2098 = vmul.f32 %v2007, %v2091
      %v2099 = vmul.f32 %v2005, %v2095
      %v2100 = vmul.f32 %v2008, %v2091
      %v2101 = vmul.f32 %v2006, %v2095
      %v2102 = vpack.c.bf16 %v2100, %v2098
      %v2103 = vpack.c.bf16 %v2101, %v2099
      %2104 = vst [vmem:[#allocation2 + $0x30] sm:$0xff] %v2102
      %2105 = vst [vmem:[#allocation2 + $0x38] sm:$0xff] %v2103
      %v2106 = vpack.c.bf16 %v1994, %v1992
      %v2107 = vpack.c.bf16 %v1995, %v1993
      %2108 = vst [vmem:[#allocation2 + $0x40] sm:$0xff] %v2106
      %2109 = vst [vmem:[#allocation2 + $0x48] sm:$0xff] %v2107
      %s2110 = scalar_lea.vmem %s1, 64
      %v2111 = vld [vmem:[%s2110] ss:$8 sm:$0x3]
      %v2113 = vlaneseq
      %v2114 = vshrl.u32 %v2113, 7
      %v2115 = vsub.s32 0, %v2114
      %v2116 = vrot.slane %v2111, %v2115
      %v2117 = vlaneseq
      %v2118 = vshrl.u32 %v2117, 7
      %v2119 = vsub.s32 1, %v2118
      %v2120 = vrot.slane %v2111, %v2119
      %v2123 = vmul.f32 %v2060, %v2116
      %v2124 = vmul.f32 %v2062, %v2120
      %v2125 = vmul.f32 %v2061, %v2116
      %v2126 = vmul.f32 %v2063, %v2120
      %v2127 = vpack.c.bf16 %v2125, %v2123
      %v2128 = vpack.c.bf16 %v2126, %v2124
      %2129 = vst [vmem:[#allocation2 + $0x50] sm:$0xff] %v2127
      %2130 = vst [vmem:[#allocation2 + $0x58] sm:$0xff] %v2128
      %s2131 = scalar_lea.vmem %s1, 65
      %v2132 = vld [vmem:[%s2131] ss:$8 sm:$0x3]
      %v2134 = vlaneseq
      %v2135 = vshrl.u32 %v2134, 7
      %v2136 = vsub.s32 0, %v2135
      %v2137 = vrot.slane %v2132, %v2136
      %v2138 = vlaneseq
      %v2139 = vshrl.u32 %v2138, 7
      %v2140 = vsub.s32 1, %v2139
      %v2141 = vrot.slane %v2132, %v2140
      %v2144 = vmul.f32 %v2005, %v2137
      %v2145 = vmul.f32 %v2007, %v2141
      %v2146 = vmul.f32 %v2006, %v2137
      %v2147 = vmul.f32 %v2008, %v2141
      %v2148 = vpack.c.bf16 %v2146, %v2144
      %v2149 = vpack.c.bf16 %v2147, %v2145
      %2150 = vst [vmem:[#allocation2 + $0x60] sm:$0xff] %v2148
      %2151 = vst [vmem:[#allocation2 + $0x68] sm:$0xff] %v2149
      %s2152 = scalar_lea.vmem %s1, 66
      %v2153 = vld [vmem:[%s2152] ss:$8 sm:$0x3]
      %v2155 = vlaneseq
      %v2156 = vshrl.u32 %v2155, 7
      %v2157 = vsub.s32 0, %v2156
      %v2158 = vrot.slane %v2153, %v2157
      %v2159 = vlaneseq
      %v2160 = vshrl.u32 %v2159, 7
      %v2161 = vsub.s32 1, %v2160
      %v2162 = vrot.slane %v2153, %v2161
      %v2165 = vmul.f32 %v1993, %v2158
      %v2166 = vmul.f32 %v1992, %v2162
      %v2167 = vmul.f32 %v1995, %v2158
      %v2168 = vmul.f32 %v1994, %v2162
      %v2169 = vpack.c.bf16 %v2167, %v2165
      %v2170 = vpack.c.bf16 %v2168, %v2166
      %2171 = vst [vmem:[#allocation2 + $0x70] sm:$0xff] %v2169
      %2172 = vst [vmem:[#allocation2 + $0x78] sm:$0xff] %v2170
      %s2173 = scalar_lea.vmem %s1, 67
      %v2174 = vld [vmem:[%s2173] ss:$8 sm:$0x3]
      %v2176 = vlaneseq
      %v2177 = vshrl.u32 %v2176, 7
      %v2178 = vsub.s32 0, %v2177
      %v2179 = vrot.slane %v2174, %v2178
      %v2180 = vlaneseq
      %v2181 = vshrl.u32 %v2180, 7
      %v2182 = vsub.s32 1, %v2181
      %v2183 = vrot.slane %v2174, %v2182
      %v2186 = vmul.f32 %v2062, %v2179
      %v2187 = vmul.f32 %v2060, %v2183
      %v2188 = vmul.f32 %v2063, %v2179
      %v2189 = vmul.f32 %v2061, %v2183
      %v2190 = vpack.c.bf16 %v2188, %v2186
      %v2191 = vpack.c.bf16 %v2189, %v2187
      %2192 = vst [vmem:[#allocation2 + $0x80] sm:$0xff] %v2190
      %2193 = vst [vmem:[#allocation2 + $0x88] sm:$0xff] %v2191
      %v2194 = vld [vmem:[%s10] sm:$0xff]
      %v2195 = vld [vmem:[%s10 + $0x8] sm:$0xff]
      %v2196 = vld [vmem:[#allocation2] sm:$0xff]
      %v2197 = vld [vmem:[#allocation2 + $0x8] sm:$0xff]
      %v2198 = vld [vmem:[#allocation2 + $0x10] sm:$0xff]
      %v2199 = vld [vmem:[#allocation2 + $0x18] sm:$0xff]
      %v2200 = vld [vmem:[#allocation2 + $0x20] sm:$0xff]
      %v2201 = vld [vmem:[#allocation2 + $0x28] sm:$0xff]
      %v2202 = vld [vmem:[#allocation2 + $0x30] sm:$0xff]
      %v2203 = vld [vmem:[#allocation2 + $0x38] sm:$0xff]
      %v2204 = vld [vmem:[#allocation2 + $0x40] sm:$0xff]
      %v2205 = vld [vmem:[#allocation2 + $0x48] sm:$0xff]
      %v2206 = vld [vmem:[#allocation2 + $0x50] sm:$0xff]
      %v2207 = vld [vmem:[#allocation2 + $0x58] sm:$0xff]
      %v2208 = vld [vmem:[#allocation2 + $0x60] sm:$0xff]
      %v2209 = vld [vmem:[#allocation2 + $0x68] sm:$0xff]
      %v2210 = vld [vmem:[#allocation2 + $0x70] sm:$0xff]
      %v2211 = vld [vmem:[#allocation2 + $0x78] sm:$0xff]
      %v2212 = vld [vmem:[#allocation2 + $0x80] sm:$0xff]
      %v2213 = vld [vmem:[#allocation2 + $0x88] sm:$0xff]
      %v2214 = vld [vmem:[%s11] sm:$0xff]
      %v2215 = vld [vmem:[%s11 + $0x8] sm:$0xff]
      %2217 = vset.pattern.permute.xlu0 0
      %2218 = vperm.xlu0 %2217, %v2214
      %v2219 = vpop.permute.xlu0 %2218
      %2222 = vset.pattern.permute.xlu0 0
      %2223 = vperm.xlu0 %2222, %v2215
      %v2224 = vpop.permute.xlu0 %2223
      %v2228 = vunpack.c.l.b16 %v2194
      %v2229 = vunpack.c.h.b16 %v2194
      %v2230 = vunpack.c.l.b16 %v2195
      %v2231 = vunpack.c.h.b16 %v2195
      %v2232 = vpack.c.b16 %v2230, %v2228
      %v2233 = vpack.c.b16 %v2231, %v2229
      %v2236 = vsel %vm899, %v2233, 0
      %2238 = vmatprep.subr.bf16.mxu0 %v2197
      %2239 = vmatpush1.bf16.msra.mxu0 %v2196
      %2240 = vmatprep.subr.bf16.mxu0 %v2199
      %2241 = vmatpush1.bf16.msra.mxu0 %v2198
      %2242 = vmatprep.subr.bf16.mxu0 %v2201
      %2243 = vmatpush1.bf16.msra.mxu0 %v2200
      %2244 = vmatprep.subr.bf16.mxu0 %v2203
      %2245 = vmatpush1.bf16.msra.mxu0 %v2202
      %2246 = vmatprep.subr.bf16.mxu0 %v2205
      %2247 = vmatpush1.bf16.msra.mxu0 %v2204
      %2248 = vmatprep.subr.bf16.mxu0 %v2207
      %2249 = vmatpush1.bf16.msra.mxu0 %v2206
      %2250 = vmatprep.subr.bf16.mxu0 %v2209
      %2251 = vmatpush1.bf16.msra.mxu0 %v2208
      %2252 = vmatprep.subr.bf16.mxu0 %v2211
      %2253 = vmatpush1.bf16.msra.mxu0 %v2210
      %2254 = vmatprep.subr.bf16.mxu0 %v2213
      %2255 = vmatpush1.bf16.msra.mxu0 %v2212
      %2256 = vmatprep.subr.bf16.mxu0 0
      %2257 = vmatpush1.bf16.msra.mxu0 0
      %2258 = vmatprep.subr.bf16.mxu0 0
      %2259 = vmatpush1.bf16.msra.mxu0 0
      %2260 = vmatprep.subr.bf16.mxu0 0
      %2261 = vmatpush1.bf16.msra.mxu0 0
      %2262 = vmatprep.subr.bf16.mxu0 0
      %2263 = vmatpush1.bf16.msra.mxu0 0
      %2264 = vmatprep.subr.bf16.mxu0 0
      %2265 = vmatpush1.bf16.msra.mxu0 0
      %2266 = vmatprep.subr.bf16.mxu0 0
      %2267 = vmatpush1.bf16.msra.mxu0 0
      %2268 = vmatprep.subr.bf16.mxu0 0
      %2269 = vmatpush1.bf16.msra.mxu0 0
      %2270 = vmatprep.mubr.bf16.mxu0 %v2236
      %2271 = vmatmul.mubr.bf16.gmra.mrb[0].mxu0 %v2232
      %v2272 = vpop.f32.mrb[0].mxu0
      %v2273 = vadd.f32 %v2219, %v2272
      %v2274 = vpop.f32.mrb[0].mxu0
      %v2275 = vadd.f32 %v2219, %v2274
      %v2276 = vpop.f32.mrb[0].mxu0
      %v2277 = vadd.f32 %v2224, %v2276
      %v2278 = vpop.f32.mrb[0].mxu0
      %v2279 = vadd.f32 %v2224, %v2278
      %2280 = vdwg.mxu0
      %v2281 = vmax.f32 %v2273, 0.0
      %v2282 = vmax.f32 %v2275, 0.0
      %v2283 = vmax.f32 %v2277, 0.0
      %v2284 = vmax.f32 %v2279, 0.0
      %2285 = vrot.lane.b32.xlu0 %v2281, 68
      %v2286 = vpop.permute.xlu0 %2285
      %2287 = vrot.lane.b32.xlu0 %v2283, 68
      %v2288 = vpop.permute.xlu0 %2287
      %2289 = vrot.lane.b32.xlu0 %v2282, 68
      %v2290 = vpop.permute.xlu0 %2289
      %2291 = vrot.lane.b32.xlu0 %v2284, 68
      %v2292 = vpop.permute.xlu0 %2291
      %v2293 = vsel %vm1676, %v2286, %v2290
      %v2294 = vsel %vm1676, %v2288, %v2292
      %v2295 = vsel %vm1676, %v2290, %v2286
      %v2296 = vsel %vm1676, %v2292, %v2288
      %v2297 = vld [vmem:[%s1681] ss:$8 sm:$0x3]
      %v2299 = vlaneseq
      %v2300 = vshrl.u32 %v2299, 7
      %v2301 = vsub.s32 0, %v2300
      %v2302 = vrot.slane %v2297, %v2301
      %v2303 = vlaneseq
      %v2304 = vshrl.u32 %v2303, 7
      %v2305 = vsub.s32 1, %v2304
      %v2306 = vrot.slane %v2297, %v2305
      %v2309 = vmul.f32 %v2295, %v2302
      %v2310 = vmul.f32 %v2293, %v2306
      %v2311 = vmul.f32 %v2296, %v2302
      %v2312 = vmul.f32 %v2294, %v2306
      %v2313 = vpack.c.bf16 %v2311, %v2309
      %v2314 = vpack.c.bf16 %v2312, %v2310
      %2315 = vst [vmem:[#allocation2] sm:$0xff] %v2313
      %2316 = vst [vmem:[#allocation2 + $0x8] sm:$0xff] %v2314
      %2317 = vrot.lane.b32.xlu0 %v2281, 64
      %v2318 = vpop.permute.xlu0 %2317
      %2319 = vrot.lane.b32.xlu0 %v2283, 64
      %v2320 = vpop.permute.xlu0 %2319
      %2321 = vrot.lane.b32.xlu0 %v2282, 64
      %v2322 = vpop.permute.xlu0 %2321
      %2323 = vrot.lane.b32.xlu0 %v2284, 64
      %v2324 = vpop.permute.xlu0 %2323
      %v2325 = vsel %vm1710, %v2318, %v2322
      %v2326 = vsel %vm1710, %v2320, %v2324
      %v2327 = vsel %vm1710, %v2322, %v2318
      %v2328 = vsel %vm1710, %v2324, %v2320
      %v2329 = vld [vmem:[%s1715] ss:$8 sm:$0x3]
      %v2331 = vlaneseq
      %v2332 = vshrl.u32 %v2331, 7
      %v2333 = vsub.s32 0, %v2332
      %v2334 = vrot.slane %v2329, %v2333
      %v2335 = vlaneseq
      %v2336 = vshrl.u32 %v2335, 7
      %v2337 = vsub.s32 1, %v2336
      %v2338 = vrot.slane %v2329, %v2337
      %v2341 = vmul.f32 %v2327, %v2334
      %v2342 = vmul.f32 %v2325, %v2338
      %v2343 = vmul.f32 %v2328, %v2334
      %v2344 = vmul.f32 %v2326, %v2338
      %v2345 = vpack.c.bf16 %v2343, %v2341
      %v2346 = vpack.c.bf16 %v2344, %v2342
      %2347 = vst [vmem:[#allocation2 + $0x10] sm:$0xff] %v2345
      %2348 = vst [vmem:[#allocation2 + $0x18] sm:$0xff] %v2346
      %2349 = vrot.lane.b32.xlu0 %v2281, 60
      %v2350 = vpop.permute.xlu0 %2349
      %2351 = vrot.lane.b32.xlu0 %v2283, 60
      %v2352 = vpop.permute.xlu0 %2351
      %2353 = vrot.lane.b32.xlu0 %v2282, 60
      %v2354 = vpop.permute.xlu0 %2353
      %2355 = vrot.lane.b32.xlu0 %v2284, 60
      %v2356 = vpop.permute.xlu0 %2355
      %v2357 = vsel %vm1744, %v2350, %v2354
      %v2358 = vsel %vm1744, %v2352, %v2356
      %v2359 = vsel %vm1744, %v2354, %v2350
      %v2360 = vsel %vm1744, %v2356, %v2352
      %v2361 = vld [vmem:[%s1749] ss:$8 sm:$0x3]
      %v2363 = vlaneseq
      %v2364 = vshrl.u32 %v2363, 7
      %v2365 = vsub.s32 0, %v2364
      %v2366 = vrot.slane %v2361, %v2365
      %v2367 = vlaneseq
      %v2368 = vshrl.u32 %v2367, 7
      %v2369 = vsub.s32 1, %v2368
      %v2370 = vrot.slane %v2361, %v2369
      %v2373 = vmul.f32 %v2359, %v2366
      %v2374 = vmul.f32 %v2357, %v2370
      %v2375 = vmul.f32 %v2360, %v2366
      %v2376 = vmul.f32 %v2358, %v2370
      %v2377 = vpack.c.bf16 %v2375, %v2373
      %v2378 = vpack.c.bf16 %v2376, %v2374
      %2379 = vst [vmem:[#allocation2 + $0x20] sm:$0xff] %v2377
      %2380 = vst [vmem:[#allocation2 + $0x28] sm:$0xff] %v2378
      %2381 = vrot.lane.b32.xlu0 %v2281, 4
      %v2382 = vpop.permute.xlu0 %2381
      %2383 = vrot.lane.b32.xlu0 %v2283, 4
      %v2384 = vpop.permute.xlu0 %2383
      %2385 = vrot.lane.b32.xlu0 %v2282, 4
      %v2386 = vpop.permute.xlu0 %2385
      %2387 = vrot.lane.b32.xlu0 %v2284, 4
      %v2388 = vpop.permute.xlu0 %2387
      %v2389 = vsel %vm1778, %v2382, %v2386
      %v2390 = vsel %vm1778, %v2384, %v2388
      %v2391 = vsel %vm1778, %v2386, %v2382
      %v2392 = vsel %vm1778, %v2388, %v2384
      %v2393 = vld [vmem:[%s1783] ss:$8 sm:$0x3]
      %v2395 = vlaneseq
      %v2396 = vshrl.u32 %v2395, 7
      %v2397 = vsub.s32 0, %v2396
      %v2398 = vrot.slane %v2393, %v2397
      %v2399 = vlaneseq
      %v2400 = vshrl.u32 %v2399, 7
      %v2401 = vsub.s32 1, %v2400
      %v2402 = vrot.slane %v2393, %v2401
      %v2405 = vmul.f32 %v2391, %v2398
      %v2406 = vmul.f32 %v2389, %v2402
      %v2407 = vmul.f32 %v2392, %v2398
      %v2408 = vmul.f32 %v2390, %v2402
      %v2409 = vpack.c.bf16 %v2407, %v2405
      %v2410 = vpack.c.bf16 %v2408, %v2406
      %2411 = vst [vmem:[#allocation2 + $0x30] sm:$0xff] %v2409
      %2412 = vst [vmem:[#allocation2 + $0x38] sm:$0xff] %v2410
      %v2413 = vpack.c.bf16 %v2283, %v2281
      %v2414 = vpack.c.bf16 %v2284, %v2282
      %2415 = vst [vmem:[#allocation2 + $0x40] sm:$0xff] %v2413
      %2416 = vst [vmem:[#allocation2 + $0x48] sm:$0xff] %v2414
      %2417 = vrot.lane.b32.xlu0 %v2281, 124
      %v2418 = vpop.permute.xlu0 %2417
      %2419 = vrot.lane.b32.xlu0 %v2283, 124
      %v2420 = vpop.permute.xlu0 %2419
      %2421 = vrot.lane.b32.xlu0 %v2282, 124
      %v2422 = vpop.permute.xlu0 %2421
      %2423 = vrot.lane.b32.xlu0 %v2284, 124
      %v2424 = vpop.permute.xlu0 %2423
      %v2425 = vsel %vm1816, %v2418, %v2422
      %v2426 = vsel %vm1816, %v2420, %v2424
      %v2427 = vsel %vm1816, %v2422, %v2418
      %v2428 = vsel %vm1816, %v2424, %v2420
      %v2429 = vld [vmem:[%s1821] ss:$8 sm:$0x3]
      %v2431 = vlaneseq
      %v2432 = vshrl.u32 %v2431, 7
      %v2433 = vsub.s32 0, %v2432
      %v2434 = vrot.slane %v2429, %v2433
      %v2435 = vlaneseq
      %v2436 = vshrl.u32 %v2435, 7
      %v2437 = vsub.s32 1, %v2436
      %v2438 = vrot.slane %v2429, %v2437
      %v2441 = vmul.f32 %v2425, %v2434
      %v2442 = vmul.f32 %v2427, %v2438
      %v2443 = vmul.f32 %v2426, %v2434
      %v2444 = vmul.f32 %v2428, %v2438
      %v2445 = vpack.c.bf16 %v2443, %v2441
      %v2446 = vpack.c.bf16 %v2444, %v2442
      %2447 = vst [vmem:[#allocation2 + $0x50] sm:$0xff] %v2445
      %2448 = vst [vmem:[#allocation2 + $0x58] sm:$0xff] %v2446
      %v2449 = vld [vmem:[%s1842] ss:$8 sm:$0x3]
      %v2451 = vlaneseq
      %v2452 = vshrl.u32 %v2451, 7
      %v2453 = vsub.s32 0, %v2452
      %v2454 = vrot.slane %v2449, %v2453
      %v2455 = vlaneseq
      %v2456 = vshrl.u32 %v2455, 7
      %v2457 = vsub.s32 1, %v2456
      %v2458 = vrot.slane %v2449, %v2457
      %v2461 = vmul.f32 %v2293, %v2454
      %v2462 = vmul.f32 %v2295, %v2458
      %v2463 = vmul.f32 %v2294, %v2454
      %v2464 = vmul.f32 %v2296, %v2458
      %v2465 = vpack.c.bf16 %v2463, %v2461
      %v2466 = vpack.c.bf16 %v2464, %v2462
      %2467 = vst [vmem:[#allocation2 + $0x60] sm:$0xff] %v2465
      %2468 = vst [vmem:[#allocation2 + $0x68] sm:$0xff] %v2466
      %v2469 = vld [vmem:[%s1863] ss:$8 sm:$0x3]
      %v2471 = vlaneseq
      %v2472 = vshrl.u32 %v2471, 7
      %v2473 = vsub.s32 0, %v2472
      %v2474 = vrot.slane %v2469, %v2473
      %v2475 = vlaneseq
      %v2476 = vshrl.u32 %v2475, 7
      %v2477 = vsub.s32 1, %v2476
      %v2478 = vrot.slane %v2469, %v2477
      %v2481 = vmul.f32 %v2325, %v2474
      %v2482 = vmul.f32 %v2327, %v2478
      %v2483 = vmul.f32 %v2326, %v2474
      %v2484 = vmul.f32 %v2328, %v2478
      %v2485 = vpack.c.bf16 %v2483, %v2481
      %v2486 = vpack.c.bf16 %v2484, %v2482
      %2487 = vst [vmem:[#allocation2 + $0x70] sm:$0xff] %v2485
      %2488 = vst [vmem:[#allocation2 + $0x78] sm:$0xff] %v2486
      %v2489 = vld [vmem:[%s1884] ss:$8 sm:$0x3]
      %v2491 = vlaneseq
      %v2492 = vshrl.u32 %v2491, 7
      %v2493 = vsub.s32 0, %v2492
      %v2494 = vrot.slane %v2489, %v2493
      %v2495 = vlaneseq
      %v2496 = vshrl.u32 %v2495, 7
      %v2497 = vsub.s32 1, %v2496
      %v2498 = vrot.slane %v2489, %v2497
      %v2501 = vmul.f32 %v2357, %v2494
      %v2502 = vmul.f32 %v2359, %v2498
      %v2503 = vmul.f32 %v2358, %v2494
      %v2504 = vmul.f32 %v2360, %v2498
      %v2505 = vpack.c.bf16 %v2503, %v2501
      %v2506 = vpack.c.bf16 %v2504, %v2502
      %2507 = vst [vmem:[#allocation2 + $0x80] sm:$0xff] %v2505
      %2508 = vst [vmem:[#allocation2 + $0x88] sm:$0xff] %v2506
      %2509 = vrot.lane.b32.xlu0 %v1992, 68
      %v2510 = vpop.permute.xlu0 %2509
      %2511 = vrot.lane.b32.xlu0 %v1994, 68
      %v2512 = vpop.permute.xlu0 %2511
      %2513 = vrot.lane.b32.xlu0 %v1993, 68
      %v2514 = vpop.permute.xlu0 %2513
      %2515 = vrot.lane.b32.xlu0 %v1995, 68
      %v2516 = vpop.permute.xlu0 %2515
      %v2517 = vsel %vm1676, %v2510, %v2514
      %v2518 = vsel %vm1676, %v2512, %v2516
      %v2519 = vsel %vm1676, %v2514, %v2510
      %v2520 = vsel %vm1676, %v2516, %v2512
      %v2521 = vld [vmem:[%s1681] ss:$8 sm:$0x3]
      %v2523 = vlaneseq
      %v2524 = vshrl.u32 %v2523, 7
      %v2525 = vsub.s32 0, %v2524
      %v2526 = vrot.slane %v2521, %v2525
      %v2527 = vlaneseq
      %v2528 = vshrl.u32 %v2527, 7
      %v2529 = vsub.s32 1, %v2528
      %v2530 = vrot.slane %v2521, %v2529
      %v2533 = vmul.f32 %v2519, %v2526
      %v2534 = vmul.f32 %v2517, %v2530
      %v2535 = vmul.f32 %v2520, %v2526
      %v2536 = vmul.f32 %v2518, %v2530
      %v2537 = vpack.c.bf16 %v2535, %v2533
      %v2538 = vpack.c.bf16 %v2536, %v2534
      %2539 = vst [vmem:[#allocation2 + $0x90] sm:$0xff] %v2537
      %2540 = vst [vmem:[#allocation2 + $0x98] sm:$0xff] %v2538
      %2541 = vrot.lane.b32.xlu0 %v1992, 64
      %v2542 = vpop.permute.xlu0 %2541
      %2543 = vrot.lane.b32.xlu0 %v1994, 64
      %v2544 = vpop.permute.xlu0 %2543
      %2545 = vrot.lane.b32.xlu0 %v1993, 64
      %v2546 = vpop.permute.xlu0 %2545
      %2547 = vrot.lane.b32.xlu0 %v1995, 64
      %v2548 = vpop.permute.xlu0 %2547
      %v2549 = vsel %vm1710, %v2542, %v2546
      %v2550 = vsel %vm1710, %v2544, %v2548
      %v2551 = vsel %vm1710, %v2546, %v2542
      %v2552 = vsel %vm1710, %v2548, %v2544
      %v2553 = vld [vmem:[%s1715] ss:$8 sm:$0x3]
      %v2555 = vlaneseq
      %v2556 = vshrl.u32 %v2555, 7
      %v2557 = vsub.s32 0, %v2556
      %v2558 = vrot.slane %v2553, %v2557
      %v2559 = vlaneseq
      %v2560 = vshrl.u32 %v2559, 7
      %v2561 = vsub.s32 1, %v2560
      %v2562 = vrot.slane %v2553, %v2561
      %v2565 = vmul.f32 %v2551, %v2558
      %v2566 = vmul.f32 %v2549, %v2562
      %v2567 = vmul.f32 %v2552, %v2558
      %v2568 = vmul.f32 %v2550, %v2562
      %v2569 = vpack.c.bf16 %v2567, %v2565
      %v2570 = vpack.c.bf16 %v2568, %v2566
      %2571 = vst [vmem:[#allocation2 + $0xa0] sm:$0xff] %v2569
      %2572 = vst [vmem:[#allocation2 + $0xa8] sm:$0xff] %v2570
      %2573 = vrot.lane.b32.xlu0 %v1992, 60
      %v2574 = vpop.permute.xlu0 %2573
      %2575 = vrot.lane.b32.xlu0 %v1994, 60
      %v2576 = vpop.permute.xlu0 %2575
      %2577 = vrot.lane.b32.xlu0 %v1993, 60
      %v2578 = vpop.permute.xlu0 %2577
      %2579 = vrot.lane.b32.xlu0 %v1995, 60
      %v2580 = vpop.permute.xlu0 %2579
      %v2581 = vsel %vm1744, %v2574, %v2578
      %v2582 = vsel %vm1744, %v2576, %v2580
      %v2583 = vsel %vm1744, %v2578, %v2574
      %v2584 = vsel %vm1744, %v2580, %v2576
      %v2585 = vld [vmem:[%s1749] ss:$8 sm:$0x3]
      %v2587 = vlaneseq
      %v2588 = vshrl.u32 %v2587, 7
      %v2589 = vsub.s32 0, %v2588
      %v2590 = vrot.slane %v2585, %v2589
      %v2591 = vlaneseq
      %v2592 = vshrl.u32 %v2591, 7
      %v2593 = vsub.s32 1, %v2592
      %v2594 = vrot.slane %v2585, %v2593
      %v2597 = vmul.f32 %v2583, %v2590
      %v2598 = vmul.f32 %v2581, %v2594
      %v2599 = vmul.f32 %v2584, %v2590
      %v2600 = vmul.f32 %v2582, %v2594
      %v2601 = vpack.c.bf16 %v2599, %v2597
      %v2602 = vpack.c.bf16 %v2600, %v2598
      %2603 = vst [vmem:[#allocation2 + $0xb0] sm:$0xff] %v2601
      %2604 = vst [vmem:[#allocation2 + $0xb8] sm:$0xff] %v2602
      %2605 = vrot.lane.b32.xlu0 %v1992, 4
      %v2606 = vpop.permute.xlu0 %2605
      %2607 = vrot.lane.b32.xlu0 %v1994, 4
      %v2608 = vpop.permute.xlu0 %2607
      %2609 = vrot.lane.b32.xlu0 %v1993, 4
      %v2610 = vpop.permute.xlu0 %2609
      %2611 = vrot.lane.b32.xlu0 %v1995, 4
      %v2612 = vpop.permute.xlu0 %2611
      %v2613 = vsel %vm1778, %v2606, %v2610
      %v2614 = vsel %vm1778, %v2608, %v2612
      %v2615 = vsel %vm1778, %v2610, %v2606
      %v2616 = vsel %vm1778, %v2612, %v2608
      %v2617 = vld [vmem:[%s1783] ss:$8 sm:$0x3]
      %v2619 = vlaneseq
      %v2620 = vshrl.u32 %v2619, 7
      %v2621 = vsub.s32 0, %v2620
      %v2622 = vrot.slane %v2617, %v2621
      %v2623 = vlaneseq
      %v2624 = vshrl.u32 %v2623, 7
      %v2625 = vsub.s32 1, %v2624
      %v2626 = vrot.slane %v2617, %v2625
      %v2629 = vmul.f32 %v2615, %v2622
      %v2630 = vmul.f32 %v2613, %v2626
      %v2631 = vmul.f32 %v2616, %v2622
      %v2632 = vmul.f32 %v2614, %v2626
      %v2633 = vpack.c.bf16 %v2631, %v2629
      %v2634 = vpack.c.bf16 %v2632, %v2630
      %2635 = vst [vmem:[#allocation2 + $0xc0] sm:$0xff] %v2633
      %2636 = vst [vmem:[#allocation2 + $0xc8] sm:$0xff] %v2634
      %2637 = vst [vmem:[#allocation2 + $0xd0] sm:$0xff] %v2106
      %2638 = vst [vmem:[#allocation2 + $0xd8] sm:$0xff] %v2107
      %2639 = vrot.lane.b32.xlu0 %v1992, 124
      %v2640 = vpop.permute.xlu0 %2639
      %2641 = vrot.lane.b32.xlu0 %v1994, 124
      %v2642 = vpop.permute.xlu0 %2641
      %2643 = vrot.lane.b32.xlu0 %v1993, 124
      %v2644 = vpop.permute.xlu0 %2643
      %2645 = vrot.lane.b32.xlu0 %v1995, 124
      %v2646 = vpop.permute.xlu0 %2645
      %v2647 = vsel %vm1816, %v2640, %v2644
      %v2648 = vsel %vm1816, %v2642, %v2646
      %v2649 = vsel %vm1816, %v2644, %v2640
      %v2650 = vsel %vm1816, %v2646, %v2642
      %v2651 = vld [vmem:[%s1821] ss:$8 sm:$0x3]
      %v2653 = vlaneseq
      %v2654 = vshrl.u32 %v2653, 7
      %v2655 = vsub.s32 0, %v2654
      %v2656 = vrot.slane %v2651, %v2655
      %v2657 = vlaneseq
      %v2658 = vshrl.u32 %v2657, 7
      %v2659 = vsub.s32 1, %v2658
      %v2660 = vrot.slane %v2651, %v2659
      %v2663 = vmul.f32 %v2647, %v2656
      %v2664 = vmul.f32 %v2649, %v2660
      %v2665 = vmul.f32 %v2648, %v2656
      %v2666 = vmul.f32 %v2650, %v2660
      %v2667 = vpack.c.bf16 %v2665, %v2663
      %v2668 = vpack.c.bf16 %v2666, %v2664
      %2669 = vst [vmem:[#allocation2 + $0xe0] sm:$0xff] %v2667
      %2670 = vst [vmem:[#allocation2 + $0xe8] sm:$0xff] %v2668
      %v2671 = vld [vmem:[%s1842] ss:$8 sm:$0x3]
      %v2673 = vlaneseq
      %v2674 = vshrl.u32 %v2673, 7
      %v2675 = vsub.s32 0, %v2674
      %v2676 = vrot.slane %v2671, %v2675
      %v2677 = vlaneseq
      %v2678 = vshrl.u32 %v2677, 7
      %v2679 = vsub.s32 1, %v2678
      %v2680 = vrot.slane %v2671, %v2679
      %v2683 = vmul.f32 %v2517, %v2676
      %v2684 = vmul.f32 %v2519, %v2680
      %v2685 = vmul.f32 %v2518, %v2676
      %v2686 = vmul.f32 %v2520, %v2680
      %v2687 = vpack.c.bf16 %v2685, %v2683
      %v2688 = vpack.c.bf16 %v2686, %v2684
      %2689 = vst [vmem:[#allocation2 + $0xf0] sm:$0xff] %v2687
      %2690 = vst [vmem:[#allocation2 + $0xf8] sm:$0xff] %v2688
      %v2691 = vld [vmem:[%s1863] ss:$8 sm:$0x3]
      %v2693 = vlaneseq
      %v2694 = vshrl.u32 %v2693, 7
      %v2695 = vsub.s32 0, %v2694
      %v2696 = vrot.slane %v2691, %v2695
      %v2697 = vlaneseq
      %v2698 = vshrl.u32 %v2697, 7
      %v2699 = vsub.s32 1, %v2698
      %v2700 = vrot.slane %v2691, %v2699
      %v2703 = vmul.f32 %v2549, %v2696
      %v2704 = vmul.f32 %v2551, %v2700
      %v2705 = vmul.f32 %v2550, %v2696
      %v2706 = vmul.f32 %v2552, %v2700
      %v2707 = vpack.c.bf16 %v2705, %v2703
      %v2708 = vpack.c.bf16 %v2706, %v2704
      %2709 = vst [vmem:[#allocation2 + $0x100] sm:$0xff] %v2707
      %2710 = vst [vmem:[#allocation2 + $0x108] sm:$0xff] %v2708
      %v2711 = vld [vmem:[%s1884] ss:$8 sm:$0x3]
      %v2713 = vlaneseq
      %v2714 = vshrl.u32 %v2713, 7
      %v2715 = vsub.s32 0, %v2714
      %v2716 = vrot.slane %v2711, %v2715
      %v2717 = vlaneseq
      %v2718 = vshrl.u32 %v2717, 7
      %v2719 = vsub.s32 1, %v2718
      %v2720 = vrot.slane %v2711, %v2719
      %v2723 = vmul.f32 %v2581, %v2716
      %v2724 = vmul.f32 %v2583, %v2720
      %v2725 = vmul.f32 %v2582, %v2716
      %v2726 = vmul.f32 %v2584, %v2720
      %v2727 = vpack.c.bf16 %v2725, %v2723
      %v2728 = vpack.c.bf16 %v2726, %v2724
      %2729 = vst [vmem:[#allocation2 + $0x110] sm:$0xff] %v2727
      %2730 = vst [vmem:[#allocation2 + $0x118] sm:$0xff] %v2728
      %v2731 = vld [vmem:[%s12] sm:$0xff]
      %v2732 = vld [vmem:[%s12 + $0x8] sm:$0xf]
      %v2733 = vld [vmem:[%s12 + $0xc] sm:$0xff]
      %v2734 = vld [vmem:[%s12 + $0x14] sm:$0xf]
      %v2735 = vld [vmem:[#allocation2] sm:$0xff]
      %v2736 = vld [vmem:[#allocation2 + $0x8] sm:$0xff]
      %v2737 = vld [vmem:[#allocation2 + $0x10] sm:$0xff]
      %v2738 = vld [vmem:[#allocation2 + $0x18] sm:$0xff]
      %v2739 = vld [vmem:[#allocation2 + $0x20] sm:$0xff]
      %v2740 = vld [vmem:[#allocation2 + $0x28] sm:$0xff]
      %v2741 = vld [vmem:[#allocation2 + $0x30] sm:$0xff]
      %v2742 = vld [vmem:[#allocation2 + $0x38] sm:$0xff]
      %v2743 = vld [vmem:[#allocation2 + $0x40] sm:$0xff]
      %v2744 = vld [vmem:[#allocation2 + $0x48] sm:$0xff]
      %v2745 = vld [vmem:[#allocation2 + $0x50] sm:$0xff]
      %v2746 = vld [vmem:[#allocation2 + $0x58] sm:$0xff]
      %v2747 = vld [vmem:[#allocation2 + $0x60] sm:$0xff]
      %v2748 = vld [vmem:[#allocation2 + $0x68] sm:$0xff]
      %v2749 = vld [vmem:[#allocation2 + $0x70] sm:$0xff]
      %v2750 = vld [vmem:[#allocation2 + $0x78] sm:$0xff]
      %v2751 = vld [vmem:[#allocation2 + $0x80] sm:$0xff]
      %v2752 = vld [vmem:[#allocation2 + $0x88] sm:$0xff]
      %v2753 = vld [vmem:[#allocation2 + $0x90] sm:$0xff]
      %v2754 = vld [vmem:[#allocation2 + $0x98] sm:$0xff]
      %v2755 = vld [vmem:[#allocation2 + $0xa0] sm:$0xff]
      %v2756 = vld [vmem:[#allocation2 + $0xa8] sm:$0xff]
      %v2757 = vld [vmem:[#allocation2 + $0xb0] sm:$0xff]
      %v2758 = vld [vmem:[#allocation2 + $0xb8] sm:$0xff]
      %v2759 = vld [vmem:[#allocation2 + $0xc0] sm:$0xff]
      %v2760 = vld [vmem:[#allocation2 + $0xc8] sm:$0xff]
      %v2761 = vld [vmem:[#allocation2 + $0xd0] sm:$0xff]
      %v2762 = vld [vmem:[#allocation2 + $0xd8] sm:$0xff]
      %v2763 = vld [vmem:[#allocation2 + $0xe0] sm:$0xff]
      %v2764 = vld [vmem:[#allocation2 + $0xe8] sm:$0xff]
      %v2765 = vld [vmem:[#allocation2 + $0xf0] sm:$0xff]
      %v2766 = vld [vmem:[#allocation2 + $0xf8] sm:$0xff]
      %v2767 = vld [vmem:[#allocation2 + $0x100] sm:$0xff]
      %v2768 = vld [vmem:[#allocation2 + $0x108] sm:$0xff]
      %v2769 = vld [vmem:[#allocation2 + $0x110] sm:$0xff]
      %v2770 = vld [vmem:[#allocation2 + $0x118] sm:$0xff]
      %v2771 = vld [vmem:[%s13] sm:$0xff]
      %v2772 = vld [vmem:[%s13 + $0x8] sm:$0xff]
      %2774 = vset.pattern.permute.xlu0 0
      %2775 = vperm.xlu0 %2774, %v2771
      %v2776 = vpop.permute.xlu0 %2775
      %2779 = vset.pattern.permute.xlu0 0
      %2780 = vperm.xlu0 %2779, %v2772
      %v2781 = vpop.permute.xlu0 %2780
      %v2787 = vunpack.c.l.b16 %v2731
      %v2788 = vunpack.c.h.b16 %v2731
      %v2789 = vunpack.c.l.b16 %v2732
      %v2790 = vunpack.c.l.b16 %v2733
      %v2791 = vunpack.c.h.b16 %v2733
      %v2792 = vunpack.c.l.b16 %v2734
      %v2793 = vpack.c.b16 %v2790, %v2787
      %v2794 = vpack.c.b16 %v2791, %v2788
      %v2795 = vpack.c.b16 %v2792, %v2789
      %vm2798 = vcmask 261120
      %v2800 = vsel %vm2798, %v2795, 0
      %2802 = vmatprep.subr.bf16.mxu0 %v2736
      %2803 = vmatpush1.bf16.msra.mxu0 %v2735
      %2804 = vmatprep.subr.bf16.mxu0 %v2738
      %2805 = vmatpush1.bf16.msra.mxu0 %v2737
      %2806 = vmatprep.subr.bf16.mxu0 %v2740
      %2807 = vmatpush1.bf16.msra.mxu0 %v2739
      %2808 = vmatprep.subr.bf16.mxu0 %v2742
      %2809 = vmatpush1.bf16.msra.mxu0 %v2741
      %2810 = vmatprep.subr.bf16.mxu0 %v2744
      %2811 = vmatpush1.bf16.msra.mxu0 %v2743
      %2812 = vmatprep.subr.bf16.mxu0 %v2746
      %2813 = vmatpush1.bf16.msra.mxu0 %v2745
      %2814 = vmatprep.subr.bf16.mxu0 %v2748
      %2815 = vmatpush1.bf16.msra.mxu0 %v2747
      %2816 = vmatprep.subr.bf16.mxu0 %v2750
      %2817 = vmatpush1.bf16.msra.mxu0 %v2749
      %2818 = vmatprep.subr.bf16.mxu0 %v2752
      %2819 = vmatpush1.bf16.msra.mxu0 %v2751
      %2820 = vmatprep.subr.bf16.mxu0 %v2754
      %2821 = vmatpush1.bf16.msra.mxu0 %v2753
      %2822 = vmatprep.subr.bf16.mxu0 %v2756
      %2823 = vmatpush1.bf16.msra.mxu0 %v2755
      %2824 = vmatprep.subr.bf16.mxu0 %v2758
      %2825 = vmatpush1.bf16.msra.mxu0 %v2757
      %2826 = vmatprep.subr.bf16.mxu0 %v2760
      %2827 = vmatpush1.bf16.msra.mxu0 %v2759
      %2828 = vmatprep.subr.bf16.mxu0 %v2762
      %2829 = vmatpush1.bf16.msra.mxu0 %v2761
      %2830 = vmatprep.subr.bf16.mxu0 %v2764
      %2831 = vmatpush1.bf16.msra.mxu0 %v2763
      %2832 = vmatprep.subr.bf16.mxu0 %v2766
      %2833 = vmatpush1.bf16.msra.mxu0 %v2765
      %2834 = vmatprep.mubr.bf16.mxu0 %v2794
      %2835 = vmatmul.mubr.bf16.gmra.mrb[0].mxu0 %v2793
      %v2836 = vpop.f32.mrb[0].mxu0
      %v2837 = vadd.f32 %v2776, %v2836
      %v2838 = vpop.f32.mrb[0].mxu0
      %v2839 = vadd.f32 %v2776, %v2838
      %v2840 = vpop.f32.mrb[0].mxu0
      %v2841 = vadd.f32 %v2781, %v2840
      %v2842 = vpop.f32.mrb[0].mxu0
      %v2843 = vadd.f32 %v2781, %v2842
      %2844 = vdwg.mxu0
      %2845 = vmatprep.subr.bf16.mxu0 %v2768
      %2846 = vmatpush1.bf16.msra.mxu0 %v2767
      %2847 = vmatprep.subr.bf16.mxu0 %v2770
      %2848 = vmatpush1.bf16.msra.mxu0 %v2769
      %2849 = vmatprep.subr.bf16.mxu0 0
      %2850 = vmatpush1.bf16.msra.mxu0 0
      %2851 = vmatprep.subr.bf16.mxu0 0
      %2852 = vmatpush1.bf16.msra.mxu0 0
      %2853 = vmatprep.subr.bf16.mxu0 0
      %2854 = vmatpush1.bf16.msra.mxu0 0
      %2855 = vmatprep.subr.bf16.mxu0 0
      %2856 = vmatpush1.bf16.msra.mxu0 0
      %2857 = vmatprep.subr.bf16.mxu0 0
      %2858 = vmatpush1.bf16.msra.mxu0 0
      %2859 = vmatprep.subr.bf16.mxu0 0
      %2860 = vmatpush1.bf16.msra.mxu0 0
      %2861 = vmatprep.subr.bf16.mxu0 0
      %2862 = vmatpush1.bf16.msra.mxu0 0
      %2863 = vmatprep.subr.bf16.mxu0 0
      %2864 = vmatpush1.bf16.msra.mxu0 0
      %2865 = vmatprep.subr.bf16.mxu0 0
      %2866 = vmatpush1.bf16.msra.mxu0 0
      %2867 = vmatprep.subr.bf16.mxu0 0
      %2868 = vmatpush1.bf16.msra.mxu0 0
      %2869 = vmatprep.subr.bf16.mxu0 0
      %2870 = vmatpush1.bf16.msra.mxu0 0
      %2871 = vmatprep.subr.bf16.mxu0 0
      %2872 = vmatpush1.bf16.msra.mxu0 0
      %2873 = vmatprep.subr.bf16.mxu0 0
      %2874 = vmatpush1.bf16.msra.mxu0 0
      %2875 = vmatprep.subr.bf16.mxu0 0
      %2876 = vmatpush1.bf16.msra.mxu0 0
      %2877 = vmatprep.mubr.bf16.mxu0 0
      %2878 = vmatmul.mubr.bf16.gmra.mrb[0].mxu0 %v2800
      %v2879 = vpop.f32.mrb[0].mxu0
      %v2880 = vadd.f32 %v2837, %v2879
      %v2881 = vpop.f32.mrb[0].mxu0
      %v2882 = vadd.f32 %v2839, %v2881
      %v2883 = vpop.f32.mrb[0].mxu0
      %v2884 = vadd.f32 %v2841, %v2883
      %v2885 = vpop.f32.mrb[0].mxu0
      %v2886 = vadd.f32 %v2843, %v2885
      %2887 = vdwg.mxu0
      %v2888 = vmax.f32 %v2880, 0.0
      %v2889 = vmax.f32 %v2882, 0.0
      %v2890 = vmax.f32 %v2884, 0.0
      %v2891 = vmax.f32 %v2886, 0.0
      %2892 = vrot.lane.b32.xlu0 %v2888, 34
      %v2893 = vpop.permute.xlu0 %2892
      %2894 = vrot.lane.b32.xlu0 %v2890, 34
      %v2895 = vpop.permute.xlu0 %2894
      %2896 = vrot.lane.b32.xlu0 %v2889, 34
      %v2897 = vpop.permute.xlu0 %2896
      %2898 = vrot.lane.b32.xlu0 %v2891, 34
      %v2899 = vpop.permute.xlu0 %2898
      %v2900 = vsel %vm1309, %v2893, %v2897
      %v2901 = vsel %vm1309, %v2895, %v2899
      %v2902 = vsel %vm1309, %v2897, %v2893
      %v2903 = vsel %vm1309, %v2899, %v2895
      %v2904 = vld [vmem:[%s1314] ss:$8 sm:$0x3]
      %v2906 = vlaneseq
      %v2907 = vshrl.u32 %v2906, 7
      %v2908 = vsub.s32 0, %v2907
      %v2909 = vrot.slane %v2904, %v2908
      %v2910 = vlaneseq
      %v2911 = vshrl.u32 %v2910, 7
      %v2912 = vsub.s32 1, %v2911
      %v2913 = vrot.slane %v2904, %v2912
      %v2916 = vmul.f32 %v2902, %v2909
      %v2917 = vmul.f32 %v2900, %v2913
      %v2918 = vmul.f32 %v2903, %v2909
      %v2919 = vmul.f32 %v2901, %v2913
      %v2920 = vpack.c.bf16 %v2918, %v2916
      %v2921 = vpack.c.bf16 %v2919, %v2917
      %2922 = vst [vmem:[#allocation2] sm:$0xff] %v2920
      %2923 = vst [vmem:[#allocation2 + $0x8] sm:$0xff] %v2921
      %2924 = vrot.lane.b32.xlu0 %v2888, 32
      %v2925 = vpop.permute.xlu0 %2924
      %2926 = vrot.lane.b32.xlu0 %v2890, 32
      %v2927 = vpop.permute.xlu0 %2926
      %2928 = vrot.lane.b32.xlu0 %v2889, 32
      %v2929 = vpop.permute.xlu0 %2928
      %2930 = vrot.lane.b32.xlu0 %v2891, 32
      %v2931 = vpop.permute.xlu0 %2930
      %v2932 = vsel %vm1343, %v2925, %v2929
      %v2933 = vsel %vm1343, %v2927, %v2931
      %v2934 = vsel %vm1343, %v2929, %v2925
      %v2935 = vsel %vm1343, %v2931, %v2927
      %v2936 = vld [vmem:[%s1348] ss:$8 sm:$0x3]
      %v2938 = vlaneseq
      %v2939 = vshrl.u32 %v2938, 7
      %v2940 = vsub.s32 0, %v2939
      %v2941 = vrot.slane %v2936, %v2940
      %v2942 = vlaneseq
      %v2943 = vshrl.u32 %v2942, 7
      %v2944 = vsub.s32 1, %v2943
      %v2945 = vrot.slane %v2936, %v2944
      %v2948 = vmul.f32 %v2934, %v2941
      %v2949 = vmul.f32 %v2932, %v2945
      %v2950 = vmul.f32 %v2935, %v2941
      %v2951 = vmul.f32 %v2933, %v2945
      %v2952 = vpack.c.bf16 %v2950, %v2948
      %v2953 = vpack.c.bf16 %v2951, %v2949
      %2954 = vst [vmem:[#allocation2 + $0x10] sm:$0xff] %v2952
      %2955 = vst [vmem:[#allocation2 + $0x18] sm:$0xff] %v2953
      %2956 = vrot.lane.b32.xlu0 %v2888, 30
      %v2957 = vpop.permute.xlu0 %2956
      %2958 = vrot.lane.b32.xlu0 %v2890, 30
      %v2959 = vpop.permute.xlu0 %2958
      %2960 = vrot.lane.b32.xlu0 %v2889, 30
      %v2961 = vpop.permute.xlu0 %2960
      %2962 = vrot.lane.b32.xlu0 %v2891, 30
      %v2963 = vpop.permute.xlu0 %2962
      %v2964 = vsel %vm1377, %v2957, %v2961
      %v2965 = vsel %vm1377, %v2959, %v2963
      %v2966 = vsel %vm1377, %v2961, %v2957
      %v2967 = vsel %vm1377, %v2963, %v2959
      %v2968 = vld [vmem:[%s1382] ss:$8 sm:$0x3]
      %v2970 = vlaneseq
      %v2971 = vshrl.u32 %v2970, 7
      %v2972 = vsub.s32 0, %v2971
      %v2973 = vrot.slane %v2968, %v2972
      %v2974 = vlaneseq
      %v2975 = vshrl.u32 %v2974, 7
      %v2976 = vsub.s32 1, %v2975
      %v2977 = vrot.slane %v2968, %v2976
      %v2980 = vmul.f32 %v2966, %v2973
      %v2981 = vmul.f32 %v2964, %v2977
      %v2982 = vmul.f32 %v2967, %v2973
      %v2983 = vmul.f32 %v2965, %v2977
      %v2984 = vpack.c.bf16 %v2982, %v2980
      %v2985 = vpack.c.bf16 %v2983, %v2981
      %2986 = vst [vmem:[#allocation2 + $0x20] sm:$0xff] %v2984
      %2987 = vst [vmem:[#allocation2 + $0x28] sm:$0xff] %v2985
      %2988 = vrot.lane.b32.xlu0 %v2888, 2
      %v2989 = vpop.permute.xlu0 %2988
      %2990 = vrot.lane.b32.xlu0 %v2890, 2
      %v2991 = vpop.permute.xlu0 %2990
      %2992 = vrot.lane.b32.xlu0 %v2889, 2
      %v2993 = vpop.permute.xlu0 %2992
      %2994 = vrot.lane.b32.xlu0 %v2891, 2
      %v2995 = vpop.permute.xlu0 %2994
      %v2996 = vsel %vm1411, %v2989, %v2993
      %v2997 = vsel %vm1411, %v2991, %v2995
      %v2998 = vsel %vm1411, %v2993, %v2989
      %v2999 = vsel %vm1411, %v2995, %v2991
      %v3000 = vld [vmem:[%s1416] ss:$8 sm:$0x3]
      %v3002 = vlaneseq
      %v3003 = vshrl.u32 %v3002, 7
      %v3004 = vsub.s32 0, %v3003
      %v3005 = vrot.slane %v3000, %v3004
      %v3006 = vlaneseq
      %v3007 = vshrl.u32 %v3006, 7
      %v3008 = vsub.s32 1, %v3007
      %v3009 = vrot.slane %v3000, %v3008
      %v3012 = vmul.f32 %v2998, %v3005
      %v3013 = vmul.f32 %v2996, %v3009
      %v3014 = vmul.f32 %v2999, %v3005
      %v3015 = vmul.f32 %v2997, %v3009
      %v3016 = vpack.c.bf16 %v3014, %v3012
      %v3017 = vpack.c.bf16 %v3015, %v3013
      %3018 = vst [vmem:[#allocation2 + $0x30] sm:$0xff] %v3016
      %3019 = vst [vmem:[#allocation2 + $0x38] sm:$0xff] %v3017
      %v3020 = vpack.c.bf16 %v2890, %v2888
      %v3021 = vpack.c.bf16 %v2891, %v2889
      %3022 = vst [vmem:[#allocation2 + $0x40] sm:$0xff] %v3020
      %3023 = vst [vmem:[#allocation2 + $0x48] sm:$0xff] %v3021
      %3024 = vrot.lane.b32.xlu0 %v2888, 126
      %v3025 = vpop.permute.xlu0 %3024
      %3026 = vrot.lane.b32.xlu0 %v2890, 126
      %v3027 = vpop.permute.xlu0 %3026
      %3028 = vrot.lane.b32.xlu0 %v2889, 126
      %v3029 = vpop.permute.xlu0 %3028
      %3030 = vrot.lane.b32.xlu0 %v2891, 126
      %v3031 = vpop.permute.xlu0 %3030
      %v3032 = vsel %vm1449, %v3025, %v3029
      %v3033 = vsel %vm1449, %v3027, %v3031
      %v3034 = vsel %vm1449, %v3029, %v3025
      %v3035 = vsel %vm1449, %v3031, %v3027
      %v3036 = vld [vmem:[%s1454] ss:$8 sm:$0x3]
      %v3038 = vlaneseq
      %v3039 = vshrl.u32 %v3038, 7
      %v3040 = vsub.s32 0, %v3039
      %v3041 = vrot.slane %v3036, %v3040
      %v3042 = vlaneseq
      %v3043 = vshrl.u32 %v3042, 7
      %v3044 = vsub.s32 1, %v3043
      %v3045 = vrot.slane %v3036, %v3044
      %v3048 = vmul.f32 %v3032, %v3041
      %v3049 = vmul.f32 %v3034, %v3045
      %v3050 = vmul.f32 %v3033, %v3041
      %v3051 = vmul.f32 %v3035, %v3045
      %v3052 = vpack.c.bf16 %v3050, %v3048
      %v3053 = vpack.c.bf16 %v3051, %v3049
      %3054 = vst [vmem:[#allocation2 + $0x50] sm:$0xff] %v3052
      %3055 = vst [vmem:[#allocation2 + $0x58] sm:$0xff] %v3053
      %3056 = vrot.lane.b32.xlu0 %v2888, 98
      %v3057 = vpop.permute.xlu0 %3056
      %3058 = vrot.lane.b32.xlu0 %v2890, 98
      %v3059 = vpop.permute.xlu0 %3058
      %3060 = vrot.lane.b32.xlu0 %v2889, 98
      %v3061 = vpop.permute.xlu0 %3060
      %3062 = vrot.lane.b32.xlu0 %v2891, 98
      %v3063 = vpop.permute.xlu0 %3062
      %v3064 = vsel %vm1483, %v3057, %v3061
      %v3065 = vsel %vm1483, %v3059, %v3063
      %v3066 = vsel %vm1483, %v3061, %v3057
      %v3067 = vsel %vm1483, %v3063, %v3059
      %v3068 = vld [vmem:[%s1488] ss:$8 sm:$0x3]
      %v3070 = vlaneseq
      %v3071 = vshrl.u32 %v3070, 7
      %v3072 = vsub.s32 0, %v3071
      %v3073 = vrot.slane %v3068, %v3072
      %v3074 = vlaneseq
      %v3075 = vshrl.u32 %v3074, 7
      %v3076 = vsub.s32 1, %v3075
      %v3077 = vrot.slane %v3068, %v3076
      %v3080 = vmul.f32 %v3064, %v3073
      %v3081 = vmul.f32 %v3066, %v3077
      %v3082 = vmul.f32 %v3065, %v3073
      %v3083 = vmul.f32 %v3067, %v3077
      %v3084 = vpack.c.bf16 %v3082, %v3080
      %v3085 = vpack.c.bf16 %v3083, %v3081
      %3086 = vst [vmem:[#allocation2 + $0x60] sm:$0xff] %v3084
      %3087 = vst [vmem:[#allocation2 + $0x68] sm:$0xff] %v3085
      %3088 = vrot.lane.b32.xlu0 %v2888, 96
      %v3089 = vpop.permute.xlu0 %3088
      %3090 = vrot.lane.b32.xlu0 %v2890, 96
      %v3091 = vpop.permute.xlu0 %3090
      %3092 = vrot.lane.b32.xlu0 %v2889, 96
      %v3093 = vpop.permute.xlu0 %3092
      %3094 = vrot.lane.b32.xlu0 %v2891, 96
      %v3095 = vpop.permute.xlu0 %3094
      %v3096 = vsel %vm1517, %v3089, %v3093
      %v3097 = vsel %vm1517, %v3091, %v3095
      %v3098 = vsel %vm1517, %v3093, %v3089
      %v3099 = vsel %vm1517, %v3095, %v3091
      %v3100 = vld [vmem:[%s1522] ss:$8 sm:$0x3]
      %v3102 = vlaneseq
      %v3103 = vshrl.u32 %v3102, 7
      %v3104 = vsub.s32 0, %v3103
      %v3105 = vrot.slane %v3100, %v3104
      %v3106 = vlaneseq
      %v3107 = vshrl.u32 %v3106, 7
      %v3108 = vsub.s32 1, %v3107
      %v3109 = vrot.slane %v3100, %v3108
      %v3112 = vmul.f32 %v3096, %v3105
      %v3113 = vmul.f32 %v3098, %v3109
      %v3114 = vmul.f32 %v3097, %v3105
      %v3115 = vmul.f32 %v3099, %v3109
      %v3116 = vpack.c.bf16 %v3114, %v3112
      %v3117 = vpack.c.bf16 %v3115, %v3113
      %3118 = vst [vmem:[#allocation2 + $0x70] sm:$0xff] %v3116
      %3119 = vst [vmem:[#allocation2 + $0x78] sm:$0xff] %v3117
      %3120 = vrot.lane.b32.xlu0 %v2888, 94
      %v3121 = vpop.permute.xlu0 %3120
      %3122 = vrot.lane.b32.xlu0 %v2890, 94
      %v3123 = vpop.permute.xlu0 %3122
      %3124 = vrot.lane.b32.xlu0 %v2889, 94
      %v3125 = vpop.permute.xlu0 %3124
      %3126 = vrot.lane.b32.xlu0 %v2891, 94
      %v3127 = vpop.permute.xlu0 %3126
      %v3128 = vsel %vm1551, %v3121, %v3125
      %v3129 = vsel %vm1551, %v3123, %v3127
      %v3130 = vsel %vm1551, %v3125, %v3121
      %v3131 = vsel %vm1551, %v3127, %v3123
      %v3132 = vld [vmem:[%s1556] ss:$8 sm:$0x3]
      %v3134 = vlaneseq
      %v3135 = vshrl.u32 %v3134, 7
      %v3136 = vsub.s32 0, %v3135
      %v3137 = vrot.slane %v3132, %v3136
      %v3138 = vlaneseq
      %v3139 = vshrl.u32 %v3138, 7
      %v3140 = vsub.s32 1, %v3139
      %v3141 = vrot.slane %v3132, %v3140
      %v3144 = vmul.f32 %v3128, %v3137
      %v3145 = vmul.f32 %v3130, %v3141
      %v3146 = vmul.f32 %v3129, %v3137
      %v3147 = vmul.f32 %v3131, %v3141
      %v3148 = vpack.c.bf16 %v3146, %v3144
      %v3149 = vpack.c.bf16 %v3147, %v3145
      %3150 = vst [vmem:[#allocation2 + $0x80] sm:$0xff] %v3148
      %3151 = vst [vmem:[#allocation2 + $0x88] sm:$0xff] %v3149
      %3152 = vrot.lane.b32.xlu0 %v1664, 34
      %v3153 = vpop.permute.xlu0 %3152
      %3154 = vrot.lane.b32.xlu0 %v1666, 34
      %v3155 = vpop.permute.xlu0 %3154
      %3156 = vrot.lane.b32.xlu0 %v1665, 34
      %v3157 = vpop.permute.xlu0 %3156
      %3158 = vrot.lane.b32.xlu0 %v1667, 34
      %v3159 = vpop.permute.xlu0 %3158
      %v3160 = vsel %vm1309, %v3153, %v3157
      %v3161 = vsel %vm1309, %v3155, %v3159
      %v3162 = vsel %vm1309, %v3157, %v3153
      %v3163 = vsel %vm1309, %v3159, %v3155
      %v3164 = vld [vmem:[%s1314] ss:$8 sm:$0x3]
      %v3166 = vlaneseq
      %v3167 = vshrl.u32 %v3166, 7
      %v3168 = vsub.s32 0, %v3167
      %v3169 = vrot.slane %v3164, %v3168
      %v3170 = vlaneseq
      %v3171 = vshrl.u32 %v3170, 7
      %v3172 = vsub.s32 1, %v3171
      %v3173 = vrot.slane %v3164, %v3172
      %v3176 = vmul.f32 %v3162, %v3169
      %v3177 = vmul.f32 %v3160, %v3173
      %v3178 = vmul.f32 %v3163, %v3169
      %v3179 = vmul.f32 %v3161, %v3173
      %v3180 = vpack.c.bf16 %v3178, %v3176
      %v3181 = vpack.c.bf16 %v3179, %v3177
      %3182 = vst [vmem:[#allocation2 + $0x90] sm:$0xff] %v3180
      %3183 = vst [vmem:[#allocation2 + $0x98] sm:$0xff] %v3181
      %3184 = vrot.lane.b32.xlu0 %v1664, 32
      %v3185 = vpop.permute.xlu0 %3184
      %3186 = vrot.lane.b32.xlu0 %v1666, 32
      %v3187 = vpop.permute.xlu0 %3186
      %3188 = vrot.lane.b32.xlu0 %v1665, 32
      %v3189 = vpop.permute.xlu0 %3188
      %3190 = vrot.lane.b32.xlu0 %v1667, 32
      %v3191 = vpop.permute.xlu0 %3190
      %v3192 = vsel %vm1343, %v3185, %v3189
      %v3193 = vsel %vm1343, %v3187, %v3191
      %v3194 = vsel %vm1343, %v3189, %v3185
      %v3195 = vsel %vm1343, %v3191, %v3187
      %v3196 = vld [vmem:[%s1348] ss:$8 sm:$0x3]
      %v3198 = vlaneseq
      %v3199 = vshrl.u32 %v3198, 7
      %v3200 = vsub.s32 0, %v3199
      %v3201 = vrot.slane %v3196, %v3200
      %v3202 = vlaneseq
      %v3203 = vshrl.u32 %v3202, 7
      %v3204 = vsub.s32 1, %v3203
      %v3205 = vrot.slane %v3196, %v3204
      %v3208 = vmul.f32 %v3194, %v3201
      %v3209 = vmul.f32 %v3192, %v3205
      %v3210 = vmul.f32 %v3195, %v3201
      %v3211 = vmul.f32 %v3193, %v3205
      %v3212 = vpack.c.bf16 %v3210, %v3208
      %v3213 = vpack.c.bf16 %v3211, %v3209
      %3214 = vst [vmem:[#allocation2 + $0xa0] sm:$0xff] %v3212
      %3215 = vst [vmem:[#allocation2 + $0xa8] sm:$0xff] %v3213
      %3216 = vrot.lane.b32.xlu0 %v1664, 30
      %v3217 = vpop.permute.xlu0 %3216
      %3218 = vrot.lane.b32.xlu0 %v1666, 30
      %v3219 = vpop.permute.xlu0 %3218
      %3220 = vrot.lane.b32.xlu0 %v1665, 30
      %v3221 = vpop.permute.xlu0 %3220
      %3222 = vrot.lane.b32.xlu0 %v1667, 30
      %v3223 = vpop.permute.xlu0 %3222
      %v3224 = vsel %vm1377, %v3217, %v3221
      %v3225 = vsel %vm1377, %v3219, %v3223
      %v3226 = vsel %vm1377, %v3221, %v3217
      %v3227 = vsel %vm1377, %v3223, %v3219
      %v3228 = vld [vmem:[%s1382] ss:$8 sm:$0x3]
      %v3230 = vlaneseq
      %v3231 = vshrl.u32 %v3230, 7
      %v3232 = vsub.s32 0, %v3231
      %v3233 = vrot.slane %v3228, %v3232
      %v3234 = vlaneseq
      %v3235 = vshrl.u32 %v3234, 7
      %v3236 = vsub.s32 1, %v3235
      %v3237 = vrot.slane %v3228, %v3236
      %v3240 = vmul.f32 %v3226, %v3233
      %v3241 = vmul.f32 %v3224, %v3237
      %v3242 = vmul.f32 %v3227, %v3233
      %v3243 = vmul.f32 %v3225, %v3237
      %v3244 = vpack.c.bf16 %v3242, %v3240
      %v3245 = vpack.c.bf16 %v3243, %v3241
      %3246 = vst [vmem:[#allocation2 + $0xb0] sm:$0xff] %v3244
      %3247 = vst [vmem:[#allocation2 + $0xb8] sm:$0xff] %v3245
      %3248 = vrot.lane.b32.xlu0 %v1664, 2
      %v3249 = vpop.permute.xlu0 %3248
      %3250 = vrot.lane.b32.xlu0 %v1666, 2
      %v3251 = vpop.permute.xlu0 %3250
      %3252 = vrot.lane.b32.xlu0 %v1665, 2
      %v3253 = vpop.permute.xlu0 %3252
      %3254 = vrot.lane.b32.xlu0 %v1667, 2
      %v3255 = vpop.permute.xlu0 %3254
      %v3256 = vsel %vm1411, %v3249, %v3253
      %v3257 = vsel %vm1411, %v3251, %v3255
      %v3258 = vsel %vm1411, %v3253, %v3249
      %v3259 = vsel %vm1411, %v3255, %v3251
      %v3260 = vld [vmem:[%s1416] ss:$8 sm:$0x3]
      %v3262 = vlaneseq
      %v3263 = vshrl.u32 %v3262, 7
      %v3264 = vsub.s32 0, %v3263
      %v3265 = vrot.slane %v3260, %v3264
      %v3266 = vlaneseq
      %v3267 = vshrl.u32 %v3266, 7
      %v3268 = vsub.s32 1, %v3267
      %v3269 = vrot.slane %v3260, %v3268
      %v3272 = vmul.f32 %v3258, %v3265
      %v3273 = vmul.f32 %v3256, %v3269
      %v3274 = vmul.f32 %v3259, %v3265
      %v3275 = vmul.f32 %v3257, %v3269
      %v3276 = vpack.c.bf16 %v3274, %v3272
      %v3277 = vpack.c.bf16 %v3275, %v3273
      %3278 = vst [vmem:[#allocation2 + $0xc0] sm:$0xff] %v3276
      %3279 = vst [vmem:[#allocation2 + $0xc8] sm:$0xff] %v3277
      %3280 = vst [vmem:[#allocation2 + $0xd0] sm:$0xff] %v1804
      %3281 = vst [vmem:[#allocation2 + $0xd8] sm:$0xff] %v1805
      %3282 = vrot.lane.b32.xlu0 %v1664, 126
      %v3283 = vpop.permute.xlu0 %3282
      %3284 = vrot.lane.b32.xlu0 %v1666, 126
      %v3285 = vpop.permute.xlu0 %3284
      %3286 = vrot.lane.b32.xlu0 %v1665, 126
      %v3287 = vpop.permute.xlu0 %3286
      %3288 = vrot.lane.b32.xlu0 %v1667, 126
      %v3289 = vpop.permute.xlu0 %3288
      %v3290 = vsel %vm1449, %v3283, %v3287
      %v3291 = vsel %vm1449, %v3285, %v3289
      %v3292 = vsel %vm1449, %v3287, %v3283
      %v3293 = vsel %vm1449, %v3289, %v3285
      %v3294 = vld [vmem:[%s1454] ss:$8 sm:$0x3]
      %v3296 = vlaneseq
      %v3297 = vshrl.u32 %v3296, 7
      %v3298 = vsub.s32 0, %v3297
      %v3299 = vrot.slane %v3294, %v3298
      %v3300 = vlaneseq
      %v3301 = vshrl.u32 %v3300, 7
      %v3302 = vsub.s32 1, %v3301
      %v3303 = vrot.slane %v3294, %v3302
      %v3306 = vmul.f32 %v3290, %v3299
      %v3307 = vmul.f32 %v3292, %v3303
      %v3308 = vmul.f32 %v3291, %v3299
      %v3309 = vmul.f32 %v3293, %v3303
      %v3310 = vpack.c.bf16 %v3308, %v3306
      %v3311 = vpack.c.bf16 %v3309, %v3307
      %3312 = vst [vmem:[#allocation2 + $0xe0] sm:$0xff] %v3310
      %3313 = vst [vmem:[#allocation2 + $0xe8] sm:$0xff] %v3311
      %3314 = vrot.lane.b32.xlu0 %v1664, 98
      %v3315 = vpop.permute.xlu0 %3314
      %3316 = vrot.lane.b32.xlu0 %v1666, 98
      %v3317 = vpop.permute.xlu0 %3316
      %3318 = vrot.lane.b32.xlu0 %v1665, 98
      %v3319 = vpop.permute.xlu0 %3318
      %3320 = vrot.lane.b32.xlu0 %v1667, 98
      %v3321 = vpop.permute.xlu0 %3320
      %v3322 = vsel %vm1483, %v3315, %v3319
      %v3323 = vsel %vm1483, %v3317, %v3321
      %v3324 = vsel %vm1483, %v3319, %v3315
      %v3325 = vsel %vm1483, %v3321, %v3317
      %v3326 = vld [vmem:[%s1488] ss:$8 sm:$0x3]
      %v3328 = vlaneseq
      %v3329 = vshrl.u32 %v3328, 7
      %v3330 = vsub.s32 0, %v3329
      %v3331 = vrot.slane %v3326, %v3330
      %v3332 = vlaneseq
      %v3333 = vshrl.u32 %v3332, 7
      %v3334 = vsub.s32 1, %v3333
      %v3335 = vrot.slane %v3326, %v3334
      %v3338 = vmul.f32 %v3322, %v3331
      %v3339 = vmul.f32 %v3324, %v3335
      %v3340 = vmul.f32 %v3323, %v3331
      %v3341 = vmul.f32 %v3325, %v3335
      %v3342 = vpack.c.bf16 %v3340, %v3338
      %v3343 = vpack.c.bf16 %v3341, %v3339
      %3344 = vst [vmem:[#allocation2 + $0xf0] sm:$0xff] %v3342
      %3345 = vst [vmem:[#allocation2 + $0xf8] sm:$0xff] %v3343
      %3346 = vrot.lane.b32.xlu0 %v1664, 96
      %v3347 = vpop.permute.xlu0 %3346
      %3348 = vrot.lane.b32.xlu0 %v1666, 96
      %v3349 = vpop.permute.xlu0 %3348
      %3350 = vrot.lane.b32.xlu0 %v1665, 96
      %v3351 = vpop.permute.xlu0 %3350
      %3352 = vrot.lane.b32.xlu0 %v1667, 96
      %v3353 = vpop.permute.xlu0 %3352
      %v3354 = vsel %vm1517, %v3347, %v3351
      %v3355 = vsel %vm1517, %v3349, %v3353
      %v3356 = vsel %vm1517, %v3351, %v3347
      %v3357 = vsel %vm1517, %v3353, %v3349
      %v3358 = vld [vmem:[%s1522] ss:$8 sm:$0x3]
      %v3360 = vlaneseq
      %v3361 = vshrl.u32 %v3360, 7
      %v3362 = vsub.s32 0, %v3361
      %v3363 = vrot.slane %v3358, %v3362
      %v3364 = vlaneseq
      %v3365 = vshrl.u32 %v3364, 7
      %v3366 = vsub.s32 1, %v3365
      %v3367 = vrot.slane %v3358, %v3366
      %v3370 = vmul.f32 %v3354, %v3363
      %v3371 = vmul.f32 %v3356, %v3367
      %v3372 = vmul.f32 %v3355, %v3363
      %v3373 = vmul.f32 %v3357, %v3367
      %v3374 = vpack.c.bf16 %v3372, %v3370
      %v3375 = vpack.c.bf16 %v3373, %v3371
      %3376 = vst [vmem:[#allocation2 + $0x100] sm:$0xff] %v3374
      %3377 = vst [vmem:[#allocation2 + $0x108] sm:$0xff] %v3375
      %3378 = vrot.lane.b32.xlu0 %v1664, 94
      %v3379 = vpop.permute.xlu0 %3378
      %3380 = vrot.lane.b32.xlu0 %v1666, 94
      %v3381 = vpop.permute.xlu0 %3380
      %3382 = vrot.lane.b32.xlu0 %v1665, 94
      %v3383 = vpop.permute.xlu0 %3382
      %3384 = vrot.lane.b32.xlu0 %v1667, 94
      %v3385 = vpop.permute.xlu0 %3384
      %v3386 = vsel %vm1551, %v3379, %v3383
      %v3387 = vsel %vm1551, %v3381, %v3385
      %v3388 = vsel %vm1551, %v3383, %v3379
      %v3389 = vsel %vm1551, %v3385, %v3381
      %v3390 = vld [vmem:[%s1556] ss:$8 sm:$0x3]
      %v3392 = vlaneseq
      %v3393 = vshrl.u32 %v3392, 7
      %v3394 = vsub.s32 0, %v3393
      %v3395 = vrot.slane %v3390, %v3394
      %v3396 = vlaneseq
      %v3397 = vshrl.u32 %v3396, 7
      %v3398 = vsub.s32 1, %v3397
      %v3399 = vrot.slane %v3390, %v3398
      %v3402 = vmul.f32 %v3386, %v3395
      %v3403 = vmul.f32 %v3388, %v3399
      %v3404 = vmul.f32 %v3387, %v3395
      %v3405 = vmul.f32 %v3389, %v3399
      %v3406 = vpack.c.bf16 %v3404, %v3402
      %v3407 = vpack.c.bf16 %v3405, %v3403
      %3408 = vst [vmem:[#allocation2 + $0x110] sm:$0xff] %v3406
      %3409 = vst [vmem:[#allocation2 + $0x118] sm:$0xff] %v3407
      %v3410 = vld [vmem:[%s14] sm:$0xff]
      %v3411 = vld [vmem:[%s14 + $0x8] sm:$0xf]
      %v3412 = vld [vmem:[%s14 + $0xc] sm:$0xff]
      %v3413 = vld [vmem:[%s14 + $0x14] sm:$0xf]
      %v3414 = vld [vmem:[#allocation2] sm:$0xff]
      %v3415 = vld [vmem:[#allocation2 + $0x8] sm:$0xff]
      %v3416 = vld [vmem:[#allocation2 + $0x10] sm:$0xff]
      %v3417 = vld [vmem:[#allocation2 + $0x18] sm:$0xff]
      %v3418 = vld [vmem:[#allocation2 + $0x20] sm:$0xff]
      %v3419 = vld [vmem:[#allocation2 + $0x28] sm:$0xff]
      %v3420 = vld [vmem:[#allocation2 + $0x30] sm:$0xff]
      %v3421 = vld [vmem:[#allocation2 + $0x38] sm:$0xff]
      %v3422 = vld [vmem:[#allocation2 + $0x40] sm:$0xff]
      %v3423 = vld [vmem:[#allocation2 + $0x48] sm:$0xff]
      %v3424 = vld [vmem:[#allocation2 + $0x50] sm:$0xff]
      %v3425 = vld [vmem:[#allocation2 + $0x58] sm:$0xff]
      %v3426 = vld [vmem:[#allocation2 + $0x60] sm:$0xff]
      %v3427 = vld [vmem:[#allocation2 + $0x68] sm:$0xff]
      %v3428 = vld [vmem:[#allocation2 + $0x70] sm:$0xff]
      %v3429 = vld [vmem:[#allocation2 + $0x78] sm:$0xff]
      %v3430 = vld [vmem:[#allocation2 + $0x80] sm:$0xff]
      %v3431 = vld [vmem:[#allocation2 + $0x88] sm:$0xff]
      %v3432 = vld [vmem:[#allocation2 + $0x90] sm:$0xff]
      %v3433 = vld [vmem:[#allocation2 + $0x98] sm:$0xff]
      %v3434 = vld [vmem:[#allocation2 + $0xa0] sm:$0xff]
      %v3435 = vld [vmem:[#allocation2 + $0xa8] sm:$0xff]
      %v3436 = vld [vmem:[#allocation2 + $0xb0] sm:$0xff]
      %v3437 = vld [vmem:[#allocation2 + $0xb8] sm:$0xff]
      %v3438 = vld [vmem:[#allocation2 + $0xc0] sm:$0xff]
      %v3439 = vld [vmem:[#allocation2 + $0xc8] sm:$0xff]
      %v3440 = vld [vmem:[#allocation2 + $0xd0] sm:$0xff]
      %v3441 = vld [vmem:[#allocation2 + $0xd8] sm:$0xff]
      %v3442 = vld [vmem:[#allocation2 + $0xe0] sm:$0xff]
      %v3443 = vld [vmem:[#allocation2 + $0xe8] sm:$0xff]
      %v3444 = vld [vmem:[#allocation2 + $0xf0] sm:$0xff]
      %v3445 = vld [vmem:[#allocation2 + $0xf8] sm:$0xff]
      %v3446 = vld [vmem:[#allocation2 + $0x100] sm:$0xff]
      %v3447 = vld [vmem:[#allocation2 + $0x108] sm:$0xff]
      %v3448 = vld [vmem:[#allocation2 + $0x110] sm:$0xff]
      %v3449 = vld [vmem:[#allocation2 + $0x118] sm:$0xff]
      %v3450 = vld [vmem:[%s15] sm:$0xff]
      %v3451 = vld [vmem:[%s15 + $0x8] sm:$0xff]
      %3453 = vset.pattern.permute.xlu0 0
      %3454 = vperm.xlu0 %3453, %v3450
      %v3455 = vpop.permute.xlu0 %3454
      %3458 = vset.pattern.permute.xlu0 0
      %3459 = vperm.xlu0 %3458, %v3451
      %v3460 = vpop.permute.xlu0 %3459
      %v3466 = vunpack.c.l.b16 %v3410
      %v3467 = vunpack.c.h.b16 %v3410
      %v3468 = vunpack.c.l.b16 %v3411
      %v3469 = vunpack.c.l.b16 %v3412
      %v3470 = vunpack.c.h.b16 %v3412
      %v3471 = vunpack.c.l.b16 %v3413
      %v3472 = vpack.c.b16 %v3469, %v3466
      %v3473 = vpack.c.b16 %v3470, %v3467
      %v3474 = vpack.c.b16 %v3471, %v3468
      %v3478 = vsel %vm2798, %v3474, 0
      %3480 = vmatprep.subr.bf16.mxu0 %v3415
      %3481 = vmatpush1.bf16.msra.mxu0 %v3414
      %3482 = vmatprep.subr.bf16.mxu0 %v3417
      %3483 = vmatpush1.bf16.msra.mxu0 %v3416
      %3484 = vmatprep.subr.bf16.mxu0 %v3419
      %3485 = vmatpush1.bf16.msra.mxu0 %v3418
      %3486 = vmatprep.subr.bf16.mxu0 %v3421
      %3487 = vmatpush1.bf16.msra.mxu0 %v3420
      %3488 = vmatprep.subr.bf16.mxu0 %v3423
      %3489 = vmatpush1.bf16.msra.mxu0 %v3422
      %3490 = vmatprep.subr.bf16.mxu0 %v3425
      %3491 = vmatpush1.bf16.msra.mxu0 %v3424
      %3492 = vmatprep.subr.bf16.mxu0 %v3427
      %3493 = vmatpush1.bf16.msra.mxu0 %v3426
      %3494 = vmatprep.subr.bf16.mxu0 %v3429
      %3495 = vmatpush1.bf16.msra.mxu0 %v3428
      %3496 = vmatprep.subr.bf16.mxu0 %v3431
      %3497 = vmatpush1.bf16.msra.mxu0 %v3430
      %3498 = vmatprep.subr.bf16.mxu0 %v3433
      %3499 = vmatpush1.bf16.msra.mxu0 %v3432
      %3500 = vmatprep.subr.bf16.mxu0 %v3435
      %3501 = vmatpush1.bf16.msra.mxu0 %v3434
      %3502 = vmatprep.subr.bf16.mxu0 %v3437
      %3503 = vmatpush1.bf16.msra.mxu0 %v3436
      %3504 = vmatprep.subr.bf16.mxu0 %v3439
      %3505 = vmatpush1.bf16.msra.mxu0 %v3438
      %3506 = vmatprep.subr.bf16.mxu0 %v3441
      %3507 = vmatpush1.bf16.msra.mxu0 %v3440
      %3508 = vmatprep.subr.bf16.mxu0 %v3443
      %3509 = vmatpush1.bf16.msra.mxu0 %v3442
      %3510 = vmatprep.subr.bf16.mxu0 %v3445
      %3511 = vmatpush1.bf16.msra.mxu0 %v3444
      %3512 = vmatprep.mubr.bf16.mxu0 %v3473
      %3513 = vmatmul.mubr.bf16.gmra.mrb[0].mxu0 %v3472
      %v3514 = vpop.f32.mrb[0].mxu0
      %v3515 = vadd.f32 %v3455, %v3514
      %v3516 = vpop.f32.mrb[0].mxu0
      %v3517 = vadd.f32 %v3455, %v3516
      %v3518 = vpop.f32.mrb[0].mxu0
      %v3519 = vadd.f32 %v3460, %v3518
      %v3520 = vpop.f32.mrb[0].mxu0
      %v3521 = vadd.f32 %v3460, %v3520
      %3522 = vdwg.mxu0
      %3523 = vmatprep.subr.bf16.mxu0 %v3447
      %3524 = vmatpush1.bf16.msra.mxu0 %v3446
      %3525 = vmatprep.subr.bf16.mxu0 %v3449
      %3526 = vmatpush1.bf16.msra.mxu0 %v3448
      %3527 = vmatprep.subr.bf16.mxu0 0
      %3528 = vmatpush1.bf16.msra.mxu0 0
      %3529 = vmatprep.subr.bf16.mxu0 0
      %3530 = vmatpush1.bf16.msra.mxu0 0
      %3531 = vmatprep.subr.bf16.mxu0 0
      %3532 = vmatpush1.bf16.msra.mxu0 0
      %3533 = vmatprep.subr.bf16.mxu0 0
      %3534 = vmatpush1.bf16.msra.mxu0 0
      %3535 = vmatprep.subr.bf16.mxu0 0
      %3536 = vmatpush1.bf16.msra.mxu0 0
      %3537 = vmatprep.subr.bf16.mxu0 0
      %3538 = vmatpush1.bf16.msra.mxu0 0
      %3539 = vmatprep.subr.bf16.mxu0 0
      %3540 = vmatpush1.bf16.msra.mxu0 0
      %3541 = vmatprep.subr.bf16.mxu0 0
      %3542 = vmatpush1.bf16.msra.mxu0 0
      %3543 = vmatprep.subr.bf16.mxu0 0
      %3544 = vmatpush1.bf16.msra.mxu0 0
      %3545 = vmatprep.subr.bf16.mxu0 0
      %3546 = vmatpush1.bf16.msra.mxu0 0
      %3547 = vmatprep.subr.bf16.mxu0 0
      %3548 = vmatpush1.bf16.msra.mxu0 0
      %3549 = vmatprep.subr.bf16.mxu0 0
      %3550 = vmatpush1.bf16.msra.mxu0 0
      %3551 = vmatprep.subr.bf16.mxu0 0
      %3552 = vmatpush1.bf16.msra.mxu0 0
      %3553 = vmatprep.subr.bf16.mxu0 0
      %3554 = vmatpush1.bf16.msra.mxu0 0
      %3555 = vmatprep.mubr.bf16.mxu0 0
      %3556 = vmatmul.mubr.bf16.gmra.mrb[0].mxu0 %v3478
      %v3557 = vpop.f32.mrb[0].mxu0
      %v3558 = vadd.f32 %v3515, %v3557
      %v3559 = vpop.f32.mrb[0].mxu0
      %v3560 = vadd.f32 %v3517, %v3559
      %v3561 = vpop.f32.mrb[0].mxu0
      %v3562 = vadd.f32 %v3519, %v3561
      %v3563 = vpop.f32.mrb[0].mxu0
      %v3564 = vadd.f32 %v3521, %v3563
      %3565 = vdwg.mxu0
      %v3566 = vmax.f32 %v3558, 0.0
      %v3567 = vmax.f32 %v3560, 0.0
      %v3568 = vmax.f32 %v3562, 0.0
      %v3569 = vmax.f32 %v3564, 0.0
      %3570 = vrot.lane.b32.xlu0 %v3566, 17
      %v3571 = vpop.permute.xlu0 %3570
      %3572 = vrot.lane.b32.xlu0 %v3568, 17
      %v3573 = vpop.permute.xlu0 %3572
      %3574 = vrot.lane.b32.xlu0 %v3567, 17
      %v3575 = vpop.permute.xlu0 %3574
      %3576 = vrot.lane.b32.xlu0 %v3569, 17
      %v3577 = vpop.permute.xlu0 %3576
      %v3578 = vsel %vm591, %v3571, %v3575
      %v3579 = vsel %vm591, %v3573, %v3577
      %v3580 = vsel %vm591, %v3575, %v3571
      %v3581 = vsel %vm591, %v3577, %v3573
      %v3582 = vld [vmem:[%s1] ss:$8 sm:$0x3]
      %v3584 = vlaneseq
      %v3585 = vshrl.u32 %v3584, 7
      %v3586 = vsub.s32 0, %v3585
      %v3587 = vrot.slane %v3582, %v3586
      %v3588 = vlaneseq
      %v3589 = vshrl.u32 %v3588, 7
      %v3590 = vsub.s32 1, %v3589
      %v3591 = vrot.slane %v3582, %v3590
      %v3594 = vmul.f32 %v3580, %v3587
      %v3595 = vmul.f32 %v3578, %v3591
      %v3596 = vmul.f32 %v3581, %v3587
      %v3597 = vmul.f32 %v3579, %v3591
      %v3598 = vpack.c.bf16 %v3596, %v3594
      %v3599 = vpack.c.bf16 %v3597, %v3595
      %3600 = vst [vmem:[#allocation2] sm:$0xff] %v3598
      %3601 = vst [vmem:[#allocation2 + $0x8] sm:$0xff] %v3599
      %3602 = vrot.lane.b32.xlu0 %v3566, 16
      %v3603 = vpop.permute.xlu0 %3602
      %3604 = vrot.lane.b32.xlu0 %v3568, 16
      %v3605 = vpop.permute.xlu0 %3604
      %3606 = vrot.lane.b32.xlu0 %v3567, 16
      %v3607 = vpop.permute.xlu0 %3606
      %3608 = vrot.lane.b32.xlu0 %v3569, 16
      %v3609 = vpop.permute.xlu0 %3608
      %v3610 = vsel %vm624, %v3603, %v3607
      %v3611 = vsel %vm624, %v3605, %v3609
      %v3612 = vsel %vm624, %v3607, %v3603
      %v3613 = vsel %vm624, %v3609, %v3605
      %v3614 = vld [vmem:[%s629] ss:$8 sm:$0x3]
      %v3616 = vlaneseq
      %v3617 = vshrl.u32 %v3616, 7
      %v3618 = vsub.s32 0, %v3617
      %v3619 = vrot.slane %v3614, %v3618
      %v3620 = vlaneseq
      %v3621 = vshrl.u32 %v3620, 7
      %v3622 = vsub.s32 1, %v3621
      %v3623 = vrot.slane %v3614, %v3622
      %v3626 = vmul.f32 %v3612, %v3619
      %v3627 = vmul.f32 %v3610, %v3623
      %v3628 = vmul.f32 %v3613, %v3619
      %v3629 = vmul.f32 %v3611, %v3623
      %v3630 = vpack.c.bf16 %v3628, %v3626
      %v3631 = vpack.c.bf16 %v3629, %v3627
      %3632 = vst [vmem:[#allocation2 + $0x10] sm:$0xff] %v3630
      %3633 = vst [vmem:[#allocation2 + $0x18] sm:$0xff] %v3631
      %3634 = vrot.lane.b32.xlu0 %v3566, 15
      %v3635 = vpop.permute.xlu0 %3634
      %3636 = vrot.lane.b32.xlu0 %v3568, 15
      %v3637 = vpop.permute.xlu0 %3636
      %3638 = vrot.lane.b32.xlu0 %v3567, 15
      %v3639 = vpop.permute.xlu0 %3638
      %3640 = vrot.lane.b32.xlu0 %v3569, 15
      %v3641 = vpop.permute.xlu0 %3640
      %v3642 = vsel %vm658, %v3635, %v3639
      %v3643 = vsel %vm658, %v3637, %v3641
      %v3644 = vsel %vm658, %v3639, %v3635
      %v3645 = vsel %vm658, %v3641, %v3637
      %v3646 = vld [vmem:[%s663] ss:$8 sm:$0x3]
      %v3648 = vlaneseq
      %v3649 = vshrl.u32 %v3648, 7
      %v3650 = vsub.s32 0, %v3649
      %v3651 = vrot.slane %v3646, %v3650
      %v3652 = vlaneseq
      %v3653 = vshrl.u32 %v3652, 7
      %v3654 = vsub.s32 1, %v3653
      %v3655 = vrot.slane %v3646, %v3654
      %v3658 = vmul.f32 %v3644, %v3651
      %v3659 = vmul.f32 %v3642, %v3655
      %v3660 = vmul.f32 %v3645, %v3651
      %v3661 = vmul.f32 %v3643, %v3655
      %v3662 = vpack.c.bf16 %v3660, %v3658
      %v3663 = vpack.c.bf16 %v3661, %v3659
      %3664 = vst [vmem:[#allocation2 + $0x20] sm:$0xff] %v3662
      %3665 = vst [vmem:[#allocation2 + $0x28] sm:$0xff] %v3663
      %3666 = vrot.lane.b32.xlu0 %v3566, 1
      %v3667 = vpop.permute.xlu0 %3666
      %3668 = vrot.lane.b32.xlu0 %v3568, 1
      %v3669 = vpop.permute.xlu0 %3668
      %3670 = vrot.lane.b32.xlu0 %v3567, 1
      %v3671 = vpop.permute.xlu0 %3670
      %3672 = vrot.lane.b32.xlu0 %v3569, 1
      %v3673 = vpop.permute.xlu0 %3672
      %v3674 = vsel %vm692, %v3667, %v3671
      %v3675 = vsel %vm692, %v3669, %v3673
      %v3676 = vsel %vm692, %v3671, %v3667
      %v3677 = vsel %vm692, %v3673, %v3669
      %v3678 = vld [vmem:[%s697] ss:$8 sm:$0x3]
      %v3680 = vlaneseq
      %v3681 = vshrl.u32 %v3680, 7
      %v3682 = vsub.s32 0, %v3681
      %v3683 = vrot.slane %v3678, %v3682
      %v3684 = vlaneseq
      %v3685 = vshrl.u32 %v3684, 7
      %v3686 = vsub.s32 1, %v3685
      %v3687 = vrot.slane %v3678, %v3686
      %v3690 = vmul.f32 %v3676, %v3683
      %v3691 = vmul.f32 %v3674, %v3687
      %v3692 = vmul.f32 %v3677, %v3683
      %v3693 = vmul.f32 %v3675, %v3687
      %v3694 = vpack.c.bf16 %v3692, %v3690
      %v3695 = vpack.c.bf16 %v3693, %v3691
      %3696 = vst [vmem:[#allocation2 + $0x30] sm:$0xff] %v3694
      %3697 = vst [vmem:[#allocation2 + $0x38] sm:$0xff] %v3695
      %v3698 = vpack.c.bf16 %v3568, %v3566
      %v3699 = vpack.c.bf16 %v3569, %v3567
      %3700 = vst [vmem:[#allocation2 + $0x40] sm:$0xff] %v3698
      %3701 = vst [vmem:[#allocation2 + $0x48] sm:$0xff] %v3699
      %3702 = vrot.lane.b32.xlu0 %v3566, 127
      %v3703 = vpop.permute.xlu0 %3702
      %3704 = vrot.lane.b32.xlu0 %v3568, 127
      %v3705 = vpop.permute.xlu0 %3704
      %3706 = vrot.lane.b32.xlu0 %v3567, 127
      %v3707 = vpop.permute.xlu0 %3706
      %3708 = vrot.lane.b32.xlu0 %v3569, 127
      %v3709 = vpop.permute.xlu0 %3708
      %v3710 = vsel %vm730, %v3703, %v3707
      %v3711 = vsel %vm730, %v3705, %v3709
      %v3712 = vsel %vm730, %v3707, %v3703
      %v3713 = vsel %vm730, %v3709, %v3705
      %v3714 = vld [vmem:[%s735] ss:$8 sm:$0x3]
      %v3716 = vlaneseq
      %v3717 = vshrl.u32 %v3716, 7
      %v3718 = vsub.s32 0, %v3717
      %v3719 = vrot.slane %v3714, %v3718
      %v3720 = vlaneseq
      %v3721 = vshrl.u32 %v3720, 7
      %v3722 = vsub.s32 1, %v3721
      %v3723 = vrot.slane %v3714, %v3722
      %v3726 = vmul.f32 %v3710, %v3719
      %v3727 = vmul.f32 %v3712, %v3723
      %v3728 = vmul.f32 %v3711, %v3719
      %v3729 = vmul.f32 %v3713, %v3723
      %v3730 = vpack.c.bf16 %v3728, %v3726
      %v3731 = vpack.c.bf16 %v3729, %v3727
      %3732 = vst [vmem:[#allocation2 + $0x50] sm:$0xff] %v3730
      %3733 = vst [vmem:[#allocation2 + $0x58] sm:$0xff] %v3731
      %3734 = vrot.lane.b32.xlu0 %v3566, 113
      %v3735 = vpop.permute.xlu0 %3734
      %3736 = vrot.lane.b32.xlu0 %v3568, 113
      %v3737 = vpop.permute.xlu0 %3736
      %3738 = vrot.lane.b32.xlu0 %v3567, 113
      %v3739 = vpop.permute.xlu0 %3738
      %3740 = vrot.lane.b32.xlu0 %v3569, 113
      %v3741 = vpop.permute.xlu0 %3740
      %v3742 = vsel %vm764, %v3735, %v3739
      %v3743 = vsel %vm764, %v3737, %v3741
      %v3744 = vsel %vm764, %v3739, %v3735
      %v3745 = vsel %vm764, %v3741, %v3737
      %v3746 = vld [vmem:[%s769] ss:$8 sm:$0x3]
      %v3748 = vlaneseq
      %v3749 = vshrl.u32 %v3748, 7
      %v3750 = vsub.s32 0, %v3749
      %v3751 = vrot.slane %v3746, %v3750
      %v3752 = vlaneseq
      %v3753 = vshrl.u32 %v3752, 7
      %v3754 = vsub.s32 1, %v3753
      %v3755 = vrot.slane %v3746, %v3754
      %v3758 = vmul.f32 %v3742, %v3751
      %v3759 = vmul.f32 %v3744, %v3755
      %v3760 = vmul.f32 %v3743, %v3751
      %v3761 = vmul.f32 %v3745, %v3755
      %v3762 = vpack.c.bf16 %v3760, %v3758
      %v3763 = vpack.c.bf16 %v3761, %v3759
      %3764 = vst [vmem:[#allocation2 + $0x60] sm:$0xff] %v3762
      %3765 = vst [vmem:[#allocation2 + $0x68] sm:$0xff] %v3763
      %3766 = vrot.lane.b32.xlu0 %v3566, 112
      %v3767 = vpop.permute.xlu0 %3766
      %3768 = vrot.lane.b32.xlu0 %v3568, 112
      %v3769 = vpop.permute.xlu0 %3768
      %3770 = vrot.lane.b32.xlu0 %v3567, 112
      %v3771 = vpop.permute.xlu0 %3770
      %3772 = vrot.lane.b32.xlu0 %v3569, 112
      %v3773 = vpop.permute.xlu0 %3772
      %v3774 = vsel %vm798, %v3767, %v3771
      %v3775 = vsel %vm798, %v3769, %v3773
      %v3776 = vsel %vm798, %v3771, %v3767
      %v3777 = vsel %vm798, %v3773, %v3769
      %v3778 = vld [vmem:[%s803] ss:$8 sm:$0x3]
      %v3780 = vlaneseq
      %v3781 = vshrl.u32 %v3780, 7
      %v3782 = vsub.s32 0, %v3781
      %v3783 = vrot.slane %v3778, %v3782
      %v3784 = vlaneseq
      %v3785 = vshrl.u32 %v3784, 7
      %v3786 = vsub.s32 1, %v3785
      %v3787 = vrot.slane %v3778, %v3786
      %v3790 = vmul.f32 %v3774, %v3783
      %v3791 = vmul.f32 %v3776, %v3787
      %v3792 = vmul.f32 %v3775, %v3783
      %v3793 = vmul.f32 %v3777, %v3787
      %v3794 = vpack.c.bf16 %v3792, %v3790
      %v3795 = vpack.c.bf16 %v3793, %v3791
      %3796 = vst [vmem:[#allocation2 + $0x70] sm:$0xff] %v3794
      %3797 = vst [vmem:[#allocation2 + $0x78] sm:$0xff] %v3795
      %3798 = vrot.lane.b32.xlu0 %v3566, 111
      %v3799 = vpop.permute.xlu0 %3798
      %3800 = vrot.lane.b32.xlu0 %v3568, 111
      %v3801 = vpop.permute.xlu0 %3800
      %3802 = vrot.lane.b32.xlu0 %v3567, 111
      %v3803 = vpop.permute.xlu0 %3802
      %3804 = vrot.lane.b32.xlu0 %v3569, 111
      %v3805 = vpop.permute.xlu0 %3804
      %v3806 = vsel %vm832, %v3799, %v3803
      %v3807 = vsel %vm832, %v3801, %v3805
      %v3808 = vsel %vm832, %v3803, %v3799
      %v3809 = vsel %vm832, %v3805, %v3801
      %v3810 = vld [vmem:[%s837] ss:$8 sm:$0x3]
      %v3812 = vlaneseq
      %v3813 = vshrl.u32 %v3812, 7
      %v3814 = vsub.s32 0, %v3813
      %v3815 = vrot.slane %v3810, %v3814
      %v3816 = vlaneseq
      %v3817 = vshrl.u32 %v3816, 7
      %v3818 = vsub.s32 1, %v3817
      %v3819 = vrot.slane %v3810, %v3818
      %v3822 = vmul.f32 %v3806, %v3815
      %v3823 = vmul.f32 %v3808, %v3819
      %v3824 = vmul.f32 %v3807, %v3815
      %v3825 = vmul.f32 %v3809, %v3819
      %v3826 = vpack.c.bf16 %v3824, %v3822
      %v3827 = vpack.c.bf16 %v3825, %v3823
      %3828 = vst [vmem:[#allocation2 + $0x80] sm:$0xff] %v3826
      %3829 = vst [vmem:[#allocation2 + $0x88] sm:$0xff] %v3827
      %3830 = vrot.lane.b32.xlu0 %v1297, 17
      %v3831 = vpop.permute.xlu0 %3830
      %3832 = vrot.lane.b32.xlu0 %v1299, 17
      %v3833 = vpop.permute.xlu0 %3832
      %3834 = vrot.lane.b32.xlu0 %v1298, 17
      %v3835 = vpop.permute.xlu0 %3834
      %3836 = vrot.lane.b32.xlu0 %v1300, 17
      %v3837 = vpop.permute.xlu0 %3836
      %v3838 = vsel %vm591, %v3831, %v3835
      %v3839 = vsel %vm591, %v3833, %v3837
      %v3840 = vsel %vm591, %v3835, %v3831
      %v3841 = vsel %vm591, %v3837, %v3833
      %v3842 = vld [vmem:[%s1] ss:$8 sm:$0x3]
      %v3844 = vlaneseq
      %v3845 = vshrl.u32 %v3844, 7
      %v3846 = vsub.s32 0, %v3845
      %v3847 = vrot.slane %v3842, %v3846
      %v3848 = vlaneseq
      %v3849 = vshrl.u32 %v3848, 7
      %v3850 = vsub.s32 1, %v3849
      %v3851 = vrot.slane %v3842, %v3850
      %v3854 = vmul.f32 %v3840, %v3847
      %v3855 = vmul.f32 %v3838, %v3851
      %v3856 = vmul.f32 %v3841, %v3847
      %v3857 = vmul.f32 %v3839, %v3851
      %v3858 = vpack.c.bf16 %v3856, %v3854
      %v3859 = vpack.c.bf16 %v3857, %v3855
      %3860 = vst [vmem:[#allocation2 + $0x90] sm:$0xff] %v3858
      %3861 = vst [vmem:[#allocation2 + $0x98] sm:$0xff] %v3859
      %3862 = vrot.lane.b32.xlu0 %v1297, 16
      %v3863 = vpop.permute.xlu0 %3862
      %3864 = vrot.lane.b32.xlu0 %v1299, 16
      %v3865 = vpop.permute.xlu0 %3864
      %3866 = vrot.lane.b32.xlu0 %v1298, 16
      %v3867 = vpop.permute.xlu0 %3866
      %3868 = vrot.lane.b32.xlu0 %v1300, 16
      %v3869 = vpop.permute.xlu0 %3868
      %v3870 = vsel %vm624, %v3863, %v3867
      %v3871 = vsel %vm624, %v3865, %v3869
      %v3872 = vsel %vm624, %v3867, %v3863
      %v3873 = vsel %vm624, %v3869, %v3865
      %v3874 = vld [vmem:[%s629] ss:$8 sm:$0x3]
      %v3876 = vlaneseq
      %v3877 = vshrl.u32 %v3876, 7
      %v3878 = vsub.s32 0, %v3877
      %v3879 = vrot.slane %v3874, %v3878
      %v3880 = vlaneseq
      %v3881 = vshrl.u32 %v3880, 7
      %v3882 = vsub.s32 1, %v3881
      %v3883 = vrot.slane %v3874, %v3882
      %v3886 = vmul.f32 %v3872, %v3879
      %v3887 = vmul.f32 %v3870, %v3883
      %v3888 = vmul.f32 %v3873, %v3879
      %v3889 = vmul.f32 %v3871, %v3883
      %v3890 = vpack.c.bf16 %v3888, %v3886
      %v3891 = vpack.c.bf16 %v3889, %v3887
      %3892 = vst [vmem:[#allocation2 + $0xa0] sm:$0xff] %v3890
      %3893 = vst [vmem:[#allocation2 + $0xa8] sm:$0xff] %v3891
      %3894 = vrot.lane.b32.xlu0 %v1297, 15
      %v3895 = vpop.permute.xlu0 %3894
      %3896 = vrot.lane.b32.xlu0 %v1299, 15
      %v3897 = vpop.permute.xlu0 %3896
      %3898 = vrot.lane.b32.xlu0 %v1298, 15
      %v3899 = vpop.permute.xlu0 %3898
      %3900 = vrot.lane.b32.xlu0 %v1300, 15
      %v3901 = vpop.permute.xlu0 %3900
      %v3902 = vsel %vm658, %v3895, %v3899
      %v3903 = vsel %vm658, %v3897, %v3901
      %v3904 = vsel %vm658, %v3899, %v3895
      %v3905 = vsel %vm658, %v3901, %v3897
      %v3906 = vld [vmem:[%s663] ss:$8 sm:$0x3]
      %v3908 = vlaneseq
      %v3909 = vshrl.u32 %v3908, 7
      %v3910 = vsub.s32 0, %v3909
      %v3911 = vrot.slane %v3906, %v3910
      %v3912 = vlaneseq
      %v3913 = vshrl.u32 %v3912, 7
      %v3914 = vsub.s32 1, %v3913
      %v3915 = vrot.slane %v3906, %v3914
      %v3918 = vmul.f32 %v3904, %v3911
      %v3919 = vmul.f32 %v3902, %v3915
      %v3920 = vmul.f32 %v3905, %v3911
      %v3921 = vmul.f32 %v3903, %v3915
      %v3922 = vpack.c.bf16 %v3920, %v3918
      %v3923 = vpack.c.bf16 %v3921, %v3919
      %3924 = vst [vmem:[#allocation2 + $0xb0] sm:$0xff] %v3922
      %3925 = vst [vmem:[#allocation2 + $0xb8] sm:$0xff] %v3923
      %3926 = vrot.lane.b32.xlu0 %v1297, 1
      %v3927 = vpop.permute.xlu0 %3926
      %3928 = vrot.lane.b32.xlu0 %v1299, 1
      %v3929 = vpop.permute.xlu0 %3928
      %3930 = vrot.lane.b32.xlu0 %v1298, 1
      %v3931 = vpop.permute.xlu0 %3930
      %3932 = vrot.lane.b32.xlu0 %v1300, 1
      %v3933 = vpop.permute.xlu0 %3932
      %v3934 = vsel %vm692, %v3927, %v3931
      %v3935 = vsel %vm692, %v3929, %v3933
      %v3936 = vsel %vm692, %v3931, %v3927
      %v3937 = vsel %vm692, %v3933, %v3929
      %v3938 = vld [vmem:[%s697] ss:$8 sm:$0x3]
      %v3940 = vlaneseq
      %v3941 = vshrl.u32 %v3940, 7
      %v3942 = vsub.s32 0, %v3941
      %v3943 = vrot.slane %v3938, %v3942
      %v3944 = vlaneseq
      %v3945 = vshrl.u32 %v3944, 7
      %v3946 = vsub.s32 1, %v3945
      %v3947 = vrot.slane %v3938, %v3946
      %v3950 = vmul.f32 %v3936, %v3943
      %v3951 = vmul.f32 %v3934, %v3947
      %v3952 = vmul.f32 %v3937, %v3943
      %v3953 = vmul.f32 %v3935, %v3947
      %v3954 = vpack.c.bf16 %v3952, %v3950
      %v3955 = vpack.c.bf16 %v3953, %v3951
      %3956 = vst [vmem:[#allocation2 + $0xc0] sm:$0xff] %v3954
      %3957 = vst [vmem:[#allocation2 + $0xc8] sm:$0xff] %v3955
      %3958 = vst [vmem:[#allocation2 + $0xd0] sm:$0xff] %v1437
      %3959 = vst [vmem:[#allocation2 + $0xd8] sm:$0xff] %v1438
      %3960 = vrot.lane.b32.xlu0 %v1297, 127
      %v3961 = vpop.permute.xlu0 %3960
      %3962 = vrot.lane.b32.xlu0 %v1299, 127
      %v3963 = vpop.permute.xlu0 %3962
      %3964 = vrot.lane.b32.xlu0 %v1298, 127
      %v3965 = vpop.permute.xlu0 %3964
      %3966 = vrot.lane.b32.xlu0 %v1300, 127
      %v3967 = vpop.permute.xlu0 %3966
      %v3968 = vsel %vm730, %v3961, %v3965
      %v3969 = vsel %vm730, %v3963, %v3967
      %v3970 = vsel %vm730, %v3965, %v3961
      %v3971 = vsel %vm730, %v3967, %v3963
      %v3972 = vld [vmem:[%s735] ss:$8 sm:$0x3]
      %v3974 = vlaneseq
      %v3975 = vshrl.u32 %v3974, 7
      %v3976 = vsub.s32 0, %v3975
      %v3977 = vrot.slane %v3972, %v3976
      %v3978 = vlaneseq
      %v3979 = vshrl.u32 %v3978, 7
      %v3980 = vsub.s32 1, %v3979
      %v3981 = vrot.slane %v3972, %v3980
      %v3984 = vmul.f32 %v3968, %v3977
      %v3985 = vmul.f32 %v3970, %v3981
      %v3986 = vmul.f32 %v3969, %v3977
      %v3987 = vmul.f32 %v3971, %v3981
      %v3988 = vpack.c.bf16 %v3986, %v3984
      %v3989 = vpack.c.bf16 %v3987, %v3985
      %3990 = vst [vmem:[#allocation2 + $0xe0] sm:$0xff] %v3988
      %3991 = vst [vmem:[#allocation2 + $0xe8] sm:$0xff] %v3989
      %3992 = vrot.lane.b32.xlu0 %v1297, 113
      %v3993 = vpop.permute.xlu0 %3992
      %3994 = vrot.lane.b32.xlu0 %v1299, 113
      %v3995 = vpop.permute.xlu0 %3994
      %3996 = vrot.lane.b32.xlu0 %v1298, 113
      %v3997 = vpop.permute.xlu0 %3996
      %3998 = vrot.lane.b32.xlu0 %v1300, 113
      %v3999 = vpop.permute.xlu0 %3998
      %v4000 = vsel %vm764, %v3993, %v3997
      %v4001 = vsel %vm764, %v3995, %v3999
      %v4002 = vsel %vm764, %v3997, %v3993
      %v4003 = vsel %vm764, %v3999, %v3995
      %v4004 = vld [vmem:[%s769] ss:$8 sm:$0x3]
      %v4006 = vlaneseq
      %v4007 = vshrl.u32 %v4006, 7
      %v4008 = vsub.s32 0, %v4007
      %v4009 = vrot.slane %v4004, %v4008
      %v4010 = vlaneseq
      %v4011 = vshrl.u32 %v4010, 7
      %v4012 = vsub.s32 1, %v4011
      %v4013 = vrot.slane %v4004, %v4012
      %v4016 = vmul.f32 %v4000, %v4009
      %v4017 = vmul.f32 %v4002, %v4013
      %v4018 = vmul.f32 %v4001, %v4009
      %v4019 = vmul.f32 %v4003, %v4013
      %v4020 = vpack.c.bf16 %v4018, %v4016
      %v4021 = vpack.c.bf16 %v4019, %v4017
      %4022 = vst [vmem:[#allocation2 + $0xf0] sm:$0xff] %v4020
      %4023 = vst [vmem:[#allocation2 + $0xf8] sm:$0xff] %v4021
      %4024 = vrot.lane.b32.xlu0 %v1297, 112
      %v4025 = vpop.permute.xlu0 %4024
      %4026 = vrot.lane.b32.xlu0 %v1299, 112
      %v4027 = vpop.permute.xlu0 %4026
      %4028 = vrot.lane.b32.xlu0 %v1298, 112
      %v4029 = vpop.permute.xlu0 %4028
      %4030 = vrot.lane.b32.xlu0 %v1300, 112
      %v4031 = vpop.permute.xlu0 %4030
      %v4032 = vsel %vm798, %v4025, %v4029
      %v4033 = vsel %vm798, %v4027, %v4031
      %v4034 = vsel %vm798, %v4029, %v4025
      %v4035 = vsel %vm798, %v4031, %v4027
      %v4036 = vld [vmem:[%s803] ss:$8 sm:$0x3]
      %v4038 = vlaneseq
      %v4039 = vshrl.u32 %v4038, 7
      %v4040 = vsub.s32 0, %v4039
      %v4041 = vrot.slane %v4036, %v4040
      %v4042 = vlaneseq
      %v4043 = vshrl.u32 %v4042, 7
      %v4044 = vsub.s32 1, %v4043
      %v4045 = vrot.slane %v4036, %v4044
      %v4048 = vmul.f32 %v4032, %v4041
      %v4049 = vmul.f32 %v4034, %v4045
      %v4050 = vmul.f32 %v4033, %v4041
      %v4051 = vmul.f32 %v4035, %v4045
      %v4052 = vpack.c.bf16 %v4050, %v4048
      %v4053 = vpack.c.bf16 %v4051, %v4049
      %4054 = vst [vmem:[#allocation2 + $0x100] sm:$0xff] %v4052
      %4055 = vst [vmem:[#allocation2 + $0x108] sm:$0xff] %v4053
      %4056 = vrot.lane.b32.xlu0 %v1297, 111
      %v4057 = vpop.permute.xlu0 %4056
      %4058 = vrot.lane.b32.xlu0 %v1299, 111
      %v4059 = vpop.permute.xlu0 %4058
      %4060 = vrot.lane.b32.xlu0 %v1298, 111
      %v4061 = vpop.permute.xlu0 %4060
      %4062 = vrot.lane.b32.xlu0 %v1300, 111
      %v4063 = vpop.permute.xlu0 %4062
      %v4064 = vsel %vm832, %v4057, %v4061
      %v4065 = vsel %vm832, %v4059, %v4063
      %v4066 = vsel %vm832, %v4061, %v4057
      %v4067 = vsel %vm832, %v4063, %v4059
      %v4068 = vld [vmem:[%s837] ss:$8 sm:$0x3]
      %v4070 = vlaneseq
      %v4071 = vshrl.u32 %v4070, 7
      %v4072 = vsub.s32 0, %v4071
      %v4073 = vrot.slane %v4068, %v4072
      %v4074 = vlaneseq
      %v4075 = vshrl.u32 %v4074, 7
      %v4076 = vsub.s32 1, %v4075
      %v4077 = vrot.slane %v4068, %v4076
      %v4080 = vmul.f32 %v4064, %v4073
      %v4081 = vmul.f32 %v4066, %v4077
      %v4082 = vmul.f32 %v4065, %v4073
      %v4083 = vmul.f32 %v4067, %v4077
      %v4084 = vpack.c.bf16 %v4082, %v4080
      %v4085 = vpack.c.bf16 %v4083, %v4081
      %4086 = vst [vmem:[#allocation2 + $0x110] sm:$0xff] %v4084
      %4087 = vst [vmem:[#allocation2 + $0x118] sm:$0xff] %v4085
      %v4088 = vld [vmem:[%s16] sm:$0xff]
      %v4089 = vld [vmem:[%s16 + $0x8] sm:$0xf]
      %v4090 = vld [vmem:[%s16 + $0xc] sm:$0xff]
      %v4091 = vld [vmem:[%s16 + $0x14] sm:$0xf]
      %v4092 = vld [vmem:[#allocation2] sm:$0xff]
      %v4093 = vld [vmem:[#allocation2 + $0x8] sm:$0xff]
      %v4094 = vld [vmem:[#allocation2 + $0x10] sm:$0xff]
      %v4095 = vld [vmem:[#allocation2 + $0x18] sm:$0xff]
      %v4096 = vld [vmem:[#allocation2 + $0x20] sm:$0xff]
      %v4097 = vld [vmem:[#allocation2 + $0x28] sm:$0xff]
      %v4098 = vld [vmem:[#allocation2 + $0x30] sm:$0xff]
      %v4099 = vld [vmem:[#allocation2 + $0x38] sm:$0xff]
      %v4100 = vld [vmem:[#allocation2 + $0x40] sm:$0xff]
      %v4101 = vld [vmem:[#allocation2 + $0x48] sm:$0xff]
      %v4102 = vld [vmem:[#allocation2 + $0x50] sm:$0xff]
      %v4103 = vld [vmem:[#allocation2 + $0x58] sm:$0xff]
      %v4104 = vld [vmem:[#allocation2 + $0x60] sm:$0xff]
      %v4105 = vld [vmem:[#allocation2 + $0x68] sm:$0xff]
      %v4106 = vld [vmem:[#allocation2 + $0x70] sm:$0xff]
      %v4107 = vld [vmem:[#allocation2 + $0x78] sm:$0xff]
      %v4108 = vld [vmem:[#allocation2 + $0x80] sm:$0xff]
      %v4109 = vld [vmem:[#allocation2 + $0x88] sm:$0xff]
      %v4110 = vld [vmem:[#allocation2 + $0x90] sm:$0xff]
      %v4111 = vld [vmem:[#allocation2 + $0x98] sm:$0xff]
      %v4112 = vld [vmem:[#allocation2 + $0xa0] sm:$0xff]
      %v4113 = vld [vmem:[#allocation2 + $0xa8] sm:$0xff]
      %v4114 = vld [vmem:[#allocation2 + $0xb0] sm:$0xff]
      %v4115 = vld [vmem:[#allocation2 + $0xb8] sm:$0xff]
      %v4116 = vld [vmem:[#allocation2 + $0xc0] sm:$0xff]
      %v4117 = vld [vmem:[#allocation2 + $0xc8] sm:$0xff]
      %v4118 = vld [vmem:[#allocation2 + $0xd0] sm:$0xff]
      %v4119 = vld [vmem:[#allocation2 + $0xd8] sm:$0xff]
      %v4120 = vld [vmem:[#allocation2 + $0xe0] sm:$0xff]
      %v4121 = vld [vmem:[#allocation2 + $0xe8] sm:$0xff]
      %v4122 = vld [vmem:[#allocation2 + $0xf0] sm:$0xff]
      %v4123 = vld [vmem:[#allocation2 + $0xf8] sm:$0xff]
      %v4124 = vld [vmem:[#allocation2 + $0x100] sm:$0xff]
      %v4125 = vld [vmem:[#allocation2 + $0x108] sm:$0xff]
      %v4126 = vld [vmem:[#allocation2 + $0x110] sm:$0xff]
      %v4127 = vld [vmem:[#allocation2 + $0x118] sm:$0xff]
      %v4128 = vld [vmem:[%s17] sm:$0xff]
      %v4129 = vld [vmem:[%s17 + $0x8] sm:$0xff]
      %4131 = vset.pattern.permute.xlu0 0
      %4132 = vperm.xlu0 %4131, %v4128
      %v4133 = vpop.permute.xlu0 %4132
      %4136 = vset.pattern.permute.xlu0 0
      %4137 = vperm.xlu0 %4136, %v4129
      %v4138 = vpop.permute.xlu0 %4137
      %v4143 = vunpack.c.l.b16 %v4088
      %v4144 = vunpack.c.h.b16 %v4088
      %v4145 = vunpack.c.l.b16 %v4089
      %v4146 = vunpack.c.l.b16 %v4090
      %v4147 = vunpack.c.h.b16 %v4090
      %v4148 = vunpack.c.l.b16 %v4091
      %v4149 = vpack.c.b16 %v4146, %v4143
      %v4150 = vpack.c.b16 %v4147, %v4144
      %v4151 = vpack.c.b16 %v4148, %v4145
      %v4155 = vsel %vm2798, %v4151, 0
      %4157 = vmatprep.subr.bf16.mxu0 %v4093
      %4158 = vmatpush1.bf16.msra.mxu0 %v4092
      %4159 = vmatprep.subr.bf16.mxu0 %v4095
      %4160 = vmatpush1.bf16.msra.mxu0 %v4094
      %4161 = vmatprep.subr.bf16.mxu0 %v4097
      %4162 = vmatpush1.bf16.msra.mxu0 %v4096
      %4163 = vmatprep.subr.bf16.mxu0 %v4099
      %4164 = vmatpush1.bf16.msra.mxu0 %v4098
      %4165 = vmatprep.subr.bf16.mxu0 %v4101
      %4166 = vmatpush1.bf16.msra.mxu0 %v4100
      %4167 = vmatprep.subr.bf16.mxu0 %v4103
      %4168 = vmatpush1.bf16.msra.mxu0 %v4102
      %4169 = vmatprep.subr.bf16.mxu0 %v4105
      %4170 = vmatpush1.bf16.msra.mxu0 %v4104
      %4171 = vmatprep.subr.bf16.mxu0 %v4107
      %4172 = vmatpush1.bf16.msra.mxu0 %v4106
      %4173 = vmatprep.subr.bf16.mxu0 %v4109
      %4174 = vmatpush1.bf16.msra.mxu0 %v4108
      %4175 = vmatprep.subr.bf16.mxu0 %v4111
      %4176 = vmatpush1.bf16.msra.mxu0 %v4110
      %4177 = vmatprep.subr.bf16.mxu0 %v4113
      %4178 = vmatpush1.bf16.msra.mxu0 %v4112
      %4179 = vmatprep.subr.bf16.mxu0 %v4115
      %4180 = vmatpush1.bf16.msra.mxu0 %v4114
      %4181 = vmatprep.subr.bf16.mxu0 %v4117
      %4182 = vmatpush1.bf16.msra.mxu0 %v4116
      %4183 = vmatprep.subr.bf16.mxu0 %v4119
      %4184 = vmatpush1.bf16.msra.mxu0 %v4118
      %4185 = vmatprep.subr.bf16.mxu0 %v4121
      %4186 = vmatpush1.bf16.msra.mxu0 %v4120
      %4187 = vmatprep.subr.bf16.mxu0 %v4123
      %4188 = vmatpush1.bf16.msra.mxu0 %v4122
      %4189 = vmatprep.mubr.bf16.mxu0 %v4150
      %4190 = vmatmul.mubr.bf16.gmra.mrb[0].mxu0 %v4149
      %v4191 = vpop.f32.mrb[0].mxu0
      %v4192 = vadd.f32 %v4133, %v4191
      %v4193 = vpop.f32.mrb[0].mxu0
      %v4194 = vadd.f32 %v4133, %v4193
      %v4195 = vpop.f32.mrb[0].mxu0
      %v4196 = vpop.f32.mrb[0].mxu0
      %4197 = vdwg.mxu0
      %4198 = vmatprep.subr.bf16.mxu0 %v4125
      %4199 = vmatpush1.bf16.msra.mxu0 %v4124
      %4200 = vmatprep.subr.bf16.mxu0 %v4127
      %4201 = vmatpush1.bf16.msra.mxu0 %v4126
      %4202 = vmatprep.subr.bf16.mxu0 0
      %4203 = vmatpush1.bf16.msra.mxu0 0
      %4204 = vmatprep.subr.bf16.mxu0 0
      %4205 = vmatpush1.bf16.msra.mxu0 0
      %4206 = vmatprep.subr.bf16.mxu0 0
      %4207 = vmatpush1.bf16.msra.mxu0 0
      %4208 = vmatprep.subr.bf16.mxu0 0
      %4209 = vmatpush1.bf16.msra.mxu0 0
      %4210 = vmatprep.subr.bf16.mxu0 0
      %4211 = vmatpush1.bf16.msra.mxu0 0
      %4212 = vmatprep.subr.bf16.mxu0 0
      %4213 = vmatpush1.bf16.msra.mxu0 0
      %4214 = vmatprep.subr.bf16.mxu0 0
      %4215 = vmatpush1.bf16.msra.mxu0 0
      %4216 = vmatprep.subr.bf16.mxu0 0
      %4217 = vmatpush1.bf16.msra.mxu0 0
      %4218 = vmatprep.subr.bf16.mxu0 0
      %4219 = vmatpush1.bf16.msra.mxu0 0
      %4220 = vmatprep.subr.bf16.mxu0 0
      %4221 = vmatpush1.bf16.msra.mxu0 0
      %4222 = vmatprep.subr.bf16.mxu0 0
      %4223 = vmatpush1.bf16.msra.mxu0 0
      %4224 = vmatprep.subr.bf16.mxu0 0
      %4225 = vmatpush1.bf16.msra.mxu0 0
      %4226 = vmatprep.subr.bf16.mxu0 0
      %4227 = vmatpush1.bf16.msra.mxu0 0
      %4228 = vmatprep.subr.bf16.mxu0 0
      %4229 = vmatpush1.bf16.msra.mxu0 0
      %4230 = vmatprep.mubr.bf16.mxu0 0
      %4231 = vmatmul.mubr.bf16.gmra.mrb[0].mxu0 %v4155
      %v4232 = vpop.f32.mrb[0].mxu0
      %v4233 = vadd.f32 %v4192, %v4232
      %v4234 = vpop.f32.mrb[0].mxu0
      %v4235 = vadd.f32 %v4194, %v4234
      %v4236 = vpop.f32.mrb[0].mxu0
      %v4237 = vpop.f32.mrb[0].mxu0
      %4238 = vdwg.mxu0
      %v4239 = vmax.f32 %v4233, 0.0
      %v4240 = vmax.f32 %v4235, 0.0
      %v4241 = vadd.f32 %v4239, %v946
      %v4242 = vadd.f32 %v4240, %v947
      %v4245 = vcombine.low %v4241, %v4242
      %4247 = vst [vmem:[%s575] sm:$0xff] %v4245
      %p4248 = scmp.lt.s32.totalorder %s29, 1
      %s4249 = scalar_select %p4248, %s29, 1
      %s4250 = smul.addr %s4249, 2
      %s4251 = smul.addr %s4250, 4
      %s4252 = scalar_lea.vmem %s18, %s4251
      // Predicated region
      $region93: #{rsu4f_forward.1} parent=91 // pred_check
        %p4253 = pneg %p430
      $region94: #{rsu4f_forward.1} parent=91 // pred_check_branch
        %4255 = sbr.rel (%p4253) target = $region96
      $region95: #{rsu4f_forward.1} parent=91 // pred_region
        _
      $region96: #{rsu4f_forward.1} parent=91 // pred_fallthru
        _
    $region92: #{rsu4f_forward.1} parent=5 // pred_fallthru
      _
    %p4256 = scmp.le.s32.totalorder 2, %s24
    // Predicated region
    $region97: #{rsu4f_forward.1} parent=5 // pred_check
      %p4257 = pneg %p4256
    $region98: #{rsu4f_forward.1} parent=5 // pred_check_branch
      %4259 = sbr.rel (%p4257) target = $region100
    $region99: #{rsu4f_forward.1} parent=5 // pred_region
      %s4260 = ssub.s32 %s24, 2
      // Predicated region
      $region101: #{rsu4f_forward.1} parent=99 // pred_check
        %p4261 = pneg %p436
      $region102: #{rsu4f_forward.1} parent=99 // pred_check_branch
        %4263 = sbr.rel (%p4261) target = $region104
      $region103: #{rsu4f_forward.1} parent=99 // pred_region
        %p4264 = scmp.lt.s32.totalorder %s30, 1
        %s4265 = scalar_select %p4264, %s30, 1
        %s4266 = smul.addr %s4265, 2
        %s4267 = smul.addr %s4266, 4
        %s4268 = scalar_lea.vmem %s18, %s4267
      $region104: #{rsu4f_forward.1} parent=99 // pred_fallthru
        _
    $region100: #{rsu4f_forward.1} parent=5 // pred_fallthru
      _
  $region6: #{rsu4f_forward.1} parent=0 // loop_footer
    %s28 = sadd.s32 1, %s24
  $region7: #{rsu4f_forward.1} parent=0 // loop_footer_branch
    %23 = sbr.rel target = $region3
  $region8: #{rsu4f_forward.1} parent=0 // loop_exit
    _

</llo_original>
